<compile_context>
chip_gen: v5e
topology: v5e:2x2
jax: 0.10.0
libtpu: 0.0.40
codegen_flags: <defaults>
</compile_context>

<pallas_src>
import jax
import jax.numpy as jnp
import numpy as np
from jax.experimental import pallas as pl
from jax.experimental.pallas import tpu as pltpu  # noqa: F401  (TPU backend assumed)

# ---- problem sizes (module constraints: N == seq_len, H == 8, L == len(index)) ----
B, N, L, S = 2, 4, 8, 8          # batch, nodes(=seq_len), query len(=len(index)), key len
D_MODEL = 32
H = 8                            # n_heads (must be 8: weights1 hard-codes 8 heads)
E = D_MODEL // H                 # d_keys = d_values
O = D_MODEL // 8                 # out_channels // 8
BN = B * N
ROWS = BN * L                    # 64 folded (b, n, x) rows

# Layout / semantics guards (the final reshape trick assumes H == L, the fused
# batch fold assumes L == S, the mask/replication use power-of-two L).
assert H == 8 and H * E == D_MODEL and O * 8 == D_MODEL
assert L == S, "fused QKV slab assumes query length == key length"
assert H == L, "torch .reshape(B, N, L, -1) maps the head index onto L; needs H == L"
_LOG2_L = L.bit_length() - 1
assert (1 << _LOG2_L) == L, "block mask uses shifts; L must be a power of two"


def _fused_attn_kernel(qkv_ref, w_ref, b_ref, w1_ref, o_ref):
    f32 = jnp.float32
    q2 = qkv_ref[0]                                   # (64, 32)
    k2 = qkv_ref[1]
    v2 = qkv_ref[2]

    # Q/K/V projections: three 64-row MXU matmuls.  (wv/bv were permuted in the
    # wrapper so vp columns are e-major: d = e*H + h.)
    qp = jnp.dot(q2, w_ref[0], preferred_element_type=f32) + b_ref[0]
    kp = jnp.dot(k2, w_ref[1], preferred_element_type=f32) + b_ref[1]
    vp = jnp.dot(v2, w_ref[2], preferred_element_type=f32) + b_ref[2]

    kpT = kp.T                                        # (32, 64): one small transpose

    # Block-diagonal softmax bias: 0 inside the own (b, n) block, -1e30 outside.
    rows = jax.lax.broadcasted_iota(jnp.int32, (ROWS, ROWS), 0)
    cols = jax.lax.broadcasted_iota(jnp.int32, (ROWS, ROWS), 1)
    same_block = jnp.right_shift(rows, _LOG2_L) == jnp.right_shift(cols, _LOG2_L)
    bias = jnp.where(same_block, 0.0, -1e30).astype(f32)

    # Per-head 64x64 gram + |.|-softmax, summed over heads (torch contracts the
    # head axis of the softmaxed map away).
    attn_sum = jnp.zeros((ROWS, ROWS), f32)
    for h in range(H):
        qh = qp[:, h * E:(h + 1) * E]                 # (64, 4)
        khT = kpT[h * E:(h + 1) * E, :]               # (4, 64)
        g = jnp.dot(qh, khT, preferred_element_type=f32)
        sa = jnp.abs(g) + bias
        m = jnp.max(sa, axis=-1, keepdims=True)
        p = jnp.exp(sa - m)
        s = jnp.sum(p, axis=-1, keepdims=True)
        attn_sum = attn_sum + p * (1.0 / s)           # exact recip on (64,1) only

    # Attention application: one (64,64)x(64,32) MXU matmul (off-block attn == 0).
    xqkv = jnp.dot(attn_sum, vp, preferred_element_type=f32)        # (64, 32)
    # Single batched minor-dim transpose: (bn, x, d) -> (bn, d, x), d = e*H + h.
    xT = jnp.transpose(xqkv.reshape(BN, L, D_MODEL), (0, 2, 1))     # (8, 32, 8)

    # 0/1 lane-replication matrix rep[x, o*L + x'] = (x' == x): replicate the L
    # lanes across the O output channels on the MXU instead of lane concatenates.
    src = jax.lax.broadcasted_iota(jnp.int32, (L, O * L), 0)
    lane = jax.lax.broadcasted_iota(jnp.int32, (L, O * L), 1)
    rep = (jnp.bitwise_and(lane, L - 1) == src).astype(f32)

    # weights1 contraction, unrolled over E, accumulating straight into the
    # (64, 32) slab with rows (b, n, h) and columns o*L + x.
    z = jnp.zeros((BN * H, O * L), f32)
    for e in range(E):
        xe = xT[:, e * H:(e + 1) * H, :].reshape(BN * H, L)          # (64, 8)
        xe_rep = jnp.dot(xe, rep, preferred_element_type=f32)        # (64, 32)
        z = z + xe_rep * w1_ref[e]

    # Fused torch reshape (rows already ordered (b, n, h)) + out_projection.
    y = jnp.dot(z, w_ref[3], preferred_element_type=f32) + b_ref[3]
    o_ref[...] = y                                                   # (64, 32) store


def pack_params(params):
    """One-time parameter re-layout (call once, outside the per-step hot path)."""
    # Value projection rows permuted to e-major (new row e*H+h <- old h*E+e) so
    # the kernel's weights1 slices hit 8-sublane-aligned row blocks.
    perm = np.arange(D_MODEL).reshape(H, E).T.reshape(-1)
    wstack = jnp.stack([params["wq"].T, params["wk"].T,
                        params["wv"][perm, :].T, params["wo"].T], axis=0)      # (4,32,32)
    bstack = jnp.stack([params["bq"], params["bk"],
                        params["bv"][perm], params["bo"]], axis=0)
    bstack = bstack.reshape(4, 1, D_MODEL)                                     # (4,1,32)
    # weights1 (N,H,E,O,L) -> (E, N*H, O*L), tiled over B so rows match (b,n,h).
    w1s = jnp.transpose(params["w1"], (2, 0, 1, 3, 4)).reshape(E, N * H, O * L)
    w1s = jnp.tile(w1s, (1, B, 1))                                             # (E,64,32)
    return {"wstack": wstack, "bstack": bstack, "w1s": w1s}


def attention_channel_forward(queries, keys, values, packed):
    # Free reshapes, then one small stack so the kernel gets QKV in a single DMA.
    qf = queries.reshape(B * N * L, D_MODEL)
    kf = keys.reshape(B * N * S, D_MODEL)
    vf = values.reshape(B * N * S, D_MODEL)
    qkv = jnp.stack([qf, kf, vf], axis=0)                                      # (3,64,32)

    out = pl.pallas_call(
        _fused_attn_kernel,
        out_shape=jax.ShapeDtypeStruct((B * N * H, D_MODEL), jnp.float32),
    )(qkv, packed["wstack"], packed["bstack"], packed["w1s"])

    # Rows are ordered (b, n, h); torch's .reshape(B, N, L, -1) makes l_out == h
    # (H == L == 8).  Free reshape back to (B, N, L, D_MODEL).
    return out.reshape(B, N, H, D_MODEL)


def reference_forward(queries, keys, values, params):
    """Pure-JAX mirror of the PyTorch module (for verification)."""
    hp = jax.lax.Precision.HIGHEST
    qp = jnp.dot(queries, params["wq"].T, precision=hp) + params["bq"]
    kp = jnp.dot(keys, params["wk"].T, precision=hp) + params["bk"]
    vp = jnp.dot(values, params["wv"].T, precision=hp) + params["bv"]
    q5 = qp.reshape(B, N, L, H, E)
    k5 = kp.reshape(B, N, S, H, E)
    v5 = vp.reshape(B, N, S, H, E)
    xq = jnp.transpose(q5, (0, 1, 3, 4, 2))
    xk = jnp.transpose(k5, (0, 1, 3, 4, 2))
    xv = jnp.transpose(v5, (0, 1, 3, 4, 2))
    xqk = jnp.einsum('bnhex,bnhey->bnhxy', xq, xk, precision=hp)
    xqk = jax.nn.softmax(jnp.abs(xqk), axis=-1)
    xqkv = jnp.einsum('bnlxy,bnhey->bnhex', xqk, xv, precision=hp)
    out = jnp.einsum('bnhex,nheox->bnhox', xqkv, params["w1"], precision=hp)
    out = out.reshape(B, N, L, -1)
    return jnp.dot(out, params["wo"].T, precision=hp) + params["bo"]


def make_params(key):
    ks = jax.random.split(key, 9)

    def linear_init(kw, kb, out_f, in_f):
        bound = 1.0 / np.sqrt(in_f)
        w = jax.random.uniform(kw, (out_f, in_f), jnp.float32, -bound, bound)
        b = jax.random.uniform(kb, (out_f,), jnp.float32, -bound, bound)
        return w, b

    wq, bq = linear_init(ks[0], ks[1], D_MODEL, D_MODEL)
    wk, bk = linear_init(ks[2], ks[3], D_MODEL, D_MODEL)
    wv, bv = linear_init(ks[4], ks[5], D_MODEL, D_MODEL)
    wo, bo = linear_init(ks[6], ks[7], D_MODEL, D_MODEL)
    scale = 1.0 / (D_MODEL * D_MODEL)
    w1 = scale * jax.random.uniform(ks[8], (N, H, E, O, L), jnp.float32)
    return {"wq": wq, "bq": bq, "wk": wk, "bk": bk, "wv": wv, "bv": bv,
            "wo": wo, "bo": bo, "w1": w1}


if __name__ == "__main__":
    key = jax.random.PRNGKey(0)
    kq, kk, kv, kparam = jax.random.split(key, 4)
    # TODO(synk): module takes complex inputs and uses `.real`; we feed real
    # inputs directly (torch `.real` on a real tensor is the identity).
    queries = jax.random.normal(kq, (B, N, L, D_MODEL), jnp.float32)
    keys = jax.random.normal(kk, (B, N, S, D_MODEL), jnp.float32)
    values = jax.random.normal(kv, (B, N, S, D_MODEL), jnp.float32)
    params = make_params(kparam)
    packed = pack_params(params)          # one-time parameter re-layout

    fwd = jax.jit(attention_channel_forward)
    out = jax.block_until_ready(fwd(queries, keys, values, packed))

    ref = reference_forward(queries, keys, values, params)
    np.testing.assert_allclose(np.asarray(out), np.asarray(ref),
                               rtol=2e-3, atol=2e-4)
    print("KERNEL_OK")
</pallas_src>

<mosaic_0001>
module attributes {stable_mosaic.version = 11 : i64} {
  func.func @_fused_attn_kernel(%arg0: memref<3x64x32xf32, #tpu.memory_space<vmem>>, %arg1: memref<4x32x32xf32, #tpu.memory_space<vmem>>, %arg2: memref<4x1x32xf32, #tpu.memory_space<vmem>>, %arg3: memref<4x64x32xf32, #tpu.memory_space<vmem>>, %arg4: memref<64x32xf32, #tpu.memory_space<vmem>>) attributes {dimension_semantics = [], scalar_prefetch = 0 : i64, scratch_operands = 0 : i64, tpu.core_type = #tpu.core_type<tc>} {
    %c0 = arith.constant 0 : index
    %c0_0 = arith.constant 0 : index
    %c0_1 = arith.constant 0 : index
    %0 = vector.load %arg0[%c0, %c0_0, %c0_1] : memref<3x64x32xf32, #tpu.memory_space<vmem>>, vector<1x64x32xf32>
    %1 = vector.shape_cast %0 : vector<1x64x32xf32> to vector<64x32xf32>
    %c1 = arith.constant 1 : index
    %c0_2 = arith.constant 0 : index
    %c0_3 = arith.constant 0 : index
    %2 = vector.load %arg0[%c1, %c0_2, %c0_3] : memref<3x64x32xf32, #tpu.memory_space<vmem>>, vector<1x64x32xf32>
    %3 = vector.shape_cast %2 : vector<1x64x32xf32> to vector<64x32xf32>
    %c2 = arith.constant 2 : index
    %c0_4 = arith.constant 0 : index
    %c0_5 = arith.constant 0 : index
    %4 = vector.load %arg0[%c2, %c0_4, %c0_5] : memref<3x64x32xf32, #tpu.memory_space<vmem>>, vector<1x64x32xf32>
    %5 = vector.shape_cast %4 : vector<1x64x32xf32> to vector<64x32xf32>
    %c0_6 = arith.constant 0 : index
    %c0_7 = arith.constant 0 : index
    %c0_8 = arith.constant 0 : index
    %6 = vector.load %arg1[%c0_6, %c0_7, %c0_8] : memref<4x32x32xf32, #tpu.memory_space<vmem>>, vector<1x32x32xf32>
    %7 = vector.shape_cast %6 : vector<1x32x32xf32> to vector<32x32xf32>
    %cst = arith.constant dense<0.000000e+00> : vector<64x32xf32>
    %8 = tpu.matmul %1, %7, %cst {dimension_numbers = #tpu.dot_dimension_numbers<[1], [0], [0], [1], [0, 0, 1, 1], [], []>} : vector<64x32xf32>, vector<32x32xf32>, vector<64x32xf32> -> vector<64x32xf32>
    %c0_9 = arith.constant 0 : index
    %c0_10 = arith.constant 0 : index
    %c0_11 = arith.constant 0 : index
    %9 = vector.load %arg2[%c0_9, %c0_10, %c0_11] : memref<4x1x32xf32, #tpu.memory_space<vmem>>, vector<1x1x32xf32>
    %10 = vector.shape_cast %9 : vector<1x1x32xf32> to vector<1x32xf32>
    %11 = vector.broadcast %10 : vector<1x32xf32> to vector<64x32xf32>
    %12 = arith.addf %8, %11 : vector<64x32xf32>
    %c1_12 = arith.constant 1 : index
    %c0_13 = arith.constant 0 : index
    %c0_14 = arith.constant 0 : index
    %13 = vector.load %arg1[%c1_12, %c0_13, %c0_14] : memref<4x32x32xf32, #tpu.memory_space<vmem>>, vector<1x32x32xf32>
    %14 = vector.shape_cast %13 : vector<1x32x32xf32> to vector<32x32xf32>
    %cst_15 = arith.constant dense<0.000000e+00> : vector<64x32xf32>
    %15 = tpu.matmul %3, %14, %cst_15 {dimension_numbers = #tpu.dot_dimension_numbers<[1], [0], [0], [1], [0, 0, 1, 1], [], []>} : vector<64x32xf32>, vector<32x32xf32>, vector<64x32xf32> -> vector<64x32xf32>
    %c1_16 = arith.constant 1 : index
    %c0_17 = arith.constant 0 : index
    %c0_18 = arith.constant 0 : index
    %16 = vector.load %arg2[%c1_16, %c0_17, %c0_18] : memref<4x1x32xf32, #tpu.memory_space<vmem>>, vector<1x1x32xf32>
    %17 = vector.shape_cast %16 : vector<1x1x32xf32> to vector<1x32xf32>
    %18 = vector.broadcast %17 : vector<1x32xf32> to vector<64x32xf32>
    %19 = arith.addf %15, %18 : vector<64x32xf32>
    %c2_19 = arith.constant 2 : index
    %c0_20 = arith.constant 0 : index
    %c0_21 = arith.constant 0 : index
    %20 = vector.load %arg1[%c2_19, %c0_20, %c0_21] : memref<4x32x32xf32, #tpu.memory_space<vmem>>, vector<1x32x32xf32>
    %21 = vector.shape_cast %20 : vector<1x32x32xf32> to vector<32x32xf32>
    %cst_22 = arith.constant dense<0.000000e+00> : vector<64x32xf32>
    %22 = tpu.matmul %5, %21, %cst_22 {dimension_numbers = #tpu.dot_dimension_numbers<[1], [0], [0], [1], [0, 0, 1, 1], [], []>} : vector<64x32xf32>, vector<32x32xf32>, vector<64x32xf32> -> vector<64x32xf32>
    %c2_23 = arith.constant 2 : index
    %c0_24 = arith.constant 0 : index
    %c0_25 = arith.constant 0 : index
    %23 = vector.load %arg2[%c2_23, %c0_24, %c0_25] : memref<4x1x32xf32, #tpu.memory_space<vmem>>, vector<1x1x32xf32>
    %24 = vector.shape_cast %23 : vector<1x1x32xf32> to vector<1x32xf32>
    %25 = vector.broadcast %24 : vector<1x32xf32> to vector<64x32xf32>
    %26 = arith.addf %22, %25 : vector<64x32xf32>
    %27 = tpu.transpose %19, [1, 0] : vector<64x32xf32> -> vector<32x64xf32>
    %28 = tpu.iota {dimensions = array<i32: 0>} : vector<64x64xi32>
    %29 = tpu.iota {dimensions = array<i32: 1>} : vector<64x64xi32>
    %c3_i32 = arith.constant 3 : i32
    %30 = vector.broadcast %c3_i32 : i32 to vector<64x64xi32>
    %31 = arith.shrsi %28, %30 : vector<64x64xi32>
    %c3_i32_26 = arith.constant 3 : i32
    %32 = vector.broadcast %c3_i32_26 : i32 to vector<64x64xi32>
    %33 = arith.shrsi %29, %32 : vector<64x64xi32>
    %34 = arith.cmpi eq, %31, %33 : vector<64x64xi32>
    %cst_27 = arith.constant 0.000000e+00 : f32
    %cst_28 = arith.constant -1.000000e+30 : f32
    %35 = vector.broadcast %cst_27 : f32 to vector<64x64xf32>
    %36 = vector.broadcast %cst_28 : f32 to vector<64x64xf32>
    %37 = arith.select %34, %35, %36 : vector<64x64xi1>, vector<64x64xf32>
    %cst_29 = arith.constant 0.000000e+00 : f32
    %38 = vector.broadcast %cst_29 : f32 to vector<64x64xf32>
    %39 = vector.extract_strided_slice %12 {offsets = [0, 0], sizes = [64, 4], strides = [1, 1]} : vector<64x32xf32> to vector<64x4xf32>
    %40 = vector.extract_strided_slice %27 {offsets = [0, 0], sizes = [4, 64], strides = [1, 1]} : vector<32x64xf32> to vector<4x64xf32>
    %cst_30 = arith.constant dense<0.000000e+00> : vector<64x64xf32>
    %41 = tpu.matmul %39, %40, %cst_30 {dimension_numbers = #tpu.dot_dimension_numbers<[1], [0], [0], [1], [0, 0, 1, 1], [], []>} : vector<64x4xf32>, vector<4x64xf32>, vector<64x64xf32> -> vector<64x64xf32>
    %42 = math.absf %41 : vector<64x64xf32>
    %43 = arith.addf %42, %37 : vector<64x64xf32>
    %cst_31 = arith.constant dense<0xFF800000> : vector<64xf32>
    %44 = vector.multi_reduction <maximumf>, %43, %cst_31 [1] : vector<64x64xf32> to vector<64xf32>
    %45 = vector.shape_cast %44 : vector<64xf32> to vector<64x1xf32>
    %46 = vector.broadcast %45 : vector<64x1xf32> to vector<64x64xf32>
    %47 = arith.subf %43, %46 : vector<64x64xf32>
    %48 = math.exp %47 : vector<64x64xf32>
    %cst_32 = arith.constant dense<0.000000e+00> : vector<64xf32>
    %49 = vector.multi_reduction <add>, %48, %cst_32 [1] : vector<64x64xf32> to vector<64xf32>
    %50 = vector.shape_cast %49 : vector<64xf32> to vector<64x1xf32>
    %cst_33 = arith.constant 1.000000e+00 : f32
    %51 = vector.broadcast %cst_33 : f32 to vector<64x1xf32>
    %52 = arith.divf %51, %50 : vector<64x1xf32>
    %53 = vector.broadcast %52 : vector<64x1xf32> to vector<64x64xf32>
    %54 = arith.mulf %48, %53 : vector<64x64xf32>
    %55 = arith.addf %38, %54 : vector<64x64xf32>
    %56 = vector.extract_strided_slice %12 {offsets = [0, 4], sizes = [64, 4], strides = [1, 1]} : vector<64x32xf32> to vector<64x4xf32>
    %57 = vector.extract_strided_slice %27 {offsets = [4, 0], sizes = [4, 64], strides = [1, 1]} : vector<32x64xf32> to vector<4x64xf32>
    %cst_34 = arith.constant dense<0.000000e+00> : vector<64x64xf32>
    %58 = tpu.matmul %56, %57, %cst_34 {dimension_numbers = #tpu.dot_dimension_numbers<[1], [0], [0], [1], [0, 0, 1, 1], [], []>} : vector<64x4xf32>, vector<4x64xf32>, vector<64x64xf32> -> vector<64x64xf32>
    %59 = math.absf %58 : vector<64x64xf32>
    %60 = arith.addf %59, %37 : vector<64x64xf32>
    %cst_35 = arith.constant dense<0xFF800000> : vector<64xf32>
    %61 = vector.multi_reduction <maximumf>, %60, %cst_35 [1] : vector<64x64xf32> to vector<64xf32>
    %62 = vector.shape_cast %61 : vector<64xf32> to vector<64x1xf32>
    %63 = vector.broadcast %62 : vector<64x1xf32> to vector<64x64xf32>
    %64 = arith.subf %60, %63 : vector<64x64xf32>
    %65 = math.exp %64 : vector<64x64xf32>
    %cst_36 = arith.constant dense<0.000000e+00> : vector<64xf32>
    %66 = vector.multi_reduction <add>, %65, %cst_36 [1] : vector<64x64xf32> to vector<64xf32>
    %67 = vector.shape_cast %66 : vector<64xf32> to vector<64x1xf32>
    %cst_37 = arith.constant 1.000000e+00 : f32
    %68 = vector.broadcast %cst_37 : f32 to vector<64x1xf32>
    %69 = arith.divf %68, %67 : vector<64x1xf32>
    %70 = vector.broadcast %69 : vector<64x1xf32> to vector<64x64xf32>
    %71 = arith.mulf %65, %70 : vector<64x64xf32>
    %72 = arith.addf %55, %71 : vector<64x64xf32>
    %73 = vector.extract_strided_slice %12 {offsets = [0, 8], sizes = [64, 4], strides = [1, 1]} : vector<64x32xf32> to vector<64x4xf32>
    %74 = vector.extract_strided_slice %27 {offsets = [8, 0], sizes = [4, 64], strides = [1, 1]} : vector<32x64xf32> to vector<4x64xf32>
    %cst_38 = arith.constant dense<0.000000e+00> : vector<64x64xf32>
    %75 = tpu.matmul %73, %74, %cst_38 {dimension_numbers = #tpu.dot_dimension_numbers<[1], [0], [0], [1], [0, 0, 1, 1], [], []>} : vector<64x4xf32>, vector<4x64xf32>, vector<64x64xf32> -> vector<64x64xf32>
    %76 = math.absf %75 : vector<64x64xf32>
    %77 = arith.addf %76, %37 : vector<64x64xf32>
    %cst_39 = arith.constant dense<0xFF800000> : vector<64xf32>
    %78 = vector.multi_reduction <maximumf>, %77, %cst_39 [1] : vector<64x64xf32> to vector<64xf32>
    %79 = vector.shape_cast %78 : vector<64xf32> to vector<64x1xf32>
    %80 = vector.broadcast %79 : vector<64x1xf32> to vector<64x64xf32>
    %81 = arith.subf %77, %80 : vector<64x64xf32>
    %82 = math.exp %81 : vector<64x64xf32>
    %cst_40 = arith.constant dense<0.000000e+00> : vector<64xf32>
    %83 = vector.multi_reduction <add>, %82, %cst_40 [1] : vector<64x64xf32> to vector<64xf32>
    %84 = vector.shape_cast %83 : vector<64xf32> to vector<64x1xf32>
    %cst_41 = arith.constant 1.000000e+00 : f32
    %85 = vector.broadcast %cst_41 : f32 to vector<64x1xf32>
    %86 = arith.divf %85, %84 : vector<64x1xf32>
    %87 = vector.broadcast %86 : vector<64x1xf32> to vector<64x64xf32>
    %88 = arith.mulf %82, %87 : vector<64x64xf32>
    %89 = arith.addf %72, %88 : vector<64x64xf32>
    %90 = vector.extract_strided_slice %12 {offsets = [0, 12], sizes = [64, 4], strides = [1, 1]} : vector<64x32xf32> to vector<64x4xf32>
    %91 = vector.extract_strided_slice %27 {offsets = [12, 0], sizes = [4, 64], strides = [1, 1]} : vector<32x64xf32> to vector<4x64xf32>
    %cst_42 = arith.constant dense<0.000000e+00> : vector<64x64xf32>
    %92 = tpu.matmul %90, %91, %cst_42 {dimension_numbers = #tpu.dot_dimension_numbers<[1], [0], [0], [1], [0, 0, 1, 1], [], []>} : vector<64x4xf32>, vector<4x64xf32>, vector<64x64xf32> -> vector<64x64xf32>
    %93 = math.absf %92 : vector<64x64xf32>
    %94 = arith.addf %93, %37 : vector<64x64xf32>
    %cst_43 = arith.constant dense<0xFF800000> : vector<64xf32>
    %95 = vector.multi_reduction <maximumf>, %94, %cst_43 [1] : vector<64x64xf32> to vector<64xf32>
    %96 = vector.shape_cast %95 : vector<64xf32> to vector<64x1xf32>
    %97 = vector.broadcast %96 : vector<64x1xf32> to vector<64x64xf32>
    %98 = arith.subf %94, %97 : vector<64x64xf32>
    %99 = math.exp %98 : vector<64x64xf32>
    %cst_44 = arith.constant dense<0.000000e+00> : vector<64xf32>
    %100 = vector.multi_reduction <add>, %99, %cst_44 [1] : vector<64x64xf32> to vector<64xf32>
    %101 = vector.shape_cast %100 : vector<64xf32> to vector<64x1xf32>
    %cst_45 = arith.constant 1.000000e+00 : f32
    %102 = vector.broadcast %cst_45 : f32 to vector<64x1xf32>
    %103 = arith.divf %102, %101 : vector<64x1xf32>
    %104 = vector.broadcast %103 : vector<64x1xf32> to vector<64x64xf32>
    %105 = arith.mulf %99, %104 : vector<64x64xf32>
    %106 = arith.addf %89, %105 : vector<64x64xf32>
    %107 = vector.extract_strided_slice %12 {offsets = [0, 16], sizes = [64, 4], strides = [1, 1]} : vector<64x32xf32> to vector<64x4xf32>
    %108 = vector.extract_strided_slice %27 {offsets = [16, 0], sizes = [4, 64], strides = [1, 1]} : vector<32x64xf32> to vector<4x64xf32>
    %cst_46 = arith.constant dense<0.000000e+00> : vector<64x64xf32>
    %109 = tpu.matmul %107, %108, %cst_46 {dimension_numbers = #tpu.dot_dimension_numbers<[1], [0], [0], [1], [0, 0, 1, 1], [], []>} : vector<64x4xf32>, vector<4x64xf32>, vector<64x64xf32> -> vector<64x64xf32>
    %110 = math.absf %109 : vector<64x64xf32>
    %111 = arith.addf %110, %37 : vector<64x64xf32>
    %cst_47 = arith.constant dense<0xFF800000> : vector<64xf32>
    %112 = vector.multi_reduction <maximumf>, %111, %cst_47 [1] : vector<64x64xf32> to vector<64xf32>
    %113 = vector.shape_cast %112 : vector<64xf32> to vector<64x1xf32>
    %114 = vector.broadcast %113 : vector<64x1xf32> to vector<64x64xf32>
    %115 = arith.subf %111, %114 : vector<64x64xf32>
    %116 = math.exp %115 : vector<64x64xf32>
    %cst_48 = arith.constant dense<0.000000e+00> : vector<64xf32>
    %117 = vector.multi_reduction <add>, %116, %cst_48 [1] : vector<64x64xf32> to vector<64xf32>
    %118 = vector.shape_cast %117 : vector<64xf32> to vector<64x1xf32>
    %cst_49 = arith.constant 1.000000e+00 : f32
    %119 = vector.broadcast %cst_49 : f32 to vector<64x1xf32>
    %120 = arith.divf %119, %118 : vector<64x1xf32>
    %121 = vector.broadcast %120 : vector<64x1xf32> to vector<64x64xf32>
    %122 = arith.mulf %116, %121 : vector<64x64xf32>
    %123 = arith.addf %106, %122 : vector<64x64xf32>
    %124 = vector.extract_strided_slice %12 {offsets = [0, 20], sizes = [64, 4], strides = [1, 1]} : vector<64x32xf32> to vector<64x4xf32>
    %125 = vector.extract_strided_slice %27 {offsets = [20, 0], sizes = [4, 64], strides = [1, 1]} : vector<32x64xf32> to vector<4x64xf32>
    %cst_50 = arith.constant dense<0.000000e+00> : vector<64x64xf32>
    %126 = tpu.matmul %124, %125, %cst_50 {dimension_numbers = #tpu.dot_dimension_numbers<[1], [0], [0], [1], [0, 0, 1, 1], [], []>} : vector<64x4xf32>, vector<4x64xf32>, vector<64x64xf32> -> vector<64x64xf32>
    %127 = math.absf %126 : vector<64x64xf32>
    %128 = arith.addf %127, %37 : vector<64x64xf32>
    %cst_51 = arith.constant dense<0xFF800000> : vector<64xf32>
    %129 = vector.multi_reduction <maximumf>, %128, %cst_51 [1] : vector<64x64xf32> to vector<64xf32>
    %130 = vector.shape_cast %129 : vector<64xf32> to vector<64x1xf32>
    %131 = vector.broadcast %130 : vector<64x1xf32> to vector<64x64xf32>
    %132 = arith.subf %128, %131 : vector<64x64xf32>
    %133 = math.exp %132 : vector<64x64xf32>
    %cst_52 = arith.constant dense<0.000000e+00> : vector<64xf32>
    %134 = vector.multi_reduction <add>, %133, %cst_52 [1] : vector<64x64xf32> to vector<64xf32>
    %135 = vector.shape_cast %134 : vector<64xf32> to vector<64x1xf32>
    %cst_53 = arith.constant 1.000000e+00 : f32
    %136 = vector.broadcast %cst_53 : f32 to vector<64x1xf32>
    %137 = arith.divf %136, %135 : vector<64x1xf32>
    %138 = vector.broadcast %137 : vector<64x1xf32> to vector<64x64xf32>
    %139 = arith.mulf %133, %138 : vector<64x64xf32>
    %140 = arith.addf %123, %139 : vector<64x64xf32>
    %141 = vector.extract_strided_slice %12 {offsets = [0, 24], sizes = [64, 4], strides = [1, 1]} : vector<64x32xf32> to vector<64x4xf32>
    %142 = vector.extract_strided_slice %27 {offsets = [24, 0], sizes = [4, 64], strides = [1, 1]} : vector<32x64xf32> to vector<4x64xf32>
    %cst_54 = arith.constant dense<0.000000e+00> : vector<64x64xf32>
    %143 = tpu.matmul %141, %142, %cst_54 {dimension_numbers = #tpu.dot_dimension_numbers<[1], [0], [0], [1], [0, 0, 1, 1], [], []>} : vector<64x4xf32>, vector<4x64xf32>, vector<64x64xf32> -> vector<64x64xf32>
    %144 = math.absf %143 : vector<64x64xf32>
    %145 = arith.addf %144, %37 : vector<64x64xf32>
    %cst_55 = arith.constant dense<0xFF800000> : vector<64xf32>
    %146 = vector.multi_reduction <maximumf>, %145, %cst_55 [1] : vector<64x64xf32> to vector<64xf32>
    %147 = vector.shape_cast %146 : vector<64xf32> to vector<64x1xf32>
    %148 = vector.broadcast %147 : vector<64x1xf32> to vector<64x64xf32>
    %149 = arith.subf %145, %148 : vector<64x64xf32>
    %150 = math.exp %149 : vector<64x64xf32>
    %cst_56 = arith.constant dense<0.000000e+00> : vector<64xf32>
    %151 = vector.multi_reduction <add>, %150, %cst_56 [1] : vector<64x64xf32> to vector<64xf32>
    %152 = vector.shape_cast %151 : vector<64xf32> to vector<64x1xf32>
    %cst_57 = arith.constant 1.000000e+00 : f32
    %153 = vector.broadcast %cst_57 : f32 to vector<64x1xf32>
    %154 = arith.divf %153, %152 : vector<64x1xf32>
    %155 = vector.broadcast %154 : vector<64x1xf32> to vector<64x64xf32>
    %156 = arith.mulf %150, %155 : vector<64x64xf32>
    %157 = arith.addf %140, %156 : vector<64x64xf32>
    %158 = vector.extract_strided_slice %12 {offsets = [0, 28], sizes = [64, 4], strides = [1, 1]} : vector<64x32xf32> to vector<64x4xf32>
    %159 = vector.extract_strided_slice %27 {offsets = [28, 0], sizes = [4, 64], strides = [1, 1]} : vector<32x64xf32> to vector<4x64xf32>
    %cst_58 = arith.constant dense<0.000000e+00> : vector<64x64xf32>
    %160 = tpu.matmul %158, %159, %cst_58 {dimension_numbers = #tpu.dot_dimension_numbers<[1], [0], [0], [1], [0, 0, 1, 1], [], []>} : vector<64x4xf32>, vector<4x64xf32>, vector<64x64xf32> -> vector<64x64xf32>
    %161 = math.absf %160 : vector<64x64xf32>
    %162 = arith.addf %161, %37 : vector<64x64xf32>
    %cst_59 = arith.constant dense<0xFF800000> : vector<64xf32>
    %163 = vector.multi_reduction <maximumf>, %162, %cst_59 [1] : vector<64x64xf32> to vector<64xf32>
    %164 = vector.shape_cast %163 : vector<64xf32> to vector<64x1xf32>
    %165 = vector.broadcast %164 : vector<64x1xf32> to vector<64x64xf32>
    %166 = arith.subf %162, %165 : vector<64x64xf32>
    %167 = math.exp %166 : vector<64x64xf32>
    %cst_60 = arith.constant dense<0.000000e+00> : vector<64xf32>
    %168 = vector.multi_reduction <add>, %167, %cst_60 [1] : vector<64x64xf32> to vector<64xf32>
    %169 = vector.shape_cast %168 : vector<64xf32> to vector<64x1xf32>
    %cst_61 = arith.constant 1.000000e+00 : f32
    %170 = vector.broadcast %cst_61 : f32 to vector<64x1xf32>
    %171 = arith.divf %170, %169 : vector<64x1xf32>
    %172 = vector.broadcast %171 : vector<64x1xf32> to vector<64x64xf32>
    %173 = arith.mulf %167, %172 : vector<64x64xf32>
    %174 = arith.addf %157, %173 : vector<64x64xf32>
    %cst_62 = arith.constant dense<0.000000e+00> : vector<64x32xf32>
    %175 = tpu.matmul %174, %26, %cst_62 {dimension_numbers = #tpu.dot_dimension_numbers<[1], [0], [0], [1], [0, 0, 1, 1], [], []>} : vector<64x64xf32>, vector<64x32xf32>, vector<64x32xf32> -> vector<64x32xf32>
    %176 = vector.shape_cast %175 : vector<64x32xf32> to vector<8x8x32xf32>
    %177 = tpu.transpose %176, [0, 2, 1] : vector<8x8x32xf32> -> vector<8x32x8xf32>
    %178 = tpu.iota {dimensions = array<i32: 0>} : vector<8x32xi32>
    %179 = tpu.iota {dimensions = array<i32: 1>} : vector<8x32xi32>
    %c7_i32 = arith.constant 7 : i32
    %180 = vector.broadcast %c7_i32 : i32 to vector<8x32xi32>
    %181 = arith.andi %179, %180 : vector<8x32xi32>
    %182 = arith.cmpi eq, %181, %178 : vector<8x32xi32>
    %183 = arith.extui %182 : vector<8x32xi1> to vector<8x32xi32>
    %184 = arith.sitofp %183 : vector<8x32xi32> to vector<8x32xf32>
    %cst_63 = arith.constant 0.000000e+00 : f32
    %185 = vector.broadcast %cst_63 : f32 to vector<64x32xf32>
    %186 = vector.extract_strided_slice %177 {offsets = [0, 0, 0], sizes = [8, 8, 8], strides = [1, 1, 1]} : vector<8x32x8xf32> to vector<8x8x8xf32>
    %187 = vector.shape_cast %186 : vector<8x8x8xf32> to vector<64x8xf32>
    %cst_64 = arith.constant dense<0.000000e+00> : vector<64x32xf32>
    %188 = tpu.matmul %187, %184, %cst_64 {dimension_numbers = #tpu.dot_dimension_numbers<[1], [0], [0], [1], [0, 0, 1, 1], [], []>} : vector<64x8xf32>, vector<8x32xf32>, vector<64x32xf32> -> vector<64x32xf32>
    %c0_65 = arith.constant 0 : index
    %c0_66 = arith.constant 0 : index
    %c0_67 = arith.constant 0 : index
    %189 = vector.load %arg3[%c0_65, %c0_66, %c0_67] : memref<4x64x32xf32, #tpu.memory_space<vmem>>, vector<1x64x32xf32>
    %190 = vector.shape_cast %189 : vector<1x64x32xf32> to vector<64x32xf32>
    %191 = arith.mulf %188, %190 : vector<64x32xf32>
    %192 = arith.addf %185, %191 : vector<64x32xf32>
    %193 = vector.extract_strided_slice %177 {offsets = [0, 8, 0], sizes = [8, 8, 8], strides = [1, 1, 1]} : vector<8x32x8xf32> to vector<8x8x8xf32>
    %194 = vector.shape_cast %193 : vector<8x8x8xf32> to vector<64x8xf32>
    %cst_68 = arith.constant dense<0.000000e+00> : vector<64x32xf32>
    %195 = tpu.matmul %194, %184, %cst_68 {dimension_numbers = #tpu.dot_dimension_numbers<[1], [0], [0], [1], [0, 0, 1, 1], [], []>} : vector<64x8xf32>, vector<8x32xf32>, vector<64x32xf32> -> vector<64x32xf32>
    %c1_69 = arith.constant 1 : index
    %c0_70 = arith.constant 0 : index
    %c0_71 = arith.constant 0 : index
    %196 = vector.load %arg3[%c1_69, %c0_70, %c0_71] : memref<4x64x32xf32, #tpu.memory_space<vmem>>, vector<1x64x32xf32>
    %197 = vector.shape_cast %196 : vector<1x64x32xf32> to vector<64x32xf32>
    %198 = arith.mulf %195, %197 : vector<64x32xf32>
    %199 = arith.addf %192, %198 : vector<64x32xf32>
    %200 = vector.extract_strided_slice %177 {offsets = [0, 16, 0], sizes = [8, 8, 8], strides = [1, 1, 1]} : vector<8x32x8xf32> to vector<8x8x8xf32>
    %201 = vector.shape_cast %200 : vector<8x8x8xf32> to vector<64x8xf32>
    %cst_72 = arith.constant dense<0.000000e+00> : vector<64x32xf32>
    %202 = tpu.matmul %201, %184, %cst_72 {dimension_numbers = #tpu.dot_dimension_numbers<[1], [0], [0], [1], [0, 0, 1, 1], [], []>} : vector<64x8xf32>, vector<8x32xf32>, vector<64x32xf32> -> vector<64x32xf32>
    %c2_73 = arith.constant 2 : index
    %c0_74 = arith.constant 0 : index
    %c0_75 = arith.constant 0 : index
    %203 = vector.load %arg3[%c2_73, %c0_74, %c0_75] : memref<4x64x32xf32, #tpu.memory_space<vmem>>, vector<1x64x32xf32>
    %204 = vector.shape_cast %203 : vector<1x64x32xf32> to vector<64x32xf32>
    %205 = arith.mulf %202, %204 : vector<64x32xf32>
    %206 = arith.addf %199, %205 : vector<64x32xf32>
    %207 = vector.extract_strided_slice %177 {offsets = [0, 24, 0], sizes = [8, 8, 8], strides = [1, 1, 1]} : vector<8x32x8xf32> to vector<8x8x8xf32>
    %208 = vector.shape_cast %207 : vector<8x8x8xf32> to vector<64x8xf32>
    %cst_76 = arith.constant dense<0.000000e+00> : vector<64x32xf32>
    %209 = tpu.matmul %208, %184, %cst_76 {dimension_numbers = #tpu.dot_dimension_numbers<[1], [0], [0], [1], [0, 0, 1, 1], [], []>} : vector<64x8xf32>, vector<8x32xf32>, vector<64x32xf32> -> vector<64x32xf32>
    %c3 = arith.constant 3 : index
    %c0_77 = arith.constant 0 : index
    %c0_78 = arith.constant 0 : index
    %210 = vector.load %arg3[%c3, %c0_77, %c0_78] : memref<4x64x32xf32, #tpu.memory_space<vmem>>, vector<1x64x32xf32>
    %211 = vector.shape_cast %210 : vector<1x64x32xf32> to vector<64x32xf32>
    %212 = arith.mulf %209, %211 : vector<64x32xf32>
    %213 = arith.addf %206, %212 : vector<64x32xf32>
    %c3_79 = arith.constant 3 : index
    %c0_80 = arith.constant 0 : index
    %c0_81 = arith.constant 0 : index
    %214 = vector.load %arg1[%c3_79, %c0_80, %c0_81] : memref<4x32x32xf32, #tpu.memory_space<vmem>>, vector<1x32x32xf32>
    %215 = vector.shape_cast %214 : vector<1x32x32xf32> to vector<32x32xf32>
    %cst_82 = arith.constant dense<0.000000e+00> : vector<64x32xf32>
    %216 = tpu.matmul %213, %215, %cst_82 {dimension_numbers = #tpu.dot_dimension_numbers<[1], [0], [0], [1], [0, 0, 1, 1], [], []>} : vector<64x32xf32>, vector<32x32xf32>, vector<64x32xf32> -> vector<64x32xf32>
    %c3_83 = arith.constant 3 : index
    %c0_84 = arith.constant 0 : index
    %c0_85 = arith.constant 0 : index
    %217 = vector.load %arg2[%c3_83, %c0_84, %c0_85] : memref<4x1x32xf32, #tpu.memory_space<vmem>>, vector<1x1x32xf32>
    %218 = vector.shape_cast %217 : vector<1x1x32xf32> to vector<1x32xf32>
    %219 = vector.broadcast %218 : vector<1x32xf32> to vector<64x32xf32>
    %220 = arith.addf %216, %219 : vector<64x32xf32>
    %c0_86 = arith.constant 0 : index
    %c0_87 = arith.constant 0 : index
    %221 = vector.load %arg4[%c0_86, %c0_87] : memref<64x32xf32, #tpu.memory_space<vmem>>, vector<64x32xf32>
    tpu.vector_store %arg4[%c0_86, %c0_87], %220 {strides = array<i32>} : memref<64x32xf32, #tpu.memory_space<vmem>>, vector<64x32xf32>,
    return
  }
}

</mosaic_0001>

<llo_original>
// kernel: attention_channel_forward.1
$region0: #{attention_channel_forward.1}
  #allocation0 [shape = 'u32[]', space=smem, size = 0x4, offset = 0x4, fixed_abs, tag = 'smem constant byte address 0x4 - core index']
  #allocation1 [shape = 'u32[72,128]{1,0:T(1,128)}', space=vmem, size = 0x9000, scoped, tag = 'internal scratch']
  %s0 = inlined_call_operand.vmem [shape: f32[3,64,32], index: 0, kind: input, shape index: {}]
  %s1 = inlined_call_operand.vmem [shape: f32[4,32,32], index: 1, kind: input, shape index: {}]
  %s2 = inlined_call_operand.vmem [shape: f32[4,1,32], index: 2, kind: input, shape index: {}]
  %s3 = inlined_call_operand.vmem [shape: f32[4,64,32], index: 3, kind: input, shape index: {}]
  %s4 = inlined_call_operand.hbm [shape: f32[64,32], index: 4, kind: output, shape index: {}]
  %s5 = sld [smem:[#allocation0]]
  $region26: #{attention_channel_forward.1} parent=0
    _
  %s7 = ssub.s32 1, %s5
  %s8 = scalar_select 0, %s7, %s5
  $region1: #{attention_channel_forward.1} parent=0
    #allocation2 [shape = 'u8[32768]{0}', space=vmem, size = 0x8000, scoped, tag = 'output window, operand 0, single buffered']
    #allocation3 [shape = 's32[1]{0}', space=sflag, size = 0x4, scoped, tag = 'scoped memory for attention_channel_forward.1']
    %9 = vsyncpa [#allocation3], 0
    // Predicated region
    $region2: #{attention_channel_forward.1} parent=1 // pred_check
      _
    $region3: #{attention_channel_forward.1} parent=1 // pred_check_branch
      %11 = sbr.rel (0) target = $region5
    $region4: #{attention_channel_forward.1} parent=1 // pred_region
      _
    $region5: #{attention_channel_forward.1} parent=1 // pred_fallthru
      _
    // Predicated region
    $region6: #{attention_channel_forward.1} parent=1 // pred_check
      _
    $region7: #{attention_channel_forward.1} parent=1 // pred_check_branch
      %13 = sbr.rel (0) target = $region9
    $region8: #{attention_channel_forward.1} parent=1 // pred_region
      _
    $region9: #{attention_channel_forward.1} parent=1 // pred_fallthru
      _
    // Predicated region
    $region10: #{attention_channel_forward.1} parent=1 // pred_check
      _
    $region11: #{attention_channel_forward.1} parent=1 // pred_check_branch
      %15 = sbr.rel (0) target = $region13
    $region12: #{attention_channel_forward.1} parent=1 // pred_region
      _
    $region13: #{attention_channel_forward.1} parent=1 // pred_fallthru
      _
    // Predicated region
    $region14: #{attention_channel_forward.1} parent=1 // pred_check
      _
    $region15: #{attention_channel_forward.1} parent=1 // pred_check_branch
      %17 = sbr.rel (0) target = $region17
    $region16: #{attention_channel_forward.1} parent=1 // pred_region
      _
    $region17: #{attention_channel_forward.1} parent=1 // pred_fallthru
      _
    %v18 = vld [vmem:[%s0] sm:$0xff]
    %v19 = vld [vmem:[%s0 + $0x8] sm:$0xff]
    %v20 = vld [vmem:[%s0 + $0x10] sm:$0xff]
    %v21 = vld [vmem:[%s0 + $0x18] sm:$0xff]
    %v22 = vld [vmem:[%s0 + $0x20] sm:$0xff]
    %v23 = vld [vmem:[%s0 + $0x28] sm:$0xff]
    %v24 = vld [vmem:[%s0 + $0x30] sm:$0xff]
    %v25 = vld [vmem:[%s0 + $0x38] sm:$0xff]
    %s26 = scalar_lea.vmem %s0, 64
    %v27 = vld [vmem:[%s26] sm:$0xff]
    %v28 = vld [vmem:[%s26 + $0x8] sm:$0xff]
    %v29 = vld [vmem:[%s26 + $0x10] sm:$0xff]
    %v30 = vld [vmem:[%s26 + $0x18] sm:$0xff]
    %v31 = vld [vmem:[%s26 + $0x20] sm:$0xff]
    %v32 = vld [vmem:[%s26 + $0x28] sm:$0xff]
    %v33 = vld [vmem:[%s26 + $0x30] sm:$0xff]
    %v34 = vld [vmem:[%s26 + $0x38] sm:$0xff]
    %s35 = scalar_lea.vmem %s0, 128
    %v36 = vld [vmem:[%s35] sm:$0xff]
    %v37 = vld [vmem:[%s35 + $0x8] sm:$0xff]
    %v38 = vld [vmem:[%s35 + $0x10] sm:$0xff]
    %v39 = vld [vmem:[%s35 + $0x18] sm:$0xff]
    %v40 = vld [vmem:[%s35 + $0x20] sm:$0xff]
    %v41 = vld [vmem:[%s35 + $0x28] sm:$0xff]
    %v42 = vld [vmem:[%s35 + $0x30] sm:$0xff]
    %v43 = vld [vmem:[%s35 + $0x38] sm:$0xff]
    %v44 = vld [vmem:[%s1] sm:$0xff]
    %v45 = vld [vmem:[%s1 + $0x8] sm:$0xff]
    %v46 = vld [vmem:[%s1 + $0x10] sm:$0xff]
    %v47 = vld [vmem:[%s1 + $0x18] sm:$0xff]
    %v48 = vld [vmem:[%s2] sm:$0x1]
    %v50 = vperm.slane %v48, 0
    %vm52 = vcmask 261120
    %v54 = vsel %vm52, %v18, 0
    %v57 = vsel %vm52, %v19, 0
    %v60 = vsel %vm52, %v20, 0
    %v63 = vsel %vm52, %v21, 0
    %v66 = vsel %vm52, %v22, 0
    %v69 = vsel %vm52, %v23, 0
    %v72 = vsel %vm52, %v24, 0
    %v75 = vsel %vm52, %v25, 0
    %77 = vmatpush.msra.mxu0 0.0
    %78 = vmatpush.msra.mxu0 0.0
    %79 = vmatpush.msra.mxu0 0.0
    %80 = vmatpush.msra.mxu0 0.0
    %81 = vmatpush.msra.mxu0 0.0
    %82 = vmatpush.msra.mxu0 0.0
    %83 = vmatpush.msra.mxu0 0.0
    %84 = vmatpush.msra.mxu0 0.0
    %85 = vmatpush.msra.mxu0 0.0
    %86 = vmatpush.msra.mxu0 0.0
    %87 = vmatpush.msra.mxu0 0.0
    %88 = vmatpush.msra.mxu0 0.0
    %89 = vmatpush.msra.mxu0 %v47
    %90 = vmatpush.msra.mxu0 %v46
    %91 = vmatpush.msra.mxu0 %v45
    %92 = vmatpush.msra.mxu0 %v44
    %93 = vmatmul.f32.gmra.mxu0 %v54
    %v94 = vpop.f32.mrf.mxu0
    %v95 = vadd.f32 %v50, %v94
    %96 = vmatmul.f32.gmra.mxu0 %v57
    %v97 = vpop.f32.mrf.mxu0
    %v98 = vadd.f32 %v50, %v97
    %99 = vmatmul.f32.gmra.mxu0 %v60
    %v100 = vpop.f32.mrf.mxu0
    %v101 = vadd.f32 %v50, %v100
    %102 = vmatmul.f32.gmra.mxu0 %v63
    %v103 = vpop.f32.mrf.mxu0
    %v104 = vadd.f32 %v50, %v103
    %105 = vmatmul.f32.gmra.mxu0 %v66
    %v106 = vpop.f32.mrf.mxu0
    %v107 = vadd.f32 %v50, %v106
    %108 = vmatmul.f32.gmra.mxu0 %v69
    %v109 = vpop.f32.mrf.mxu0
    %v110 = vadd.f32 %v50, %v109
    %111 = vmatmul.f32.gmra.mxu0 %v72
    %v112 = vpop.f32.mrf.mxu0
    %v113 = vadd.f32 %v50, %v112
    %114 = vmatmul.f32.gmra.mxu0 %v75
    %v115 = vpop.f32.mrf.mxu0
    %v116 = vadd.f32 %v50, %v115
    %117 = vdwg.mxu0
    %s118 = scalar_lea.vmem %s1, 32
    %v119 = vld [vmem:[%s118] sm:$0xff]
    %v120 = vld [vmem:[%s118 + $0x8] sm:$0xff]
    %v121 = vld [vmem:[%s118 + $0x10] sm:$0xff]
    %v122 = vld [vmem:[%s118 + $0x18] sm:$0xff]
    %s123 = scalar_lea.vmem %s2, 1
    %v124 = vld [vmem:[%s123] sm:$0x1]
    %v126 = vperm.slane %v124, 0
    %v129 = vsel %vm52, %v27, 0
    %v132 = vsel %vm52, %v28, 0
    %v135 = vsel %vm52, %v29, 0
    %v138 = vsel %vm52, %v30, 0
    %v141 = vsel %vm52, %v31, 0
    %v144 = vsel %vm52, %v32, 0
    %v147 = vsel %vm52, %v33, 0
    %v150 = vsel %vm52, %v34, 0
    %152 = vmatpush.msra.mxu0 0.0
    %153 = vmatpush.msra.mxu0 0.0
    %154 = vmatpush.msra.mxu0 0.0
    %155 = vmatpush.msra.mxu0 0.0
    %156 = vmatpush.msra.mxu0 0.0
    %157 = vmatpush.msra.mxu0 0.0
    %158 = vmatpush.msra.mxu0 0.0
    %159 = vmatpush.msra.mxu0 0.0
    %160 = vmatpush.msra.mxu0 0.0
    %161 = vmatpush.msra.mxu0 0.0
    %162 = vmatpush.msra.mxu0 0.0
    %163 = vmatpush.msra.mxu0 0.0
    %164 = vmatpush.msra.mxu0 %v122
    %165 = vmatpush.msra.mxu0 %v121
    %166 = vmatpush.msra.mxu0 %v120
    %167 = vmatpush.msra.mxu0 %v119
    %168 = vmatmul.f32.gmra.mxu0 %v129
    %v169 = vpop.f32.mrf.mxu0
    %v170 = vadd.f32 %v126, %v169
    %171 = vmatmul.f32.gmra.mxu0 %v132
    %v172 = vpop.f32.mrf.mxu0
    %v173 = vadd.f32 %v126, %v172
    %174 = vmatmul.f32.gmra.mxu0 %v135
    %v175 = vpop.f32.mrf.mxu0
    %v176 = vadd.f32 %v126, %v175
    %177 = vmatmul.f32.gmra.mxu0 %v138
    %v178 = vpop.f32.mrf.mxu0
    %v179 = vadd.f32 %v126, %v178
    %180 = vmatmul.f32.gmra.mxu0 %v141
    %v181 = vpop.f32.mrf.mxu0
    %v182 = vadd.f32 %v126, %v181
    %183 = vmatmul.f32.gmra.mxu0 %v144
    %v184 = vpop.f32.mrf.mxu0
    %v185 = vadd.f32 %v126, %v184
    %186 = vmatmul.f32.gmra.mxu0 %v147
    %v187 = vpop.f32.mrf.mxu0
    %v188 = vadd.f32 %v126, %v187
    %189 = vmatmul.f32.gmra.mxu0 %v150
    %v190 = vpop.f32.mrf.mxu0
    %v191 = vadd.f32 %v126, %v190
    %192 = vdwg.mxu0
    %s193 = scalar_lea.vmem %s1, 64
    %v194 = vld [vmem:[%s193] sm:$0xff]
    %v195 = vld [vmem:[%s193 + $0x8] sm:$0xff]
    %v196 = vld [vmem:[%s193 + $0x10] sm:$0xff]
    %v197 = vld [vmem:[%s193 + $0x18] sm:$0xff]
    %s198 = scalar_lea.vmem %s2, 2
    %v199 = vld [vmem:[%s198] sm:$0x1]
    %v201 = vperm.slane %v199, 0
    %v204 = vsel %vm52, %v36, 0
    %v207 = vsel %vm52, %v37, 0
    %v210 = vsel %vm52, %v38, 0
    %v213 = vsel %vm52, %v39, 0
    %v216 = vsel %vm52, %v40, 0
    %v219 = vsel %vm52, %v41, 0
    %v222 = vsel %vm52, %v42, 0
    %v225 = vsel %vm52, %v43, 0
    %227 = vmatpush.msra.mxu0 0.0
    %228 = vmatpush.msra.mxu0 0.0
    %229 = vmatpush.msra.mxu0 0.0
    %230 = vmatpush.msra.mxu0 0.0
    %231 = vmatpush.msra.mxu0 0.0
    %232 = vmatpush.msra.mxu0 0.0
    %233 = vmatpush.msra.mxu0 0.0
    %234 = vmatpush.msra.mxu0 0.0
    %235 = vmatpush.msra.mxu0 0.0
    %236 = vmatpush.msra.mxu0 0.0
    %237 = vmatpush.msra.mxu0 0.0
    %238 = vmatpush.msra.mxu0 0.0
    %239 = vmatpush.msra.mxu0 %v197
    %240 = vmatpush.msra.mxu0 %v196
    %241 = vmatpush.msra.mxu0 %v195
    %242 = vmatpush.msra.mxu0 %v194
    %243 = vmatmul.f32.gmra.mxu0 %v204
    %v244 = vpop.f32.mrf.mxu0
    %v245 = vadd.f32 %v201, %v244
    %246 = vmatmul.f32.gmra.mxu0 %v207
    %v247 = vpop.f32.mrf.mxu0
    %v248 = vadd.f32 %v201, %v247
    %249 = vmatmul.f32.gmra.mxu0 %v210
    %v250 = vpop.f32.mrf.mxu0
    %v251 = vadd.f32 %v201, %v250
    %252 = vmatmul.f32.gmra.mxu0 %v213
    %v253 = vpop.f32.mrf.mxu0
    %v254 = vadd.f32 %v201, %v253
    %255 = vmatmul.f32.gmra.mxu0 %v216
    %v256 = vpop.f32.mrf.mxu0
    %v257 = vadd.f32 %v201, %v256
    %258 = vmatmul.f32.gmra.mxu0 %v219
    %v259 = vpop.f32.mrf.mxu0
    %v260 = vadd.f32 %v201, %v259
    %261 = vmatmul.f32.gmra.mxu0 %v222
    %v262 = vpop.f32.mrf.mxu0
    %v263 = vadd.f32 %v201, %v262
    %264 = vmatmul.f32.gmra.mxu0 %v225
    %v265 = vpop.f32.mrf.mxu0
    %v266 = vadd.f32 %v201, %v265
    %267 = vdwg.mxu0
    %v268 = vlaneseq
    %v269 = vshrl.u32 %v268, 7
    %v270 = vadd.s32 %v269, 8
    %v271 = vadd.s32 %v269, 16
    %v272 = vadd.s32 %v269, 24
    %v273 = vadd.s32 %v269, 32
    %v274 = vadd.s32 %v269, 40
    %v275 = vadd.s32 %v269, 48
    %v276 = vadd.s32 %v269, 56
    %v277 = vlaneseq
    %v278 = vand.u32 %v277, 127
    %v279 = vshra.s32 %v269, 3
    %v280 = vshra.s32 %v270, 3
    %v281 = vshra.s32 %v271, 3
    %v282 = vshra.s32 %v272, 3
    %v283 = vshra.s32 %v273, 3
    %v284 = vshra.s32 %v274, 3
    %v285 = vshra.s32 %v275, 3
    %v286 = vshra.s32 %v276, 3
    %v287 = vshra.s32 %v278, 3
    %vm288 = vcmp.eq.s32.totalorder %v279, %v287
    %vm289 = vcmp.eq.s32.totalorder %v280, %v287
    %vm290 = vcmp.eq.s32.totalorder %v281, %v287
    %vm291 = vcmp.eq.s32.totalorder %v282, %v287
    %vm292 = vcmp.eq.s32.totalorder %v283, %v287
    %vm293 = vcmp.eq.s32.totalorder %v284, %v287
    %vm294 = vcmp.eq.s32.totalorder %v285, %v287
    %vm295 = vcmp.eq.s32.totalorder %v286, %v287
    %v296 = vsel %vm288, 0.0, -1e+30
    %v297 = vsel %vm289, 0.0, -1e+30
    %v298 = vsel %vm290, 0.0, -1e+30
    %v299 = vsel %vm291, 0.0, -1e+30
    %v300 = vsel %vm292, 0.0, -1e+30
    %v301 = vsel %vm293, 0.0, -1e+30
    %v302 = vsel %vm294, 0.0, -1e+30
    %v303 = vsel %vm295, 0.0, -1e+30
    %vm304 = vcmask 31744
    %v306 = vsel %vm304, %v95, 0
    %v309 = vsel %vm304, %v98, 0
    %v312 = vsel %vm304, %v101, 0
    %v315 = vsel %vm304, %v104, 0
    %v318 = vsel %vm304, %v107, 0
    %v321 = vsel %vm304, %v110, 0
    %v324 = vsel %vm304, %v113, 0
    %v327 = vsel %vm304, %v116, 0
    %v330 = vsel %vm304, %v170, 0
    %v333 = vsel %vm304, %v173, 0
    %v336 = vsel %vm304, %v176, 0
    %v339 = vsel %vm304, %v179, 0
    %v342 = vsel %vm304, %v182, 0
    %v345 = vsel %vm304, %v185, 0
    %v348 = vsel %vm304, %v188, 0
    %v351 = vsel %vm304, %v191, 0
    %353 = vmatpush.xpose.msra.mxu0 0.0
    %354 = vmatpush.xpose.msra.mxu0 0.0
    %355 = vmatpush.xpose.msra.mxu0 0.0
    %356 = vmatpush.xpose.msra.mxu0 0.0
    %357 = vmatpush.xpose.msra.mxu0 0.0
    %358 = vmatpush.xpose.msra.mxu0 0.0
    %359 = vmatpush.xpose.msra.mxu0 0.0
    %360 = vmatpush.xpose.msra.mxu0 0.0
    %361 = vmatpush.xpose.msra.mxu0 %v351
    %362 = vmatpush.xpose.msra.mxu0 %v348
    %363 = vmatpush.xpose.msra.mxu0 %v345
    %364 = vmatpush.xpose.msra.mxu0 %v342
    %365 = vmatpush.xpose.msra.mxu0 %v339
    %366 = vmatpush.xpose.msra.mxu0 %v336
    %367 = vmatpush.xpose.msra.mxu0 %v333
    %368 = vmatpush.xpose.msra.mxu0 %v330
    %369 = vmatmul.f32.gmra.mxu0 %v306
    %v370 = vpop.f32.mrf.mxu0
    %v371 = vadd.f32 0.0, %v370
    %372 = vmatmul.f32.gmra.mxu0 %v309
    %v373 = vpop.f32.mrf.mxu0
    %v374 = vadd.f32 0.0, %v373
    %375 = vmatmul.f32.gmra.mxu0 %v312
    %v376 = vpop.f32.mrf.mxu0
    %v377 = vadd.f32 0.0, %v376
    %378 = vmatmul.f32.gmra.mxu0 %v315
    %v379 = vpop.f32.mrf.mxu0
    %v380 = vadd.f32 0.0, %v379
    %381 = vmatmul.f32.gmra.mxu0 %v318
    %v382 = vpop.f32.mrf.mxu0
    %v383 = vadd.f32 0.0, %v382
    %384 = vmatmul.f32.gmra.mxu0 %v321
    %v385 = vpop.f32.mrf.mxu0
    %v386 = vadd.f32 0.0, %v385
    %387 = vmatmul.f32.gmra.mxu0 %v324
    %v388 = vpop.f32.mrf.mxu0
    %v389 = vadd.f32 0.0, %v388
    %390 = vmatmul.f32.gmra.mxu0 %v327
    %v391 = vpop.f32.mrf.mxu0
    %v392 = vadd.f32 0.0, %v391
    %393 = vdwg.mxu0
    %v394 = vand.u32 2147483647, %v371
    %v395 = vand.u32 2147483647, %v374
    %v396 = vand.u32 2147483647, %v377
    %v397 = vand.u32 2147483647, %v380
    %v398 = vand.u32 2147483647, %v383
    %v399 = vand.u32 2147483647, %v386
    %v400 = vand.u32 2147483647, %v389
    %v401 = vand.u32 2147483647, %v392
    %v402 = vadd.f32 %v394, %v296
    %v403 = vadd.f32 %v395, %v297
    %v404 = vadd.f32 %v396, %v298
    %v405 = vadd.f32 %v397, %v299
    %v406 = vadd.f32 %v398, %v300
    %v407 = vadd.f32 %v399, %v301
    %v408 = vadd.f32 %v400, %v302
    %v409 = vadd.f32 %v401, %v303
    %vm410 = vcmask 523264
    %v411 = vsel %vm410, %v402, -inf
    %412 = vmax.xlane.f32.xlu0 %v411
    %v413 = vpop.xlane.xlu0 %412
    %v414 = vsel %vm410, %v403, -inf
    %415 = vmax.xlane.f32.xlu0 %v414
    %v416 = vpop.xlane.xlu0 %415
    %v417 = vsel %vm410, %v404, -inf
    %418 = vmax.xlane.f32.xlu0 %v417
    %v419 = vpop.xlane.xlu0 %418
    %v420 = vsel %vm410, %v405, -inf
    %421 = vmax.xlane.f32.xlu0 %v420
    %v422 = vpop.xlane.xlu0 %421
    %v423 = vsel %vm410, %v406, -inf
    %424 = vmax.xlane.f32.xlu0 %v423
    %v425 = vpop.xlane.xlu0 %424
    %v426 = vsel %vm410, %v407, -inf
    %427 = vmax.xlane.f32.xlu0 %v426
    %v428 = vpop.xlane.xlu0 %427
    %v429 = vsel %vm410, %v408, -inf
    %430 = vmax.xlane.f32.xlu0 %v429
    %v431 = vpop.xlane.xlu0 %430
    %v432 = vsel %vm410, %v409, -inf
    %433 = vmax.xlane.f32.xlu0 %v432
    %v434 = vpop.xlane.xlu0 %433
    %v435 = vsub.f32 %v402, %v413
    %v436 = vsub.f32 %v403, %v416
    %v437 = vsub.f32 %v404, %v419
    %v438 = vsub.f32 %v405, %v422
    %v439 = vsub.f32 %v406, %v425
    %v440 = vsub.f32 %v407, %v428
    %v441 = vsub.f32 %v408, %v431
    %v442 = vsub.f32 %v409, %v434
    %v443 = vmul.f32 %v435, 1.442695
    %v444 = vpow.pop %v443
    %v445 = vmul.f32 %v436, 1.442695
    %v446 = vpow.pop %v445
    %v447 = vmul.f32 %v437, 1.442695
    %v448 = vpow.pop %v447
    %v449 = vmul.f32 %v438, 1.442695
    %v450 = vpow.pop %v449
    %v451 = vmul.f32 %v439, 1.442695
    %v452 = vpow.pop %v451
    %v453 = vmul.f32 %v440, 1.442695
    %v454 = vpow.pop %v453
    %v455 = vmul.f32 %v441, 1.442695
    %v456 = vpow.pop %v455
    %v457 = vmul.f32 %v442, 1.442695
    %v458 = vpow.pop %v457
    %v459 = vsel %vm410, %v444, 0.0
    %460 = vadd.xlane.f32.xlu0 %v459
    %v461 = vpop.xlane.xlu0 %460
    %v462 = vsel %vm410, %v446, 0.0
    %463 = vadd.xlane.f32.xlu0 %v462
    %v464 = vpop.xlane.xlu0 %463
    %v465 = vsel %vm410, %v448, 0.0
    %466 = vadd.xlane.f32.xlu0 %v465
    %v467 = vpop.xlane.xlu0 %466
    %v468 = vsel %vm410, %v450, 0.0
    %469 = vadd.xlane.f32.xlu0 %v468
    %v470 = vpop.xlane.xlu0 %469
    %v471 = vsel %vm410, %v452, 0.0
    %472 = vadd.xlane.f32.xlu0 %v471
    %v473 = vpop.xlane.xlu0 %472
    %v474 = vsel %vm410, %v454, 0.0
    %475 = vadd.xlane.f32.xlu0 %v474
    %v476 = vpop.xlane.xlu0 %475
    %v477 = vsel %vm410, %v456, 0.0
    %478 = vadd.xlane.f32.xlu0 %v477
    %v479 = vpop.xlane.xlu0 %478
    %v480 = vsel %vm410, %v458, 0.0
    %481 = vadd.xlane.f32.xlu0 %v480
    %v482 = vpop.xlane.xlu0 %481
    %v483 = vrcp.pop %v461
    %v484 = vmul.f32 %v461, %v483
    %v485 = vsub.f32 1.0, %v484
    %v486 = vmul.f32 %v483, %v485
    %v487 = vadd.f32 %v483, %v486
    %vm488 = vweird.f32 %v461
    %vm489 = vweird.f32 %v483
    %vm490 = vmor %vm488, %vm489
    %v491 = vsel %vm490, %v483, %v487
    %v492 = vand.u32 2147483647, %v461
    %vm493 = vcmp.eq.f32.partialorder %v492, 8.507059e+37
    %v494 = vand.u32 %v461, 2147483648
    %v495 = vor.u32 1.1754944e-38, %v494
    %v496 = vsel %vm493, %v495, %v491
    %v497 = vmul.f32 1.0, %v496
    %v498 = vrcp.pop %v464
    %v499 = vmul.f32 %v464, %v498
    %v500 = vsub.f32 1.0, %v499
    %v501 = vmul.f32 %v498, %v500
    %v502 = vadd.f32 %v498, %v501
    %vm503 = vweird.f32 %v464
    %vm504 = vweird.f32 %v498
    %vm505 = vmor %vm503, %vm504
    %v506 = vsel %vm505, %v498, %v502
    %v507 = vand.u32 2147483647, %v464
    %vm508 = vcmp.eq.f32.partialorder %v507, 8.507059e+37
    %v509 = vand.u32 %v464, 2147483648
    %v510 = vor.u32 1.1754944e-38, %v509
    %v511 = vsel %vm508, %v510, %v506
    %v512 = vmul.f32 1.0, %v511
    %v513 = vrcp.pop %v467
    %v514 = vmul.f32 %v467, %v513
    %v515 = vsub.f32 1.0, %v514
    %v516 = vmul.f32 %v513, %v515
    %v517 = vadd.f32 %v513, %v516
    %vm518 = vweird.f32 %v467
    %vm519 = vweird.f32 %v513
    %vm520 = vmor %vm518, %vm519
    %v521 = vsel %vm520, %v513, %v517
    %v522 = vand.u32 2147483647, %v467
    %vm523 = vcmp.eq.f32.partialorder %v522, 8.507059e+37
    %v524 = vand.u32 %v467, 2147483648
    %v525 = vor.u32 1.1754944e-38, %v524
    %v526 = vsel %vm523, %v525, %v521
    %v527 = vmul.f32 1.0, %v526
    %v528 = vrcp.pop %v470
    %v529 = vmul.f32 %v470, %v528
    %v530 = vsub.f32 1.0, %v529
    %v531 = vmul.f32 %v528, %v530
    %v532 = vadd.f32 %v528, %v531
    %vm533 = vweird.f32 %v470
    %vm534 = vweird.f32 %v528
    %vm535 = vmor %vm533, %vm534
    %v536 = vsel %vm535, %v528, %v532
    %v537 = vand.u32 2147483647, %v470
    %vm538 = vcmp.eq.f32.partialorder %v537, 8.507059e+37
    %v539 = vand.u32 %v470, 2147483648
    %v540 = vor.u32 1.1754944e-38, %v539
    %v541 = vsel %vm538, %v540, %v536
    %v542 = vmul.f32 1.0, %v541
    %v543 = vrcp.pop %v473
    %v544 = vmul.f32 %v473, %v543
    %v545 = vsub.f32 1.0, %v544
    %v546 = vmul.f32 %v543, %v545
    %v547 = vadd.f32 %v543, %v546
    %vm548 = vweird.f32 %v473
    %vm549 = vweird.f32 %v543
    %vm550 = vmor %vm548, %vm549
    %v551 = vsel %vm550, %v543, %v547
    %v552 = vand.u32 2147483647, %v473
    %vm553 = vcmp.eq.f32.partialorder %v552, 8.507059e+37
    %v554 = vand.u32 %v473, 2147483648
    %v555 = vor.u32 1.1754944e-38, %v554
    %v556 = vsel %vm553, %v555, %v551
    %v557 = vmul.f32 1.0, %v556
    %v558 = vrcp.pop %v476
    %v559 = vmul.f32 %v476, %v558
    %v560 = vsub.f32 1.0, %v559
    %v561 = vmul.f32 %v558, %v560
    %v562 = vadd.f32 %v558, %v561
    %vm563 = vweird.f32 %v476
    %vm564 = vweird.f32 %v558
    %vm565 = vmor %vm563, %vm564
    %v566 = vsel %vm565, %v558, %v562
    %v567 = vand.u32 2147483647, %v476
    %vm568 = vcmp.eq.f32.partialorder %v567, 8.507059e+37
    %v569 = vand.u32 %v476, 2147483648
    %v570 = vor.u32 1.1754944e-38, %v569
    %v571 = vsel %vm568, %v570, %v566
    %v572 = vmul.f32 1.0, %v571
    %v573 = vrcp.pop %v479
    %v574 = vmul.f32 %v479, %v573
    %v575 = vsub.f32 1.0, %v574
    %v576 = vmul.f32 %v573, %v575
    %v577 = vadd.f32 %v573, %v576
    %vm578 = vweird.f32 %v479
    %vm579 = vweird.f32 %v573
    %vm580 = vmor %vm578, %vm579
    %v581 = vsel %vm580, %v573, %v577
    %v582 = vand.u32 2147483647, %v479
    %vm583 = vcmp.eq.f32.partialorder %v582, 8.507059e+37
    %v584 = vand.u32 %v479, 2147483648
    %v585 = vor.u32 1.1754944e-38, %v584
    %v586 = vsel %vm583, %v585, %v581
    %v587 = vmul.f32 1.0, %v586
    %v588 = vrcp.pop %v482
    %v589 = vmul.f32 %v482, %v588
    %v590 = vsub.f32 1.0, %v589
    %v591 = vmul.f32 %v588, %v590
    %v592 = vadd.f32 %v588, %v591
    %vm593 = vweird.f32 %v482
    %vm594 = vweird.f32 %v588
    %vm595 = vmor %vm593, %vm594
    %v596 = vsel %vm595, %v588, %v592
    %v597 = vand.u32 2147483647, %v482
    %vm598 = vcmp.eq.f32.partialorder %v597, 8.507059e+37
    %v599 = vand.u32 %v482, 2147483648
    %v600 = vor.u32 1.1754944e-38, %v599
    %v601 = vsel %vm598, %v600, %v596
    %v602 = vmul.f32 1.0, %v601
    %v603 = vmul.f32 %v444, %v497
    %v604 = vmul.f32 %v446, %v512
    %v605 = vmul.f32 %v448, %v527
    %v606 = vmul.f32 %v450, %v542
    %v607 = vmul.f32 %v452, %v557
    %v608 = vmul.f32 %v454, %v572
    %v609 = vmul.f32 %v456, %v587
    %v610 = vmul.f32 %v458, %v602
    %v611 = vadd.f32 %v603, 0.0
    %v612 = vadd.f32 %v604, 0.0
    %v613 = vadd.f32 %v605, 0.0
    %v614 = vadd.f32 %v606, 0.0
    %v615 = vadd.f32 %v607, 0.0
    %v616 = vadd.f32 %v608, 0.0
    %v617 = vadd.f32 %v609, 0.0
    %v618 = vadd.f32 %v610, 0.0
    %619 = vrot.lane.b32.xlu0 %v95, 124
    %v620 = vpop.permute.xlu0 %619
    %621 = vrot.lane.b32.xlu0 %v98, 124
    %v622 = vpop.permute.xlu0 %621
    %623 = vrot.lane.b32.xlu0 %v101, 124
    %v624 = vpop.permute.xlu0 %623
    %625 = vrot.lane.b32.xlu0 %v104, 124
    %v626 = vpop.permute.xlu0 %625
    %627 = vrot.lane.b32.xlu0 %v107, 124
    %v628 = vpop.permute.xlu0 %627
    %629 = vrot.lane.b32.xlu0 %v110, 124
    %v630 = vpop.permute.xlu0 %629
    %631 = vrot.lane.b32.xlu0 %v113, 124
    %v632 = vpop.permute.xlu0 %631
    %633 = vrot.lane.b32.xlu0 %v116, 124
    %v634 = vpop.permute.xlu0 %633
    %635 = vrot.lane.b32.xlu0 %v170, 124
    %v636 = vpop.permute.xlu0 %635
    %637 = vrot.lane.b32.xlu0 %v173, 124
    %v638 = vpop.permute.xlu0 %637
    %639 = vrot.lane.b32.xlu0 %v176, 124
    %v640 = vpop.permute.xlu0 %639
    %641 = vrot.lane.b32.xlu0 %v179, 124
    %v642 = vpop.permute.xlu0 %641
    %643 = vrot.lane.b32.xlu0 %v182, 124
    %v644 = vpop.permute.xlu0 %643
    %645 = vrot.lane.b32.xlu0 %v185, 124
    %v646 = vpop.permute.xlu0 %645
    %647 = vrot.lane.b32.xlu0 %v188, 124
    %v648 = vpop.permute.xlu0 %647
    %649 = vrot.lane.b32.xlu0 %v191, 124
    %v650 = vpop.permute.xlu0 %649
    %v651 = vsel %vm304, %v620, 0
    %v653 = vsel %vm304, %v622, 0
    %v655 = vsel %vm304, %v624, 0
    %v657 = vsel %vm304, %v626, 0
    %v659 = vsel %vm304, %v628, 0
    %v661 = vsel %vm304, %v630, 0
    %v663 = vsel %vm304, %v632, 0
    %v665 = vsel %vm304, %v634, 0
    %v667 = vsel %vm304, %v636, 0
    %v669 = vsel %vm304, %v638, 0
    %v671 = vsel %vm304, %v640, 0
    %v673 = vsel %vm304, %v642, 0
    %v675 = vsel %vm304, %v644, 0
    %v677 = vsel %vm304, %v646, 0
    %v679 = vsel %vm304, %v648, 0
    %v681 = vsel %vm304, %v650, 0
    %683 = vmatpush.xpose.msra.mxu0 0.0
    %684 = vmatpush.xpose.msra.mxu0 0.0
    %685 = vmatpush.xpose.msra.mxu0 0.0
    %686 = vmatpush.xpose.msra.mxu0 0.0
    %687 = vmatpush.xpose.msra.mxu0 0.0
    %688 = vmatpush.xpose.msra.mxu0 0.0
    %689 = vmatpush.xpose.msra.mxu0 0.0
    %690 = vmatpush.xpose.msra.mxu0 0.0
    %691 = vmatpush.xpose.msra.mxu0 %v681
    %692 = vmatpush.xpose.msra.mxu0 %v679
    %693 = vmatpush.xpose.msra.mxu0 %v677
    %694 = vmatpush.xpose.msra.mxu0 %v675
    %695 = vmatpush.xpose.msra.mxu0 %v673
    %696 = vmatpush.xpose.msra.mxu0 %v671
    %697 = vmatpush.xpose.msra.mxu0 %v669
    %698 = vmatpush.xpose.msra.mxu0 %v667
    %699 = vmatmul.f32.gmra.mxu0 %v651
    %v700 = vpop.f32.mrf.mxu0
    %v701 = vadd.f32 0.0, %v700
    %702 = vmatmul.f32.gmra.mxu0 %v653
    %v703 = vpop.f32.mrf.mxu0
    %v704 = vadd.f32 0.0, %v703
    %705 = vmatmul.f32.gmra.mxu0 %v655
    %v706 = vpop.f32.mrf.mxu0
    %v707 = vadd.f32 0.0, %v706
    %708 = vmatmul.f32.gmra.mxu0 %v657
    %v709 = vpop.f32.mrf.mxu0
    %v710 = vadd.f32 0.0, %v709
    %711 = vmatmul.f32.gmra.mxu0 %v659
    %v712 = vpop.f32.mrf.mxu0
    %v713 = vadd.f32 0.0, %v712
    %714 = vmatmul.f32.gmra.mxu0 %v661
    %v715 = vpop.f32.mrf.mxu0
    %v716 = vadd.f32 0.0, %v715
    %717 = vmatmul.f32.gmra.mxu0 %v663
    %v718 = vpop.f32.mrf.mxu0
    %v719 = vadd.f32 0.0, %v718
    %720 = vmatmul.f32.gmra.mxu0 %v665
    %v721 = vpop.f32.mrf.mxu0
    %v722 = vadd.f32 0.0, %v721
    %723 = vdwg.mxu0
    %v724 = vand.u32 2147483647, %v701
    %v725 = vand.u32 2147483647, %v704
    %v726 = vand.u32 2147483647, %v707
    %v727 = vand.u32 2147483647, %v710
    %v728 = vand.u32 2147483647, %v713
    %v729 = vand.u32 2147483647, %v716
    %v730 = vand.u32 2147483647, %v719
    %v731 = vand.u32 2147483647, %v722
    %v732 = vadd.f32 %v724, %v296
    %v733 = vadd.f32 %v725, %v297
    %v734 = vadd.f32 %v726, %v298
    %v735 = vadd.f32 %v727, %v299
    %v736 = vadd.f32 %v728, %v300
    %v737 = vadd.f32 %v729, %v301
    %v738 = vadd.f32 %v730, %v302
    %v739 = vadd.f32 %v731, %v303
    %v740 = vsel %vm410, %v732, -inf
    %741 = vmax.xlane.f32.xlu0 %v740
    %v742 = vpop.xlane.xlu0 %741
    %v743 = vsel %vm410, %v733, -inf
    %744 = vmax.xlane.f32.xlu0 %v743
    %v745 = vpop.xlane.xlu0 %744
    %v746 = vsel %vm410, %v734, -inf
    %747 = vmax.xlane.f32.xlu0 %v746
    %v748 = vpop.xlane.xlu0 %747
    %v749 = vsel %vm410, %v735, -inf
    %750 = vmax.xlane.f32.xlu0 %v749
    %v751 = vpop.xlane.xlu0 %750
    %v752 = vsel %vm410, %v736, -inf
    %753 = vmax.xlane.f32.xlu0 %v752
    %v754 = vpop.xlane.xlu0 %753
    %v755 = vsel %vm410, %v737, -inf
    %756 = vmax.xlane.f32.xlu0 %v755
    %v757 = vpop.xlane.xlu0 %756
    %v758 = vsel %vm410, %v738, -inf
    %759 = vmax.xlane.f32.xlu0 %v758
    %v760 = vpop.xlane.xlu0 %759
    %v761 = vsel %vm410, %v739, -inf
    %762 = vmax.xlane.f32.xlu0 %v761
    %v763 = vpop.xlane.xlu0 %762
    %v764 = vsub.f32 %v732, %v742
    %v765 = vsub.f32 %v733, %v745
    %v766 = vsub.f32 %v734, %v748
    %v767 = vsub.f32 %v735, %v751
    %v768 = vsub.f32 %v736, %v754
    %v769 = vsub.f32 %v737, %v757
    %v770 = vsub.f32 %v738, %v760
    %v771 = vsub.f32 %v739, %v763
    %v772 = vmul.f32 %v764, 1.442695
    %v773 = vpow.pop %v772
    %v774 = vmul.f32 %v765, 1.442695
    %v775 = vpow.pop %v774
    %v776 = vmul.f32 %v766, 1.442695
    %v777 = vpow.pop %v776
    %v778 = vmul.f32 %v767, 1.442695
    %v779 = vpow.pop %v778
    %v780 = vmul.f32 %v768, 1.442695
    %v781 = vpow.pop %v780
    %v782 = vmul.f32 %v769, 1.442695
    %v783 = vpow.pop %v782
    %v784 = vmul.f32 %v770, 1.442695
    %v785 = vpow.pop %v784
    %v786 = vmul.f32 %v771, 1.442695
    %v787 = vpow.pop %v786
    %v788 = vsel %vm410, %v773, 0.0
    %789 = vadd.xlane.f32.xlu0 %v788
    %v790 = vpop.xlane.xlu0 %789
    %v791 = vsel %vm410, %v775, 0.0
    %792 = vadd.xlane.f32.xlu0 %v791
    %v793 = vpop.xlane.xlu0 %792
    %v794 = vsel %vm410, %v777, 0.0
    %795 = vadd.xlane.f32.xlu0 %v794
    %v796 = vpop.xlane.xlu0 %795
    %v797 = vsel %vm410, %v779, 0.0
    %798 = vadd.xlane.f32.xlu0 %v797
    %v799 = vpop.xlane.xlu0 %798
    %v800 = vsel %vm410, %v781, 0.0
    %801 = vadd.xlane.f32.xlu0 %v800
    %v802 = vpop.xlane.xlu0 %801
    %v803 = vsel %vm410, %v783, 0.0
    %804 = vadd.xlane.f32.xlu0 %v803
    %v805 = vpop.xlane.xlu0 %804
    %v806 = vsel %vm410, %v785, 0.0
    %807 = vadd.xlane.f32.xlu0 %v806
    %v808 = vpop.xlane.xlu0 %807
    %v809 = vsel %vm410, %v787, 0.0
    %810 = vadd.xlane.f32.xlu0 %v809
    %v811 = vpop.xlane.xlu0 %810
    %v812 = vrcp.pop %v790
    %v813 = vmul.f32 %v790, %v812
    %v814 = vsub.f32 1.0, %v813
    %v815 = vmul.f32 %v812, %v814
    %v816 = vadd.f32 %v812, %v815
    %vm817 = vweird.f32 %v790
    %vm818 = vweird.f32 %v812
    %vm819 = vmor %vm817, %vm818
    %v820 = vsel %vm819, %v812, %v816
    %v821 = vand.u32 2147483647, %v790
    %vm822 = vcmp.eq.f32.partialorder %v821, 8.507059e+37
    %v823 = vand.u32 %v790, 2147483648
    %v824 = vor.u32 1.1754944e-38, %v823
    %v825 = vsel %vm822, %v824, %v820
    %v826 = vmul.f32 1.0, %v825
    %v827 = vrcp.pop %v793
    %v828 = vmul.f32 %v793, %v827
    %v829 = vsub.f32 1.0, %v828
    %v830 = vmul.f32 %v827, %v829
    %v831 = vadd.f32 %v827, %v830
    %vm832 = vweird.f32 %v793
    %vm833 = vweird.f32 %v827
    %vm834 = vmor %vm832, %vm833
    %v835 = vsel %vm834, %v827, %v831
    %v836 = vand.u32 2147483647, %v793
    %vm837 = vcmp.eq.f32.partialorder %v836, 8.507059e+37
    %v838 = vand.u32 %v793, 2147483648
    %v839 = vor.u32 1.1754944e-38, %v838
    %v840 = vsel %vm837, %v839, %v835
    %v841 = vmul.f32 1.0, %v840
    %v842 = vrcp.pop %v796
    %v843 = vmul.f32 %v796, %v842
    %v844 = vsub.f32 1.0, %v843
    %v845 = vmul.f32 %v842, %v844
    %v846 = vadd.f32 %v842, %v845
    %vm847 = vweird.f32 %v796
    %vm848 = vweird.f32 %v842
    %vm849 = vmor %vm847, %vm848
    %v850 = vsel %vm849, %v842, %v846
    %v851 = vand.u32 2147483647, %v796
    %vm852 = vcmp.eq.f32.partialorder %v851, 8.507059e+37
    %v853 = vand.u32 %v796, 2147483648
    %v854 = vor.u32 1.1754944e-38, %v853
    %v855 = vsel %vm852, %v854, %v850
    %v856 = vmul.f32 1.0, %v855
    %v857 = vrcp.pop %v799
    %v858 = vmul.f32 %v799, %v857
    %v859 = vsub.f32 1.0, %v858
    %v860 = vmul.f32 %v857, %v859
    %v861 = vadd.f32 %v857, %v860
    %vm862 = vweird.f32 %v799
    %vm863 = vweird.f32 %v857
    %vm864 = vmor %vm862, %vm863
    %v865 = vsel %vm864, %v857, %v861
    %v866 = vand.u32 2147483647, %v799
    %vm867 = vcmp.eq.f32.partialorder %v866, 8.507059e+37
    %v868 = vand.u32 %v799, 2147483648
    %v869 = vor.u32 1.1754944e-38, %v868
    %v870 = vsel %vm867, %v869, %v865
    %v871 = vmul.f32 1.0, %v870
    %v872 = vrcp.pop %v802
    %v873 = vmul.f32 %v802, %v872
    %v874 = vsub.f32 1.0, %v873
    %v875 = vmul.f32 %v872, %v874
    %v876 = vadd.f32 %v872, %v875
    %vm877 = vweird.f32 %v802
    %vm878 = vweird.f32 %v872
    %vm879 = vmor %vm877, %vm878
    %v880 = vsel %vm879, %v872, %v876
    %v881 = vand.u32 2147483647, %v802
    %vm882 = vcmp.eq.f32.partialorder %v881, 8.507059e+37
    %v883 = vand.u32 %v802, 2147483648
    %v884 = vor.u32 1.1754944e-38, %v883
    %v885 = vsel %vm882, %v884, %v880
    %v886 = vmul.f32 1.0, %v885
    %v887 = vrcp.pop %v805
    %v888 = vmul.f32 %v805, %v887
    %v889 = vsub.f32 1.0, %v888
    %v890 = vmul.f32 %v887, %v889
    %v891 = vadd.f32 %v887, %v890
    %vm892 = vweird.f32 %v805
    %vm893 = vweird.f32 %v887
    %vm894 = vmor %vm892, %vm893
    %v895 = vsel %vm894, %v887, %v891
    %v896 = vand.u32 2147483647, %v805
    %vm897 = vcmp.eq.f32.partialorder %v896, 8.507059e+37
    %v898 = vand.u32 %v805, 2147483648
    %v899 = vor.u32 1.1754944e-38, %v898
    %v900 = vsel %vm897, %v899, %v895
    %v901 = vmul.f32 1.0, %v900
    %v902 = vrcp.pop %v808
    %v903 = vmul.f32 %v808, %v902
    %v904 = vsub.f32 1.0, %v903
    %v905 = vmul.f32 %v902, %v904
    %v906 = vadd.f32 %v902, %v905
    %vm907 = vweird.f32 %v808
    %vm908 = vweird.f32 %v902
    %vm909 = vmor %vm907, %vm908
    %v910 = vsel %vm909, %v902, %v906
    %v911 = vand.u32 2147483647, %v808
    %vm912 = vcmp.eq.f32.partialorder %v911, 8.507059e+37
    %v913 = vand.u32 %v808, 2147483648
    %v914 = vor.u32 1.1754944e-38, %v913
    %v915 = vsel %vm912, %v914, %v910
    %v916 = vmul.f32 1.0, %v915
    %v917 = vrcp.pop %v811
    %v918 = vmul.f32 %v811, %v917
    %v919 = vsub.f32 1.0, %v918
    %v920 = vmul.f32 %v917, %v919
    %v921 = vadd.f32 %v917, %v920
    %vm922 = vweird.f32 %v811
    %vm923 = vweird.f32 %v917
    %vm924 = vmor %vm922, %vm923
    %v925 = vsel %vm924, %v917, %v921
    %v926 = vand.u32 2147483647, %v811
    %vm927 = vcmp.eq.f32.partialorder %v926, 8.507059e+37
    %v928 = vand.u32 %v811, 2147483648
    %v929 = vor.u32 1.1754944e-38, %v928
    %v930 = vsel %vm927, %v929, %v925
    %v931 = vmul.f32 1.0, %v930
    %v932 = vmul.f32 %v773, %v826
    %v933 = vmul.f32 %v775, %v841
    %v934 = vmul.f32 %v777, %v856
    %v935 = vmul.f32 %v779, %v871
    %v936 = vmul.f32 %v781, %v886
    %v937 = vmul.f32 %v783, %v901
    %v938 = vmul.f32 %v785, %v916
    %v939 = vmul.f32 %v787, %v931
    %v940 = vadd.f32 %v611, %v932
    %v941 = vadd.f32 %v612, %v933
    %v942 = vadd.f32 %v613, %v934
    %v943 = vadd.f32 %v614, %v935
    %v944 = vadd.f32 %v615, %v936
    %v945 = vadd.f32 %v616, %v937
    %v946 = vadd.f32 %v617, %v938
    %v947 = vadd.f32 %v618, %v939
    %948 = vrot.lane.b32.xlu0 %v95, 120
    %v949 = vpop.permute.xlu0 %948
    %950 = vrot.lane.b32.xlu0 %v98, 120
    %v951 = vpop.permute.xlu0 %950
    %952 = vrot.lane.b32.xlu0 %v101, 120
    %v953 = vpop.permute.xlu0 %952
    %954 = vrot.lane.b32.xlu0 %v104, 120
    %v955 = vpop.permute.xlu0 %954
    %956 = vrot.lane.b32.xlu0 %v107, 120
    %v957 = vpop.permute.xlu0 %956
    %958 = vrot.lane.b32.xlu0 %v110, 120
    %v959 = vpop.permute.xlu0 %958
    %960 = vrot.lane.b32.xlu0 %v113, 120
    %v961 = vpop.permute.xlu0 %960
    %962 = vrot.lane.b32.xlu0 %v116, 120
    %v963 = vpop.permute.xlu0 %962
    %964 = vrot.lane.b32.xlu0 %v170, 120
    %v965 = vpop.permute.xlu0 %964
    %966 = vrot.lane.b32.xlu0 %v173, 120
    %v967 = vpop.permute.xlu0 %966
    %968 = vrot.lane.b32.xlu0 %v176, 120
    %v969 = vpop.permute.xlu0 %968
    %970 = vrot.lane.b32.xlu0 %v179, 120
    %v971 = vpop.permute.xlu0 %970
    %972 = vrot.lane.b32.xlu0 %v182, 120
    %v973 = vpop.permute.xlu0 %972
    %974 = vrot.lane.b32.xlu0 %v185, 120
    %v975 = vpop.permute.xlu0 %974
    %976 = vrot.lane.b32.xlu0 %v188, 120
    %v977 = vpop.permute.xlu0 %976
    %978 = vrot.lane.b32.xlu0 %v191, 120
    %v979 = vpop.permute.xlu0 %978
    %v980 = vsel %vm304, %v949, 0
    %v982 = vsel %vm304, %v951, 0
    %v984 = vsel %vm304, %v953, 0
    %v986 = vsel %vm304, %v955, 0
    %v988 = vsel %vm304, %v957, 0
    %v990 = vsel %vm304, %v959, 0
    %v992 = vsel %vm304, %v961, 0
    %v994 = vsel %vm304, %v963, 0
    %v996 = vsel %vm304, %v965, 0
    %v998 = vsel %vm304, %v967, 0
    %v1000 = vsel %vm304, %v969, 0
    %v1002 = vsel %vm304, %v971, 0
    %v1004 = vsel %vm304, %v973, 0
    %v1006 = vsel %vm304, %v975, 0
    %v1008 = vsel %vm304, %v977, 0
    %v1010 = vsel %vm304, %v979, 0
    %1012 = vmatpush.xpose.msra.mxu0 0.0
    %1013 = vmatpush.xpose.msra.mxu0 0.0
    %1014 = vmatpush.xpose.msra.mxu0 0.0
    %1015 = vmatpush.xpose.msra.mxu0 0.0
    %1016 = vmatpush.xpose.msra.mxu0 0.0
    %1017 = vmatpush.xpose.msra.mxu0 0.0
    %1018 = vmatpush.xpose.msra.mxu0 0.0
    %1019 = vmatpush.xpose.msra.mxu0 0.0
    %1020 = vmatpush.xpose.msra.mxu0 %v1010
    %1021 = vmatpush.xpose.msra.mxu0 %v1008
    %1022 = vmatpush.xpose.msra.mxu0 %v1006
    %1023 = vmatpush.xpose.msra.mxu0 %v1004
    %1024 = vmatpush.xpose.msra.mxu0 %v1002
    %1025 = vmatpush.xpose.msra.mxu0 %v1000
    %1026 = vmatpush.xpose.msra.mxu0 %v998
    %1027 = vmatpush.xpose.msra.mxu0 %v996
    %1028 = vmatmul.f32.gmra.mxu0 %v980
    %v1029 = vpop.f32.mrf.mxu0
    %v1030 = vadd.f32 0.0, %v1029
    %1031 = vmatmul.f32.gmra.mxu0 %v982
    %v1032 = vpop.f32.mrf.mxu0
    %v1033 = vadd.f32 0.0, %v1032
    %1034 = vmatmul.f32.gmra.mxu0 %v984
    %v1035 = vpop.f32.mrf.mxu0
    %v1036 = vadd.f32 0.0, %v1035
    %1037 = vmatmul.f32.gmra.mxu0 %v986
    %v1038 = vpop.f32.mrf.mxu0
    %v1039 = vadd.f32 0.0, %v1038
    %1040 = vmatmul.f32.gmra.mxu0 %v988
    %v1041 = vpop.f32.mrf.mxu0
    %v1042 = vadd.f32 0.0, %v1041
    %1043 = vmatmul.f32.gmra.mxu0 %v990
    %v1044 = vpop.f32.mrf.mxu0
    %v1045 = vadd.f32 0.0, %v1044
    %1046 = vmatmul.f32.gmra.mxu0 %v992
    %v1047 = vpop.f32.mrf.mxu0
    %v1048 = vadd.f32 0.0, %v1047
    %1049 = vmatmul.f32.gmra.mxu0 %v994
    %v1050 = vpop.f32.mrf.mxu0
    %v1051 = vadd.f32 0.0, %v1050
    %1052 = vdwg.mxu0
    %v1053 = vand.u32 2147483647, %v1030
    %v1054 = vand.u32 2147483647, %v1033
    %v1055 = vand.u32 2147483647, %v1036
    %v1056 = vand.u32 2147483647, %v1039
    %v1057 = vand.u32 2147483647, %v1042
    %v1058 = vand.u32 2147483647, %v1045
    %v1059 = vand.u32 2147483647, %v1048
    %v1060 = vand.u32 2147483647, %v1051
    %v1061 = vadd.f32 %v1053, %v296
    %v1062 = vadd.f32 %v1054, %v297
    %v1063 = vadd.f32 %v1055, %v298
    %v1064 = vadd.f32 %v1056, %v299
    %v1065 = vadd.f32 %v1057, %v300
    %v1066 = vadd.f32 %v1058, %v301
    %v1067 = vadd.f32 %v1059, %v302
    %v1068 = vadd.f32 %v1060, %v303
    %v1069 = vsel %vm410, %v1061, -inf
    %1070 = vmax.xlane.f32.xlu0 %v1069
    %v1071 = vpop.xlane.xlu0 %1070
    %v1072 = vsel %vm410, %v1062, -inf
    %1073 = vmax.xlane.f32.xlu0 %v1072
    %v1074 = vpop.xlane.xlu0 %1073
    %v1075 = vsel %vm410, %v1063, -inf
    %1076 = vmax.xlane.f32.xlu0 %v1075
    %v1077 = vpop.xlane.xlu0 %1076
    %v1078 = vsel %vm410, %v1064, -inf
    %1079 = vmax.xlane.f32.xlu0 %v1078
    %v1080 = vpop.xlane.xlu0 %1079
    %v1081 = vsel %vm410, %v1065, -inf
    %1082 = vmax.xlane.f32.xlu0 %v1081
    %v1083 = vpop.xlane.xlu0 %1082
    %v1084 = vsel %vm410, %v1066, -inf
    %1085 = vmax.xlane.f32.xlu0 %v1084
    %v1086 = vpop.xlane.xlu0 %1085
    %v1087 = vsel %vm410, %v1067, -inf
    %1088 = vmax.xlane.f32.xlu0 %v1087
    %v1089 = vpop.xlane.xlu0 %1088
    %v1090 = vsel %vm410, %v1068, -inf
    %1091 = vmax.xlane.f32.xlu0 %v1090
    %v1092 = vpop.xlane.xlu0 %1091
    %v1093 = vsub.f32 %v1061, %v1071
    %v1094 = vsub.f32 %v1062, %v1074
    %v1095 = vsub.f32 %v1063, %v1077
    %v1096 = vsub.f32 %v1064, %v1080
    %v1097 = vsub.f32 %v1065, %v1083
    %v1098 = vsub.f32 %v1066, %v1086
    %v1099 = vsub.f32 %v1067, %v1089
    %v1100 = vsub.f32 %v1068, %v1092
    %v1101 = vmul.f32 %v1093, 1.442695
    %v1102 = vpow.pop %v1101
    %v1103 = vmul.f32 %v1094, 1.442695
    %v1104 = vpow.pop %v1103
    %v1105 = vmul.f32 %v1095, 1.442695
    %v1106 = vpow.pop %v1105
    %v1107 = vmul.f32 %v1096, 1.442695
    %v1108 = vpow.pop %v1107
    %v1109 = vmul.f32 %v1097, 1.442695
    %v1110 = vpow.pop %v1109
    %v1111 = vmul.f32 %v1098, 1.442695
    %v1112 = vpow.pop %v1111
    %v1113 = vmul.f32 %v1099, 1.442695
    %v1114 = vpow.pop %v1113
    %v1115 = vmul.f32 %v1100, 1.442695
    %v1116 = vpow.pop %v1115
    %v1117 = vsel %vm410, %v1102, 0.0
    %1118 = vadd.xlane.f32.xlu0 %v1117
    %v1119 = vpop.xlane.xlu0 %1118
    %v1120 = vsel %vm410, %v1104, 0.0
    %1121 = vadd.xlane.f32.xlu0 %v1120
    %v1122 = vpop.xlane.xlu0 %1121
    %v1123 = vsel %vm410, %v1106, 0.0
    %1124 = vadd.xlane.f32.xlu0 %v1123
    %v1125 = vpop.xlane.xlu0 %1124
    %v1126 = vsel %vm410, %v1108, 0.0
    %1127 = vadd.xlane.f32.xlu0 %v1126
    %v1128 = vpop.xlane.xlu0 %1127
    %v1129 = vsel %vm410, %v1110, 0.0
    %1130 = vadd.xlane.f32.xlu0 %v1129
    %v1131 = vpop.xlane.xlu0 %1130
    %v1132 = vsel %vm410, %v1112, 0.0
    %1133 = vadd.xlane.f32.xlu0 %v1132
    %v1134 = vpop.xlane.xlu0 %1133
    %v1135 = vsel %vm410, %v1114, 0.0
    %1136 = vadd.xlane.f32.xlu0 %v1135
    %v1137 = vpop.xlane.xlu0 %1136
    %v1138 = vsel %vm410, %v1116, 0.0
    %1139 = vadd.xlane.f32.xlu0 %v1138
    %v1140 = vpop.xlane.xlu0 %1139
    %v1141 = vrcp.pop %v1119
    %v1142 = vmul.f32 %v1119, %v1141
    %v1143 = vsub.f32 1.0, %v1142
    %v1144 = vmul.f32 %v1141, %v1143
    %v1145 = vadd.f32 %v1141, %v1144
    %vm1146 = vweird.f32 %v1119
    %vm1147 = vweird.f32 %v1141
    %vm1148 = vmor %vm1146, %vm1147
    %v1149 = vsel %vm1148, %v1141, %v1145
    %v1150 = vand.u32 2147483647, %v1119
    %vm1151 = vcmp.eq.f32.partialorder %v1150, 8.507059e+37
    %v1152 = vand.u32 %v1119, 2147483648
    %v1153 = vor.u32 1.1754944e-38, %v1152
    %v1154 = vsel %vm1151, %v1153, %v1149
    %v1155 = vmul.f32 1.0, %v1154
    %v1156 = vrcp.pop %v1122
    %v1157 = vmul.f32 %v1122, %v1156
    %v1158 = vsub.f32 1.0, %v1157
    %v1159 = vmul.f32 %v1156, %v1158
    %v1160 = vadd.f32 %v1156, %v1159
    %vm1161 = vweird.f32 %v1122
    %vm1162 = vweird.f32 %v1156
    %vm1163 = vmor %vm1161, %vm1162
    %v1164 = vsel %vm1163, %v1156, %v1160
    %v1165 = vand.u32 2147483647, %v1122
    %vm1166 = vcmp.eq.f32.partialorder %v1165, 8.507059e+37
    %v1167 = vand.u32 %v1122, 2147483648
    %v1168 = vor.u32 1.1754944e-38, %v1167
    %v1169 = vsel %vm1166, %v1168, %v1164
    %v1170 = vmul.f32 1.0, %v1169
    %v1171 = vrcp.pop %v1125
    %v1172 = vmul.f32 %v1125, %v1171
    %v1173 = vsub.f32 1.0, %v1172
    %v1174 = vmul.f32 %v1171, %v1173
    %v1175 = vadd.f32 %v1171, %v1174
    %vm1176 = vweird.f32 %v1125
    %vm1177 = vweird.f32 %v1171
    %vm1178 = vmor %vm1176, %vm1177
    %v1179 = vsel %vm1178, %v1171, %v1175
    %v1180 = vand.u32 2147483647, %v1125
    %vm1181 = vcmp.eq.f32.partialorder %v1180, 8.507059e+37
    %v1182 = vand.u32 %v1125, 2147483648
    %v1183 = vor.u32 1.1754944e-38, %v1182
    %v1184 = vsel %vm1181, %v1183, %v1179
    %v1185 = vmul.f32 1.0, %v1184
    %v1186 = vrcp.pop %v1128
    %v1187 = vmul.f32 %v1128, %v1186
    %v1188 = vsub.f32 1.0, %v1187
    %v1189 = vmul.f32 %v1186, %v1188
    %v1190 = vadd.f32 %v1186, %v1189
    %vm1191 = vweird.f32 %v1128
    %vm1192 = vweird.f32 %v1186
    %vm1193 = vmor %vm1191, %vm1192
    %v1194 = vsel %vm1193, %v1186, %v1190
    %v1195 = vand.u32 2147483647, %v1128
    %vm1196 = vcmp.eq.f32.partialorder %v1195, 8.507059e+37
    %v1197 = vand.u32 %v1128, 2147483648
    %v1198 = vor.u32 1.1754944e-38, %v1197
    %v1199 = vsel %vm1196, %v1198, %v1194
    %v1200 = vmul.f32 1.0, %v1199
    %v1201 = vrcp.pop %v1131
    %v1202 = vmul.f32 %v1131, %v1201
    %v1203 = vsub.f32 1.0, %v1202
    %v1204 = vmul.f32 %v1201, %v1203
    %v1205 = vadd.f32 %v1201, %v1204
    %vm1206 = vweird.f32 %v1131
    %vm1207 = vweird.f32 %v1201
    %vm1208 = vmor %vm1206, %vm1207
    %v1209 = vsel %vm1208, %v1201, %v1205
    %v1210 = vand.u32 2147483647, %v1131
    %vm1211 = vcmp.eq.f32.partialorder %v1210, 8.507059e+37
    %v1212 = vand.u32 %v1131, 2147483648
    %v1213 = vor.u32 1.1754944e-38, %v1212
    %v1214 = vsel %vm1211, %v1213, %v1209
    %v1215 = vmul.f32 1.0, %v1214
    %v1216 = vrcp.pop %v1134
    %v1217 = vmul.f32 %v1134, %v1216
    %v1218 = vsub.f32 1.0, %v1217
    %v1219 = vmul.f32 %v1216, %v1218
    %v1220 = vadd.f32 %v1216, %v1219
    %vm1221 = vweird.f32 %v1134
    %vm1222 = vweird.f32 %v1216
    %vm1223 = vmor %vm1221, %vm1222
    %v1224 = vsel %vm1223, %v1216, %v1220
    %v1225 = vand.u32 2147483647, %v1134
    %vm1226 = vcmp.eq.f32.partialorder %v1225, 8.507059e+37
    %v1227 = vand.u32 %v1134, 2147483648
    %v1228 = vor.u32 1.1754944e-38, %v1227
    %v1229 = vsel %vm1226, %v1228, %v1224
    %v1230 = vmul.f32 1.0, %v1229
    %v1231 = vrcp.pop %v1137
    %v1232 = vmul.f32 %v1137, %v1231
    %v1233 = vsub.f32 1.0, %v1232
    %v1234 = vmul.f32 %v1231, %v1233
    %v1235 = vadd.f32 %v1231, %v1234
    %vm1236 = vweird.f32 %v1137
    %vm1237 = vweird.f32 %v1231
    %vm1238 = vmor %vm1236, %vm1237
    %v1239 = vsel %vm1238, %v1231, %v1235
    %v1240 = vand.u32 2147483647, %v1137
    %vm1241 = vcmp.eq.f32.partialorder %v1240, 8.507059e+37
    %v1242 = vand.u32 %v1137, 2147483648
    %v1243 = vor.u32 1.1754944e-38, %v1242
    %v1244 = vsel %vm1241, %v1243, %v1239
    %v1245 = vmul.f32 1.0, %v1244
    %v1246 = vrcp.pop %v1140
    %v1247 = vmul.f32 %v1140, %v1246
    %v1248 = vsub.f32 1.0, %v1247
    %v1249 = vmul.f32 %v1246, %v1248
    %v1250 = vadd.f32 %v1246, %v1249
    %vm1251 = vweird.f32 %v1140
    %vm1252 = vweird.f32 %v1246
    %vm1253 = vmor %vm1251, %vm1252
    %v1254 = vsel %vm1253, %v1246, %v1250
    %v1255 = vand.u32 2147483647, %v1140
    %vm1256 = vcmp.eq.f32.partialorder %v1255, 8.507059e+37
    %v1257 = vand.u32 %v1140, 2147483648
    %v1258 = vor.u32 1.1754944e-38, %v1257
    %v1259 = vsel %vm1256, %v1258, %v1254
    %v1260 = vmul.f32 1.0, %v1259
    %v1261 = vmul.f32 %v1102, %v1155
    %v1262 = vmul.f32 %v1104, %v1170
    %v1263 = vmul.f32 %v1106, %v1185
    %v1264 = vmul.f32 %v1108, %v1200
    %v1265 = vmul.f32 %v1110, %v1215
    %v1266 = vmul.f32 %v1112, %v1230
    %v1267 = vmul.f32 %v1114, %v1245
    %v1268 = vmul.f32 %v1116, %v1260
    %v1269 = vadd.f32 %v940, %v1261
    %v1270 = vadd.f32 %v941, %v1262
    %v1271 = vadd.f32 %v942, %v1263
    %v1272 = vadd.f32 %v943, %v1264
    %v1273 = vadd.f32 %v944, %v1265
    %v1274 = vadd.f32 %v945, %v1266
    %v1275 = vadd.f32 %v946, %v1267
    %v1276 = vadd.f32 %v947, %v1268
    %1277 = vrot.lane.b32.xlu0 %v95, 116
    %v1278 = vpop.permute.xlu0 %1277
    %1279 = vrot.lane.b32.xlu0 %v98, 116
    %v1280 = vpop.permute.xlu0 %1279
    %1281 = vrot.lane.b32.xlu0 %v101, 116
    %v1282 = vpop.permute.xlu0 %1281
    %1283 = vrot.lane.b32.xlu0 %v104, 116
    %v1284 = vpop.permute.xlu0 %1283
    %1285 = vrot.lane.b32.xlu0 %v107, 116
    %v1286 = vpop.permute.xlu0 %1285
    %1287 = vrot.lane.b32.xlu0 %v110, 116
    %v1288 = vpop.permute.xlu0 %1287
    %1289 = vrot.lane.b32.xlu0 %v113, 116
    %v1290 = vpop.permute.xlu0 %1289
    %1291 = vrot.lane.b32.xlu0 %v116, 116
    %v1292 = vpop.permute.xlu0 %1291
    %1293 = vrot.lane.b32.xlu0 %v170, 116
    %v1294 = vpop.permute.xlu0 %1293
    %1295 = vrot.lane.b32.xlu0 %v173, 116
    %v1296 = vpop.permute.xlu0 %1295
    %1297 = vrot.lane.b32.xlu0 %v176, 116
    %v1298 = vpop.permute.xlu0 %1297
    %1299 = vrot.lane.b32.xlu0 %v179, 116
    %v1300 = vpop.permute.xlu0 %1299
    %1301 = vrot.lane.b32.xlu0 %v182, 116
    %v1302 = vpop.permute.xlu0 %1301
    %1303 = vrot.lane.b32.xlu0 %v185, 116
    %v1304 = vpop.permute.xlu0 %1303
    %1305 = vrot.lane.b32.xlu0 %v188, 116
    %v1306 = vpop.permute.xlu0 %1305
    %1307 = vrot.lane.b32.xlu0 %v191, 116
    %v1308 = vpop.permute.xlu0 %1307
    %v1309 = vsel %vm304, %v1278, 0
    %v1311 = vsel %vm304, %v1280, 0
    %v1313 = vsel %vm304, %v1282, 0
    %v1315 = vsel %vm304, %v1284, 0
    %v1317 = vsel %vm304, %v1286, 0
    %v1319 = vsel %vm304, %v1288, 0
    %v1321 = vsel %vm304, %v1290, 0
    %v1323 = vsel %vm304, %v1292, 0
    %v1325 = vsel %vm304, %v1294, 0
    %v1327 = vsel %vm304, %v1296, 0
    %v1329 = vsel %vm304, %v1298, 0
    %v1331 = vsel %vm304, %v1300, 0
    %v1333 = vsel %vm304, %v1302, 0
    %v1335 = vsel %vm304, %v1304, 0
    %v1337 = vsel %vm304, %v1306, 0
    %v1339 = vsel %vm304, %v1308, 0
    %1341 = vmatpush.xpose.msra.mxu0 0.0
    %1342 = vmatpush.xpose.msra.mxu0 0.0
    %1343 = vmatpush.xpose.msra.mxu0 0.0
    %1344 = vmatpush.xpose.msra.mxu0 0.0
    %1345 = vmatpush.xpose.msra.mxu0 0.0
    %1346 = vmatpush.xpose.msra.mxu0 0.0
    %1347 = vmatpush.xpose.msra.mxu0 0.0
    %1348 = vmatpush.xpose.msra.mxu0 0.0
    %1349 = vmatpush.xpose.msra.mxu0 %v1339
    %1350 = vmatpush.xpose.msra.mxu0 %v1337
    %1351 = vmatpush.xpose.msra.mxu0 %v1335
    %1352 = vmatpush.xpose.msra.mxu0 %v1333
    %1353 = vmatpush.xpose.msra.mxu0 %v1331
    %1354 = vmatpush.xpose.msra.mxu0 %v1329
    %1355 = vmatpush.xpose.msra.mxu0 %v1327
    %1356 = vmatpush.xpose.msra.mxu0 %v1325
    %1357 = vmatmul.f32.gmra.mxu0 %v1309
    %v1358 = vpop.f32.mrf.mxu0
    %v1359 = vadd.f32 0.0, %v1358
    %1360 = vmatmul.f32.gmra.mxu0 %v1311
    %v1361 = vpop.f32.mrf.mxu0
    %v1362 = vadd.f32 0.0, %v1361
    %1363 = vmatmul.f32.gmra.mxu0 %v1313
    %v1364 = vpop.f32.mrf.mxu0
    %v1365 = vadd.f32 0.0, %v1364
    %1366 = vmatmul.f32.gmra.mxu0 %v1315
    %v1367 = vpop.f32.mrf.mxu0
    %v1368 = vadd.f32 0.0, %v1367
    %1369 = vmatmul.f32.gmra.mxu0 %v1317
    %v1370 = vpop.f32.mrf.mxu0
    %v1371 = vadd.f32 0.0, %v1370
    %1372 = vmatmul.f32.gmra.mxu0 %v1319
    %v1373 = vpop.f32.mrf.mxu0
    %v1374 = vadd.f32 0.0, %v1373
    %1375 = vmatmul.f32.gmra.mxu0 %v1321
    %v1376 = vpop.f32.mrf.mxu0
    %v1377 = vadd.f32 0.0, %v1376
    %1378 = vmatmul.f32.gmra.mxu0 %v1323
    %v1379 = vpop.f32.mrf.mxu0
    %v1380 = vadd.f32 0.0, %v1379
    %1381 = vdwg.mxu0
    %v1382 = vand.u32 2147483647, %v1359
    %v1383 = vand.u32 2147483647, %v1362
    %v1384 = vand.u32 2147483647, %v1365
    %v1385 = vand.u32 2147483647, %v1368
    %v1386 = vand.u32 2147483647, %v1371
    %v1387 = vand.u32 2147483647, %v1374
    %v1388 = vand.u32 2147483647, %v1377
    %v1389 = vand.u32 2147483647, %v1380
    %v1390 = vadd.f32 %v1382, %v296
    %v1391 = vadd.f32 %v1383, %v297
    %v1392 = vadd.f32 %v1384, %v298
    %v1393 = vadd.f32 %v1385, %v299
    %v1394 = vadd.f32 %v1386, %v300
    %v1395 = vadd.f32 %v1387, %v301
    %v1396 = vadd.f32 %v1388, %v302
    %v1397 = vadd.f32 %v1389, %v303
    %v1398 = vsel %vm410, %v1390, -inf
    %1399 = vmax.xlane.f32.xlu0 %v1398
    %v1400 = vpop.xlane.xlu0 %1399
    %v1401 = vsel %vm410, %v1391, -inf
    %1402 = vmax.xlane.f32.xlu0 %v1401
    %v1403 = vpop.xlane.xlu0 %1402
    %v1404 = vsel %vm410, %v1392, -inf
    %1405 = vmax.xlane.f32.xlu0 %v1404
    %v1406 = vpop.xlane.xlu0 %1405
    %v1407 = vsel %vm410, %v1393, -inf
    %1408 = vmax.xlane.f32.xlu0 %v1407
    %v1409 = vpop.xlane.xlu0 %1408
    %v1410 = vsel %vm410, %v1394, -inf
    %1411 = vmax.xlane.f32.xlu0 %v1410
    %v1412 = vpop.xlane.xlu0 %1411
    %v1413 = vsel %vm410, %v1395, -inf
    %1414 = vmax.xlane.f32.xlu0 %v1413
    %v1415 = vpop.xlane.xlu0 %1414
    %v1416 = vsel %vm410, %v1396, -inf
    %1417 = vmax.xlane.f32.xlu0 %v1416
    %v1418 = vpop.xlane.xlu0 %1417
    %v1419 = vsel %vm410, %v1397, -inf
    %1420 = vmax.xlane.f32.xlu0 %v1419
    %v1421 = vpop.xlane.xlu0 %1420
    %v1422 = vsub.f32 %v1390, %v1400
    %v1423 = vsub.f32 %v1391, %v1403
    %v1424 = vsub.f32 %v1392, %v1406
    %v1425 = vsub.f32 %v1393, %v1409
    %v1426 = vsub.f32 %v1394, %v1412
    %v1427 = vsub.f32 %v1395, %v1415
    %v1428 = vsub.f32 %v1396, %v1418
    %v1429 = vsub.f32 %v1397, %v1421
    %v1430 = vmul.f32 %v1422, 1.442695
    %v1431 = vpow.pop %v1430
    %v1432 = vmul.f32 %v1423, 1.442695
    %v1433 = vpow.pop %v1432
    %v1434 = vmul.f32 %v1424, 1.442695
    %v1435 = vpow.pop %v1434
    %v1436 = vmul.f32 %v1425, 1.442695
    %v1437 = vpow.pop %v1436
    %v1438 = vmul.f32 %v1426, 1.442695
    %v1439 = vpow.pop %v1438
    %v1440 = vmul.f32 %v1427, 1.442695
    %v1441 = vpow.pop %v1440
    %v1442 = vmul.f32 %v1428, 1.442695
    %v1443 = vpow.pop %v1442
    %v1444 = vmul.f32 %v1429, 1.442695
    %v1445 = vpow.pop %v1444
    %v1446 = vsel %vm410, %v1431, 0.0
    %1447 = vadd.xlane.f32.xlu0 %v1446
    %v1448 = vpop.xlane.xlu0 %1447
    %v1449 = vsel %vm410, %v1433, 0.0
    %1450 = vadd.xlane.f32.xlu0 %v1449
    %v1451 = vpop.xlane.xlu0 %1450
    %v1452 = vsel %vm410, %v1435, 0.0
    %1453 = vadd.xlane.f32.xlu0 %v1452
    %v1454 = vpop.xlane.xlu0 %1453
    %v1455 = vsel %vm410, %v1437, 0.0
    %1456 = vadd.xlane.f32.xlu0 %v1455
    %v1457 = vpop.xlane.xlu0 %1456
    %v1458 = vsel %vm410, %v1439, 0.0
    %1459 = vadd.xlane.f32.xlu0 %v1458
    %v1460 = vpop.xlane.xlu0 %1459
    %v1461 = vsel %vm410, %v1441, 0.0
    %1462 = vadd.xlane.f32.xlu0 %v1461
    %v1463 = vpop.xlane.xlu0 %1462
    %v1464 = vsel %vm410, %v1443, 0.0
    %1465 = vadd.xlane.f32.xlu0 %v1464
    %v1466 = vpop.xlane.xlu0 %1465
    %v1467 = vsel %vm410, %v1445, 0.0
    %1468 = vadd.xlane.f32.xlu0 %v1467
    %v1469 = vpop.xlane.xlu0 %1468
    %v1470 = vrcp.pop %v1448
    %v1471 = vmul.f32 %v1448, %v1470
    %v1472 = vsub.f32 1.0, %v1471
    %v1473 = vmul.f32 %v1470, %v1472
    %v1474 = vadd.f32 %v1470, %v1473
    %vm1475 = vweird.f32 %v1448
    %vm1476 = vweird.f32 %v1470
    %vm1477 = vmor %vm1475, %vm1476
    %v1478 = vsel %vm1477, %v1470, %v1474
    %v1479 = vand.u32 2147483647, %v1448
    %vm1480 = vcmp.eq.f32.partialorder %v1479, 8.507059e+37
    %v1481 = vand.u32 %v1448, 2147483648
    %v1482 = vor.u32 1.1754944e-38, %v1481
    %v1483 = vsel %vm1480, %v1482, %v1478
    %v1484 = vmul.f32 1.0, %v1483
    %v1485 = vrcp.pop %v1451
    %v1486 = vmul.f32 %v1451, %v1485
    %v1487 = vsub.f32 1.0, %v1486
    %v1488 = vmul.f32 %v1485, %v1487
    %v1489 = vadd.f32 %v1485, %v1488
    %vm1490 = vweird.f32 %v1451
    %vm1491 = vweird.f32 %v1485
    %vm1492 = vmor %vm1490, %vm1491
    %v1493 = vsel %vm1492, %v1485, %v1489
    %v1494 = vand.u32 2147483647, %v1451
    %vm1495 = vcmp.eq.f32.partialorder %v1494, 8.507059e+37
    %v1496 = vand.u32 %v1451, 2147483648
    %v1497 = vor.u32 1.1754944e-38, %v1496
    %v1498 = vsel %vm1495, %v1497, %v1493
    %v1499 = vmul.f32 1.0, %v1498
    %v1500 = vrcp.pop %v1454
    %v1501 = vmul.f32 %v1454, %v1500
    %v1502 = vsub.f32 1.0, %v1501
    %v1503 = vmul.f32 %v1500, %v1502
    %v1504 = vadd.f32 %v1500, %v1503
    %vm1505 = vweird.f32 %v1454
    %vm1506 = vweird.f32 %v1500
    %vm1507 = vmor %vm1505, %vm1506
    %v1508 = vsel %vm1507, %v1500, %v1504
    %v1509 = vand.u32 2147483647, %v1454
    %vm1510 = vcmp.eq.f32.partialorder %v1509, 8.507059e+37
    %v1511 = vand.u32 %v1454, 2147483648
    %v1512 = vor.u32 1.1754944e-38, %v1511
    %v1513 = vsel %vm1510, %v1512, %v1508
    %v1514 = vmul.f32 1.0, %v1513
    %v1515 = vrcp.pop %v1457
    %v1516 = vmul.f32 %v1457, %v1515
    %v1517 = vsub.f32 1.0, %v1516
    %v1518 = vmul.f32 %v1515, %v1517
    %v1519 = vadd.f32 %v1515, %v1518
    %vm1520 = vweird.f32 %v1457
    %vm1521 = vweird.f32 %v1515
    %vm1522 = vmor %vm1520, %vm1521
    %v1523 = vsel %vm1522, %v1515, %v1519
    %v1524 = vand.u32 2147483647, %v1457
    %vm1525 = vcmp.eq.f32.partialorder %v1524, 8.507059e+37
    %v1526 = vand.u32 %v1457, 2147483648
    %v1527 = vor.u32 1.1754944e-38, %v1526
    %v1528 = vsel %vm1525, %v1527, %v1523
    %v1529 = vmul.f32 1.0, %v1528
    %v1530 = vrcp.pop %v1460
    %v1531 = vmul.f32 %v1460, %v1530
    %v1532 = vsub.f32 1.0, %v1531
    %v1533 = vmul.f32 %v1530, %v1532
    %v1534 = vadd.f32 %v1530, %v1533
    %vm1535 = vweird.f32 %v1460
    %vm1536 = vweird.f32 %v1530
    %vm1537 = vmor %vm1535, %vm1536
    %v1538 = vsel %vm1537, %v1530, %v1534
    %v1539 = vand.u32 2147483647, %v1460
    %vm1540 = vcmp.eq.f32.partialorder %v1539, 8.507059e+37
    %v1541 = vand.u32 %v1460, 2147483648
    %v1542 = vor.u32 1.1754944e-38, %v1541
    %v1543 = vsel %vm1540, %v1542, %v1538
    %v1544 = vmul.f32 1.0, %v1543
    %v1545 = vrcp.pop %v1463
    %v1546 = vmul.f32 %v1463, %v1545
    %v1547 = vsub.f32 1.0, %v1546
    %v1548 = vmul.f32 %v1545, %v1547
    %v1549 = vadd.f32 %v1545, %v1548
    %vm1550 = vweird.f32 %v1463
    %vm1551 = vweird.f32 %v1545
    %vm1552 = vmor %vm1550, %vm1551
    %v1553 = vsel %vm1552, %v1545, %v1549
    %v1554 = vand.u32 2147483647, %v1463
    %vm1555 = vcmp.eq.f32.partialorder %v1554, 8.507059e+37
    %v1556 = vand.u32 %v1463, 2147483648
    %v1557 = vor.u32 1.1754944e-38, %v1556
    %v1558 = vsel %vm1555, %v1557, %v1553
    %v1559 = vmul.f32 1.0, %v1558
    %v1560 = vrcp.pop %v1466
    %v1561 = vmul.f32 %v1466, %v1560
    %v1562 = vsub.f32 1.0, %v1561
    %v1563 = vmul.f32 %v1560, %v1562
    %v1564 = vadd.f32 %v1560, %v1563
    %vm1565 = vweird.f32 %v1466
    %vm1566 = vweird.f32 %v1560
    %vm1567 = vmor %vm1565, %vm1566
    %v1568 = vsel %vm1567, %v1560, %v1564
    %v1569 = vand.u32 2147483647, %v1466
    %vm1570 = vcmp.eq.f32.partialorder %v1569, 8.507059e+37
    %v1571 = vand.u32 %v1466, 2147483648
    %v1572 = vor.u32 1.1754944e-38, %v1571
    %v1573 = vsel %vm1570, %v1572, %v1568
    %v1574 = vmul.f32 1.0, %v1573
    %v1575 = vrcp.pop %v1469
    %v1576 = vmul.f32 %v1469, %v1575
    %v1577 = vsub.f32 1.0, %v1576
    %v1578 = vmul.f32 %v1575, %v1577
    %v1579 = vadd.f32 %v1575, %v1578
    %vm1580 = vweird.f32 %v1469
    %vm1581 = vweird.f32 %v1575
    %vm1582 = vmor %vm1580, %vm1581
    %v1583 = vsel %vm1582, %v1575, %v1579
    %v1584 = vand.u32 2147483647, %v1469
    %vm1585 = vcmp.eq.f32.partialorder %v1584, 8.507059e+37
    %v1586 = vand.u32 %v1469, 2147483648
    %v1587 = vor.u32 1.1754944e-38, %v1586
    %v1588 = vsel %vm1585, %v1587, %v1583
    %v1589 = vmul.f32 1.0, %v1588
    %v1590 = vmul.f32 %v1431, %v1484
    %v1591 = vmul.f32 %v1433, %v1499
    %v1592 = vmul.f32 %v1435, %v1514
    %v1593 = vmul.f32 %v1437, %v1529
    %v1594 = vmul.f32 %v1439, %v1544
    %v1595 = vmul.f32 %v1441, %v1559
    %v1596 = vmul.f32 %v1443, %v1574
    %v1597 = vmul.f32 %v1445, %v1589
    %v1598 = vadd.f32 %v1269, %v1590
    %v1599 = vadd.f32 %v1270, %v1591
    %v1600 = vadd.f32 %v1271, %v1592
    %v1601 = vadd.f32 %v1272, %v1593
    %v1602 = vadd.f32 %v1273, %v1594
    %v1603 = vadd.f32 %v1274, %v1595
    %v1604 = vadd.f32 %v1275, %v1596
    %v1605 = vadd.f32 %v1276, %v1597
    %1606 = vrot.lane.b32.xlu0 %v95, 112
    %v1607 = vpop.permute.xlu0 %1606
    %1608 = vrot.lane.b32.xlu0 %v98, 112
    %v1609 = vpop.permute.xlu0 %1608
    %1610 = vrot.lane.b32.xlu0 %v101, 112
    %v1611 = vpop.permute.xlu0 %1610
    %1612 = vrot.lane.b32.xlu0 %v104, 112
    %v1613 = vpop.permute.xlu0 %1612
    %1614 = vrot.lane.b32.xlu0 %v107, 112
    %v1615 = vpop.permute.xlu0 %1614
    %1616 = vrot.lane.b32.xlu0 %v110, 112
    %v1617 = vpop.permute.xlu0 %1616
    %1618 = vrot.lane.b32.xlu0 %v113, 112
    %v1619 = vpop.permute.xlu0 %1618
    %1620 = vrot.lane.b32.xlu0 %v116, 112
    %v1621 = vpop.permute.xlu0 %1620
    %1622 = vrot.lane.b32.xlu0 %v170, 112
    %v1623 = vpop.permute.xlu0 %1622
    %1624 = vrot.lane.b32.xlu0 %v173, 112
    %v1625 = vpop.permute.xlu0 %1624
    %1626 = vrot.lane.b32.xlu0 %v176, 112
    %v1627 = vpop.permute.xlu0 %1626
    %1628 = vrot.lane.b32.xlu0 %v179, 112
    %v1629 = vpop.permute.xlu0 %1628
    %1630 = vrot.lane.b32.xlu0 %v182, 112
    %v1631 = vpop.permute.xlu0 %1630
    %1632 = vrot.lane.b32.xlu0 %v185, 112
    %v1633 = vpop.permute.xlu0 %1632
    %1634 = vrot.lane.b32.xlu0 %v188, 112
    %v1635 = vpop.permute.xlu0 %1634
    %1636 = vrot.lane.b32.xlu0 %v191, 112
    %v1637 = vpop.permute.xlu0 %1636
    %v1638 = vsel %vm304, %v1607, 0
    %v1640 = vsel %vm304, %v1609, 0
    %v1642 = vsel %vm304, %v1611, 0
    %v1644 = vsel %vm304, %v1613, 0
    %v1646 = vsel %vm304, %v1615, 0
    %v1648 = vsel %vm304, %v1617, 0
    %v1650 = vsel %vm304, %v1619, 0
    %v1652 = vsel %vm304, %v1621, 0
    %v1654 = vsel %vm304, %v1623, 0
    %v1656 = vsel %vm304, %v1625, 0
    %v1658 = vsel %vm304, %v1627, 0
    %v1660 = vsel %vm304, %v1629, 0
    %v1662 = vsel %vm304, %v1631, 0
    %v1664 = vsel %vm304, %v1633, 0
    %v1666 = vsel %vm304, %v1635, 0
    %v1668 = vsel %vm304, %v1637, 0
    %1670 = vmatpush.xpose.msra.mxu0 0.0
    %1671 = vmatpush.xpose.msra.mxu0 0.0
    %1672 = vmatpush.xpose.msra.mxu0 0.0
    %1673 = vmatpush.xpose.msra.mxu0 0.0
    %1674 = vmatpush.xpose.msra.mxu0 0.0
    %1675 = vmatpush.xpose.msra.mxu0 0.0
    %1676 = vmatpush.xpose.msra.mxu0 0.0
    %1677 = vmatpush.xpose.msra.mxu0 0.0
    %1678 = vmatpush.xpose.msra.mxu0 %v1668
    %1679 = vmatpush.xpose.msra.mxu0 %v1666
    %1680 = vmatpush.xpose.msra.mxu0 %v1664
    %1681 = vmatpush.xpose.msra.mxu0 %v1662
    %1682 = vmatpush.xpose.msra.mxu0 %v1660
    %1683 = vmatpush.xpose.msra.mxu0 %v1658
    %1684 = vmatpush.xpose.msra.mxu0 %v1656
    %1685 = vmatpush.xpose.msra.mxu0 %v1654
    %1686 = vmatmul.f32.gmra.mxu0 %v1638
    %v1687 = vpop.f32.mrf.mxu0
    %v1688 = vadd.f32 0.0, %v1687
    %1689 = vmatmul.f32.gmra.mxu0 %v1640
    %v1690 = vpop.f32.mrf.mxu0
    %v1691 = vadd.f32 0.0, %v1690
    %1692 = vmatmul.f32.gmra.mxu0 %v1642
    %v1693 = vpop.f32.mrf.mxu0
    %v1694 = vadd.f32 0.0, %v1693
    %1695 = vmatmul.f32.gmra.mxu0 %v1644
    %v1696 = vpop.f32.mrf.mxu0
    %v1697 = vadd.f32 0.0, %v1696
    %1698 = vmatmul.f32.gmra.mxu0 %v1646
    %v1699 = vpop.f32.mrf.mxu0
    %v1700 = vadd.f32 0.0, %v1699
    %1701 = vmatmul.f32.gmra.mxu0 %v1648
    %v1702 = vpop.f32.mrf.mxu0
    %v1703 = vadd.f32 0.0, %v1702
    %1704 = vmatmul.f32.gmra.mxu0 %v1650
    %v1705 = vpop.f32.mrf.mxu0
    %v1706 = vadd.f32 0.0, %v1705
    %1707 = vmatmul.f32.gmra.mxu0 %v1652
    %v1708 = vpop.f32.mrf.mxu0
    %v1709 = vadd.f32 0.0, %v1708
    %1710 = vdwg.mxu0
    %v1711 = vand.u32 2147483647, %v1688
    %v1712 = vand.u32 2147483647, %v1691
    %v1713 = vand.u32 2147483647, %v1694
    %v1714 = vand.u32 2147483647, %v1697
    %v1715 = vand.u32 2147483647, %v1700
    %v1716 = vand.u32 2147483647, %v1703
    %v1717 = vand.u32 2147483647, %v1706
    %v1718 = vand.u32 2147483647, %v1709
    %v1719 = vadd.f32 %v1711, %v296
    %v1720 = vadd.f32 %v1712, %v297
    %v1721 = vadd.f32 %v1713, %v298
    %v1722 = vadd.f32 %v1714, %v299
    %v1723 = vadd.f32 %v1715, %v300
    %v1724 = vadd.f32 %v1716, %v301
    %v1725 = vadd.f32 %v1717, %v302
    %v1726 = vadd.f32 %v1718, %v303
    %v1727 = vsel %vm410, %v1719, -inf
    %1728 = vmax.xlane.f32.xlu0 %v1727
    %v1729 = vpop.xlane.xlu0 %1728
    %v1730 = vsel %vm410, %v1720, -inf
    %1731 = vmax.xlane.f32.xlu0 %v1730
    %v1732 = vpop.xlane.xlu0 %1731
    %v1733 = vsel %vm410, %v1721, -inf
    %1734 = vmax.xlane.f32.xlu0 %v1733
    %v1735 = vpop.xlane.xlu0 %1734
    %v1736 = vsel %vm410, %v1722, -inf
    %1737 = vmax.xlane.f32.xlu0 %v1736
    %v1738 = vpop.xlane.xlu0 %1737
    %v1739 = vsel %vm410, %v1723, -inf
    %1740 = vmax.xlane.f32.xlu0 %v1739
    %v1741 = vpop.xlane.xlu0 %1740
    %v1742 = vsel %vm410, %v1724, -inf
    %1743 = vmax.xlane.f32.xlu0 %v1742
    %v1744 = vpop.xlane.xlu0 %1743
    %v1745 = vsel %vm410, %v1725, -inf
    %1746 = vmax.xlane.f32.xlu0 %v1745
    %v1747 = vpop.xlane.xlu0 %1746
    %v1748 = vsel %vm410, %v1726, -inf
    %1749 = vmax.xlane.f32.xlu0 %v1748
    %v1750 = vpop.xlane.xlu0 %1749
    %v1751 = vsub.f32 %v1719, %v1729
    %v1752 = vsub.f32 %v1720, %v1732
    %v1753 = vsub.f32 %v1721, %v1735
    %v1754 = vsub.f32 %v1722, %v1738
    %v1755 = vsub.f32 %v1723, %v1741
    %v1756 = vsub.f32 %v1724, %v1744
    %v1757 = vsub.f32 %v1725, %v1747
    %v1758 = vsub.f32 %v1726, %v1750
    %v1759 = vmul.f32 %v1751, 1.442695
    %v1760 = vpow.pop %v1759
    %v1761 = vmul.f32 %v1752, 1.442695
    %v1762 = vpow.pop %v1761
    %v1763 = vmul.f32 %v1753, 1.442695
    %v1764 = vpow.pop %v1763
    %v1765 = vmul.f32 %v1754, 1.442695
    %v1766 = vpow.pop %v1765
    %v1767 = vmul.f32 %v1755, 1.442695
    %v1768 = vpow.pop %v1767
    %v1769 = vmul.f32 %v1756, 1.442695
    %v1770 = vpow.pop %v1769
    %v1771 = vmul.f32 %v1757, 1.442695
    %v1772 = vpow.pop %v1771
    %v1773 = vmul.f32 %v1758, 1.442695
    %v1774 = vpow.pop %v1773
    %v1775 = vsel %vm410, %v1760, 0.0
    %1776 = vadd.xlane.f32.xlu0 %v1775
    %v1777 = vpop.xlane.xlu0 %1776
    %v1778 = vsel %vm410, %v1762, 0.0
    %1779 = vadd.xlane.f32.xlu0 %v1778
    %v1780 = vpop.xlane.xlu0 %1779
    %v1781 = vsel %vm410, %v1764, 0.0
    %1782 = vadd.xlane.f32.xlu0 %v1781
    %v1783 = vpop.xlane.xlu0 %1782
    %v1784 = vsel %vm410, %v1766, 0.0
    %1785 = vadd.xlane.f32.xlu0 %v1784
    %v1786 = vpop.xlane.xlu0 %1785
    %v1787 = vsel %vm410, %v1768, 0.0
    %1788 = vadd.xlane.f32.xlu0 %v1787
    %v1789 = vpop.xlane.xlu0 %1788
    %v1790 = vsel %vm410, %v1770, 0.0
    %1791 = vadd.xlane.f32.xlu0 %v1790
    %v1792 = vpop.xlane.xlu0 %1791
    %v1793 = vsel %vm410, %v1772, 0.0
    %1794 = vadd.xlane.f32.xlu0 %v1793
    %v1795 = vpop.xlane.xlu0 %1794
    %v1796 = vsel %vm410, %v1774, 0.0
    %1797 = vadd.xlane.f32.xlu0 %v1796
    %v1798 = vpop.xlane.xlu0 %1797
    %v1799 = vrcp.pop %v1777
    %v1800 = vmul.f32 %v1777, %v1799
    %v1801 = vsub.f32 1.0, %v1800
    %v1802 = vmul.f32 %v1799, %v1801
    %v1803 = vadd.f32 %v1799, %v1802
    %vm1804 = vweird.f32 %v1777
    %vm1805 = vweird.f32 %v1799
    %vm1806 = vmor %vm1804, %vm1805
    %v1807 = vsel %vm1806, %v1799, %v1803
    %v1808 = vand.u32 2147483647, %v1777
    %vm1809 = vcmp.eq.f32.partialorder %v1808, 8.507059e+37
    %v1810 = vand.u32 %v1777, 2147483648
    %v1811 = vor.u32 1.1754944e-38, %v1810
    %v1812 = vsel %vm1809, %v1811, %v1807
    %v1813 = vmul.f32 1.0, %v1812
    %v1814 = vrcp.pop %v1780
    %v1815 = vmul.f32 %v1780, %v1814
    %v1816 = vsub.f32 1.0, %v1815
    %v1817 = vmul.f32 %v1814, %v1816
    %v1818 = vadd.f32 %v1814, %v1817
    %vm1819 = vweird.f32 %v1780
    %vm1820 = vweird.f32 %v1814
    %vm1821 = vmor %vm1819, %vm1820
    %v1822 = vsel %vm1821, %v1814, %v1818
    %v1823 = vand.u32 2147483647, %v1780
    %vm1824 = vcmp.eq.f32.partialorder %v1823, 8.507059e+37
    %v1825 = vand.u32 %v1780, 2147483648
    %v1826 = vor.u32 1.1754944e-38, %v1825
    %v1827 = vsel %vm1824, %v1826, %v1822
    %v1828 = vmul.f32 1.0, %v1827
    %v1829 = vrcp.pop %v1783
    %v1830 = vmul.f32 %v1783, %v1829
    %v1831 = vsub.f32 1.0, %v1830
    %v1832 = vmul.f32 %v1829, %v1831
    %v1833 = vadd.f32 %v1829, %v1832
    %vm1834 = vweird.f32 %v1783
    %vm1835 = vweird.f32 %v1829
    %vm1836 = vmor %vm1834, %vm1835
    %v1837 = vsel %vm1836, %v1829, %v1833
    %v1838 = vand.u32 2147483647, %v1783
    %vm1839 = vcmp.eq.f32.partialorder %v1838, 8.507059e+37
    %v1840 = vand.u32 %v1783, 2147483648
    %v1841 = vor.u32 1.1754944e-38, %v1840
    %v1842 = vsel %vm1839, %v1841, %v1837
    %v1843 = vmul.f32 1.0, %v1842
    %v1844 = vrcp.pop %v1786
    %v1845 = vmul.f32 %v1786, %v1844
    %v1846 = vsub.f32 1.0, %v1845
    %v1847 = vmul.f32 %v1844, %v1846
    %v1848 = vadd.f32 %v1844, %v1847
    %vm1849 = vweird.f32 %v1786
    %vm1850 = vweird.f32 %v1844
    %vm1851 = vmor %vm1849, %vm1850
    %v1852 = vsel %vm1851, %v1844, %v1848
    %v1853 = vand.u32 2147483647, %v1786
    %vm1854 = vcmp.eq.f32.partialorder %v1853, 8.507059e+37
    %v1855 = vand.u32 %v1786, 2147483648
    %v1856 = vor.u32 1.1754944e-38, %v1855
    %v1857 = vsel %vm1854, %v1856, %v1852
    %v1858 = vmul.f32 1.0, %v1857
    %v1859 = vrcp.pop %v1789
    %v1860 = vmul.f32 %v1789, %v1859
    %v1861 = vsub.f32 1.0, %v1860
    %v1862 = vmul.f32 %v1859, %v1861
    %v1863 = vadd.f32 %v1859, %v1862
    %vm1864 = vweird.f32 %v1789
    %vm1865 = vweird.f32 %v1859
    %vm1866 = vmor %vm1864, %vm1865
    %v1867 = vsel %vm1866, %v1859, %v1863
    %v1868 = vand.u32 2147483647, %v1789
    %vm1869 = vcmp.eq.f32.partialorder %v1868, 8.507059e+37
    %v1870 = vand.u32 %v1789, 2147483648
    %v1871 = vor.u32 1.1754944e-38, %v1870
    %v1872 = vsel %vm1869, %v1871, %v1867
    %v1873 = vmul.f32 1.0, %v1872
    %v1874 = vrcp.pop %v1792
    %v1875 = vmul.f32 %v1792, %v1874
    %v1876 = vsub.f32 1.0, %v1875
    %v1877 = vmul.f32 %v1874, %v1876
    %v1878 = vadd.f32 %v1874, %v1877
    %vm1879 = vweird.f32 %v1792
    %vm1880 = vweird.f32 %v1874
    %vm1881 = vmor %vm1879, %vm1880
    %v1882 = vsel %vm1881, %v1874, %v1878
    %v1883 = vand.u32 2147483647, %v1792
    %vm1884 = vcmp.eq.f32.partialorder %v1883, 8.507059e+37
    %v1885 = vand.u32 %v1792, 2147483648
    %v1886 = vor.u32 1.1754944e-38, %v1885
    %v1887 = vsel %vm1884, %v1886, %v1882
    %v1888 = vmul.f32 1.0, %v1887
    %v1889 = vrcp.pop %v1795
    %v1890 = vmul.f32 %v1795, %v1889
    %v1891 = vsub.f32 1.0, %v1890
    %v1892 = vmul.f32 %v1889, %v1891
    %v1893 = vadd.f32 %v1889, %v1892
    %vm1894 = vweird.f32 %v1795
    %vm1895 = vweird.f32 %v1889
    %vm1896 = vmor %vm1894, %vm1895
    %v1897 = vsel %vm1896, %v1889, %v1893
    %v1898 = vand.u32 2147483647, %v1795
    %vm1899 = vcmp.eq.f32.partialorder %v1898, 8.507059e+37
    %v1900 = vand.u32 %v1795, 2147483648
    %v1901 = vor.u32 1.1754944e-38, %v1900
    %v1902 = vsel %vm1899, %v1901, %v1897
    %v1903 = vmul.f32 1.0, %v1902
    %v1904 = vrcp.pop %v1798
    %v1905 = vmul.f32 %v1798, %v1904
    %v1906 = vsub.f32 1.0, %v1905
    %v1907 = vmul.f32 %v1904, %v1906
    %v1908 = vadd.f32 %v1904, %v1907
    %vm1909 = vweird.f32 %v1798
    %vm1910 = vweird.f32 %v1904
    %vm1911 = vmor %vm1909, %vm1910
    %v1912 = vsel %vm1911, %v1904, %v1908
    %v1913 = vand.u32 2147483647, %v1798
    %vm1914 = vcmp.eq.f32.partialorder %v1913, 8.507059e+37
    %v1915 = vand.u32 %v1798, 2147483648
    %v1916 = vor.u32 1.1754944e-38, %v1915
    %v1917 = vsel %vm1914, %v1916, %v1912
    %v1918 = vmul.f32 1.0, %v1917
    %v1919 = vmul.f32 %v1760, %v1813
    %v1920 = vmul.f32 %v1762, %v1828
    %v1921 = vmul.f32 %v1764, %v1843
    %v1922 = vmul.f32 %v1766, %v1858
    %v1923 = vmul.f32 %v1768, %v1873
    %v1924 = vmul.f32 %v1770, %v1888
    %v1925 = vmul.f32 %v1772, %v1903
    %v1926 = vmul.f32 %v1774, %v1918
    %v1927 = vadd.f32 %v1598, %v1919
    %v1928 = vadd.f32 %v1599, %v1920
    %v1929 = vadd.f32 %v1600, %v1921
    %v1930 = vadd.f32 %v1601, %v1922
    %v1931 = vadd.f32 %v1602, %v1923
    %v1932 = vadd.f32 %v1603, %v1924
    %v1933 = vadd.f32 %v1604, %v1925
    %v1934 = vadd.f32 %v1605, %v1926
    %1935 = vrot.lane.b32.xlu0 %v95, 108
    %v1936 = vpop.permute.xlu0 %1935
    %1937 = vrot.lane.b32.xlu0 %v98, 108
    %v1938 = vpop.permute.xlu0 %1937
    %1939 = vrot.lane.b32.xlu0 %v101, 108
    %v1940 = vpop.permute.xlu0 %1939
    %1941 = vrot.lane.b32.xlu0 %v104, 108
    %v1942 = vpop.permute.xlu0 %1941
    %1943 = vrot.lane.b32.xlu0 %v107, 108
    %v1944 = vpop.permute.xlu0 %1943
    %1945 = vrot.lane.b32.xlu0 %v110, 108
    %v1946 = vpop.permute.xlu0 %1945
    %1947 = vrot.lane.b32.xlu0 %v113, 108
    %v1948 = vpop.permute.xlu0 %1947
    %1949 = vrot.lane.b32.xlu0 %v116, 108
    %v1950 = vpop.permute.xlu0 %1949
    %1951 = vrot.lane.b32.xlu0 %v170, 108
    %v1952 = vpop.permute.xlu0 %1951
    %1953 = vrot.lane.b32.xlu0 %v173, 108
    %v1954 = vpop.permute.xlu0 %1953
    %1955 = vrot.lane.b32.xlu0 %v176, 108
    %v1956 = vpop.permute.xlu0 %1955
    %1957 = vrot.lane.b32.xlu0 %v179, 108
    %v1958 = vpop.permute.xlu0 %1957
    %1959 = vrot.lane.b32.xlu0 %v182, 108
    %v1960 = vpop.permute.xlu0 %1959
    %1961 = vrot.lane.b32.xlu0 %v185, 108
    %v1962 = vpop.permute.xlu0 %1961
    %1963 = vrot.lane.b32.xlu0 %v188, 108
    %v1964 = vpop.permute.xlu0 %1963
    %1965 = vrot.lane.b32.xlu0 %v191, 108
    %v1966 = vpop.permute.xlu0 %1965
    %v1967 = vsel %vm304, %v1936, 0
    %v1969 = vsel %vm304, %v1938, 0
    %v1971 = vsel %vm304, %v1940, 0
    %v1973 = vsel %vm304, %v1942, 0
    %v1975 = vsel %vm304, %v1944, 0
    %v1977 = vsel %vm304, %v1946, 0
    %v1979 = vsel %vm304, %v1948, 0
    %v1981 = vsel %vm304, %v1950, 0
    %v1983 = vsel %vm304, %v1952, 0
    %v1985 = vsel %vm304, %v1954, 0
    %v1987 = vsel %vm304, %v1956, 0
    %v1989 = vsel %vm304, %v1958, 0
    %v1991 = vsel %vm304, %v1960, 0
    %v1993 = vsel %vm304, %v1962, 0
    %v1995 = vsel %vm304, %v1964, 0
    %v1997 = vsel %vm304, %v1966, 0
    %1999 = vmatpush.xpose.msra.mxu0 0.0
    %2000 = vmatpush.xpose.msra.mxu0 0.0
    %2001 = vmatpush.xpose.msra.mxu0 0.0
    %2002 = vmatpush.xpose.msra.mxu0 0.0
    %2003 = vmatpush.xpose.msra.mxu0 0.0
    %2004 = vmatpush.xpose.msra.mxu0 0.0
    %2005 = vmatpush.xpose.msra.mxu0 0.0
    %2006 = vmatpush.xpose.msra.mxu0 0.0
    %2007 = vmatpush.xpose.msra.mxu0 %v1997
    %2008 = vmatpush.xpose.msra.mxu0 %v1995
    %2009 = vmatpush.xpose.msra.mxu0 %v1993
    %2010 = vmatpush.xpose.msra.mxu0 %v1991
    %2011 = vmatpush.xpose.msra.mxu0 %v1989
    %2012 = vmatpush.xpose.msra.mxu0 %v1987
    %2013 = vmatpush.xpose.msra.mxu0 %v1985
    %2014 = vmatpush.xpose.msra.mxu0 %v1983
    %2015 = vmatmul.f32.gmra.mxu0 %v1967
    %v2016 = vpop.f32.mrf.mxu0
    %v2017 = vadd.f32 0.0, %v2016
    %2018 = vmatmul.f32.gmra.mxu0 %v1969
    %v2019 = vpop.f32.mrf.mxu0
    %v2020 = vadd.f32 0.0, %v2019
    %2021 = vmatmul.f32.gmra.mxu0 %v1971
    %v2022 = vpop.f32.mrf.mxu0
    %v2023 = vadd.f32 0.0, %v2022
    %2024 = vmatmul.f32.gmra.mxu0 %v1973
    %v2025 = vpop.f32.mrf.mxu0
    %v2026 = vadd.f32 0.0, %v2025
    %2027 = vmatmul.f32.gmra.mxu0 %v1975
    %v2028 = vpop.f32.mrf.mxu0
    %v2029 = vadd.f32 0.0, %v2028
    %2030 = vmatmul.f32.gmra.mxu0 %v1977
    %v2031 = vpop.f32.mrf.mxu0
    %v2032 = vadd.f32 0.0, %v2031
    %2033 = vmatmul.f32.gmra.mxu0 %v1979
    %v2034 = vpop.f32.mrf.mxu0
    %v2035 = vadd.f32 0.0, %v2034
    %2036 = vmatmul.f32.gmra.mxu0 %v1981
    %v2037 = vpop.f32.mrf.mxu0
    %v2038 = vadd.f32 0.0, %v2037
    %2039 = vdwg.mxu0
    %v2040 = vand.u32 2147483647, %v2017
    %v2041 = vand.u32 2147483647, %v2020
    %v2042 = vand.u32 2147483647, %v2023
    %v2043 = vand.u32 2147483647, %v2026
    %v2044 = vand.u32 2147483647, %v2029
    %v2045 = vand.u32 2147483647, %v2032
    %v2046 = vand.u32 2147483647, %v2035
    %v2047 = vand.u32 2147483647, %v2038
    %v2048 = vadd.f32 %v2040, %v296
    %v2049 = vadd.f32 %v2041, %v297
    %v2050 = vadd.f32 %v2042, %v298
    %v2051 = vadd.f32 %v2043, %v299
    %v2052 = vadd.f32 %v2044, %v300
    %v2053 = vadd.f32 %v2045, %v301
    %v2054 = vadd.f32 %v2046, %v302
    %v2055 = vadd.f32 %v2047, %v303
    %v2056 = vsel %vm410, %v2048, -inf
    %2057 = vmax.xlane.f32.xlu0 %v2056
    %v2058 = vpop.xlane.xlu0 %2057
    %v2059 = vsel %vm410, %v2049, -inf
    %2060 = vmax.xlane.f32.xlu0 %v2059
    %v2061 = vpop.xlane.xlu0 %2060
    %v2062 = vsel %vm410, %v2050, -inf
    %2063 = vmax.xlane.f32.xlu0 %v2062
    %v2064 = vpop.xlane.xlu0 %2063
    %v2065 = vsel %vm410, %v2051, -inf
    %2066 = vmax.xlane.f32.xlu0 %v2065
    %v2067 = vpop.xlane.xlu0 %2066
    %v2068 = vsel %vm410, %v2052, -inf
    %2069 = vmax.xlane.f32.xlu0 %v2068
    %v2070 = vpop.xlane.xlu0 %2069
    %v2071 = vsel %vm410, %v2053, -inf
    %2072 = vmax.xlane.f32.xlu0 %v2071
    %v2073 = vpop.xlane.xlu0 %2072
    %v2074 = vsel %vm410, %v2054, -inf
    %2075 = vmax.xlane.f32.xlu0 %v2074
    %v2076 = vpop.xlane.xlu0 %2075
    %v2077 = vsel %vm410, %v2055, -inf
    %2078 = vmax.xlane.f32.xlu0 %v2077
    %v2079 = vpop.xlane.xlu0 %2078
    %v2080 = vsub.f32 %v2048, %v2058
    %v2081 = vsub.f32 %v2049, %v2061
    %v2082 = vsub.f32 %v2050, %v2064
    %v2083 = vsub.f32 %v2051, %v2067
    %v2084 = vsub.f32 %v2052, %v2070
    %v2085 = vsub.f32 %v2053, %v2073
    %v2086 = vsub.f32 %v2054, %v2076
    %v2087 = vsub.f32 %v2055, %v2079
    %v2088 = vmul.f32 %v2080, 1.442695
    %v2089 = vpow.pop %v2088
    %v2090 = vmul.f32 %v2081, 1.442695
    %v2091 = vpow.pop %v2090
    %v2092 = vmul.f32 %v2082, 1.442695
    %v2093 = vpow.pop %v2092
    %v2094 = vmul.f32 %v2083, 1.442695
    %v2095 = vpow.pop %v2094
    %v2096 = vmul.f32 %v2084, 1.442695
    %v2097 = vpow.pop %v2096
    %v2098 = vmul.f32 %v2085, 1.442695
    %v2099 = vpow.pop %v2098
    %v2100 = vmul.f32 %v2086, 1.442695
    %v2101 = vpow.pop %v2100
    %v2102 = vmul.f32 %v2087, 1.442695
    %v2103 = vpow.pop %v2102
    %v2104 = vsel %vm410, %v2089, 0.0
    %2105 = vadd.xlane.f32.xlu0 %v2104
    %v2106 = vpop.xlane.xlu0 %2105
    %v2107 = vsel %vm410, %v2091, 0.0
    %2108 = vadd.xlane.f32.xlu0 %v2107
    %v2109 = vpop.xlane.xlu0 %2108
    %v2110 = vsel %vm410, %v2093, 0.0
    %2111 = vadd.xlane.f32.xlu0 %v2110
    %v2112 = vpop.xlane.xlu0 %2111
    %v2113 = vsel %vm410, %v2095, 0.0
    %2114 = vadd.xlane.f32.xlu0 %v2113
    %v2115 = vpop.xlane.xlu0 %2114
    %v2116 = vsel %vm410, %v2097, 0.0
    %2117 = vadd.xlane.f32.xlu0 %v2116
    %v2118 = vpop.xlane.xlu0 %2117
    %v2119 = vsel %vm410, %v2099, 0.0
    %2120 = vadd.xlane.f32.xlu0 %v2119
    %v2121 = vpop.xlane.xlu0 %2120
    %v2122 = vsel %vm410, %v2101, 0.0
    %2123 = vadd.xlane.f32.xlu0 %v2122
    %v2124 = vpop.xlane.xlu0 %2123
    %v2125 = vsel %vm410, %v2103, 0.0
    %2126 = vadd.xlane.f32.xlu0 %v2125
    %v2127 = vpop.xlane.xlu0 %2126
    %v2128 = vrcp.pop %v2106
    %v2129 = vmul.f32 %v2106, %v2128
    %v2130 = vsub.f32 1.0, %v2129
    %v2131 = vmul.f32 %v2128, %v2130
    %v2132 = vadd.f32 %v2128, %v2131
    %vm2133 = vweird.f32 %v2106
    %vm2134 = vweird.f32 %v2128
    %vm2135 = vmor %vm2133, %vm2134
    %v2136 = vsel %vm2135, %v2128, %v2132
    %v2137 = vand.u32 2147483647, %v2106
    %vm2138 = vcmp.eq.f32.partialorder %v2137, 8.507059e+37
    %v2139 = vand.u32 %v2106, 2147483648
    %v2140 = vor.u32 1.1754944e-38, %v2139
    %v2141 = vsel %vm2138, %v2140, %v2136
    %v2142 = vmul.f32 1.0, %v2141
    %v2143 = vrcp.pop %v2109
    %v2144 = vmul.f32 %v2109, %v2143
    %v2145 = vsub.f32 1.0, %v2144
    %v2146 = vmul.f32 %v2143, %v2145
    %v2147 = vadd.f32 %v2143, %v2146
    %vm2148 = vweird.f32 %v2109
    %vm2149 = vweird.f32 %v2143
    %vm2150 = vmor %vm2148, %vm2149
    %v2151 = vsel %vm2150, %v2143, %v2147
    %v2152 = vand.u32 2147483647, %v2109
    %vm2153 = vcmp.eq.f32.partialorder %v2152, 8.507059e+37
    %v2154 = vand.u32 %v2109, 2147483648
    %v2155 = vor.u32 1.1754944e-38, %v2154
    %v2156 = vsel %vm2153, %v2155, %v2151
    %v2157 = vmul.f32 1.0, %v2156
    %v2158 = vrcp.pop %v2112
    %v2159 = vmul.f32 %v2112, %v2158
    %v2160 = vsub.f32 1.0, %v2159
    %v2161 = vmul.f32 %v2158, %v2160
    %v2162 = vadd.f32 %v2158, %v2161
    %vm2163 = vweird.f32 %v2112
    %vm2164 = vweird.f32 %v2158
    %vm2165 = vmor %vm2163, %vm2164
    %v2166 = vsel %vm2165, %v2158, %v2162
    %v2167 = vand.u32 2147483647, %v2112
    %vm2168 = vcmp.eq.f32.partialorder %v2167, 8.507059e+37
    %v2169 = vand.u32 %v2112, 2147483648
    %v2170 = vor.u32 1.1754944e-38, %v2169
    %v2171 = vsel %vm2168, %v2170, %v2166
    %v2172 = vmul.f32 1.0, %v2171
    %v2173 = vrcp.pop %v2115
    %v2174 = vmul.f32 %v2115, %v2173
    %v2175 = vsub.f32 1.0, %v2174
    %v2176 = vmul.f32 %v2173, %v2175
    %v2177 = vadd.f32 %v2173, %v2176
    %vm2178 = vweird.f32 %v2115
    %vm2179 = vweird.f32 %v2173
    %vm2180 = vmor %vm2178, %vm2179
    %v2181 = vsel %vm2180, %v2173, %v2177
    %v2182 = vand.u32 2147483647, %v2115
    %vm2183 = vcmp.eq.f32.partialorder %v2182, 8.507059e+37
    %v2184 = vand.u32 %v2115, 2147483648
    %v2185 = vor.u32 1.1754944e-38, %v2184
    %v2186 = vsel %vm2183, %v2185, %v2181
    %v2187 = vmul.f32 1.0, %v2186
    %v2188 = vrcp.pop %v2118
    %v2189 = vmul.f32 %v2118, %v2188
    %v2190 = vsub.f32 1.0, %v2189
    %v2191 = vmul.f32 %v2188, %v2190
    %v2192 = vadd.f32 %v2188, %v2191
    %vm2193 = vweird.f32 %v2118
    %vm2194 = vweird.f32 %v2188
    %vm2195 = vmor %vm2193, %vm2194
    %v2196 = vsel %vm2195, %v2188, %v2192
    %v2197 = vand.u32 2147483647, %v2118
    %vm2198 = vcmp.eq.f32.partialorder %v2197, 8.507059e+37
    %v2199 = vand.u32 %v2118, 2147483648
    %v2200 = vor.u32 1.1754944e-38, %v2199
    %v2201 = vsel %vm2198, %v2200, %v2196
    %v2202 = vmul.f32 1.0, %v2201
    %v2203 = vrcp.pop %v2121
    %v2204 = vmul.f32 %v2121, %v2203
    %v2205 = vsub.f32 1.0, %v2204
    %v2206 = vmul.f32 %v2203, %v2205
    %v2207 = vadd.f32 %v2203, %v2206
    %vm2208 = vweird.f32 %v2121
    %vm2209 = vweird.f32 %v2203
    %vm2210 = vmor %vm2208, %vm2209
    %v2211 = vsel %vm2210, %v2203, %v2207
    %v2212 = vand.u32 2147483647, %v2121
    %vm2213 = vcmp.eq.f32.partialorder %v2212, 8.507059e+37
    %v2214 = vand.u32 %v2121, 2147483648
    %v2215 = vor.u32 1.1754944e-38, %v2214
    %v2216 = vsel %vm2213, %v2215, %v2211
    %v2217 = vmul.f32 1.0, %v2216
    %v2218 = vrcp.pop %v2124
    %v2219 = vmul.f32 %v2124, %v2218
    %v2220 = vsub.f32 1.0, %v2219
    %v2221 = vmul.f32 %v2218, %v2220
    %v2222 = vadd.f32 %v2218, %v2221
    %vm2223 = vweird.f32 %v2124
    %vm2224 = vweird.f32 %v2218
    %vm2225 = vmor %vm2223, %vm2224
    %v2226 = vsel %vm2225, %v2218, %v2222
    %v2227 = vand.u32 2147483647, %v2124
    %vm2228 = vcmp.eq.f32.partialorder %v2227, 8.507059e+37
    %v2229 = vand.u32 %v2124, 2147483648
    %v2230 = vor.u32 1.1754944e-38, %v2229
    %v2231 = vsel %vm2228, %v2230, %v2226
    %v2232 = vmul.f32 1.0, %v2231
    %v2233 = vrcp.pop %v2127
    %v2234 = vmul.f32 %v2127, %v2233
    %v2235 = vsub.f32 1.0, %v2234
    %v2236 = vmul.f32 %v2233, %v2235
    %v2237 = vadd.f32 %v2233, %v2236
    %vm2238 = vweird.f32 %v2127
    %vm2239 = vweird.f32 %v2233
    %vm2240 = vmor %vm2238, %vm2239
    %v2241 = vsel %vm2240, %v2233, %v2237
    %v2242 = vand.u32 2147483647, %v2127
    %vm2243 = vcmp.eq.f32.partialorder %v2242, 8.507059e+37
    %v2244 = vand.u32 %v2127, 2147483648
    %v2245 = vor.u32 1.1754944e-38, %v2244
    %v2246 = vsel %vm2243, %v2245, %v2241
    %v2247 = vmul.f32 1.0, %v2246
    %v2248 = vmul.f32 %v2089, %v2142
    %v2249 = vmul.f32 %v2091, %v2157
    %v2250 = vmul.f32 %v2093, %v2172
    %v2251 = vmul.f32 %v2095, %v2187
    %v2252 = vmul.f32 %v2097, %v2202
    %v2253 = vmul.f32 %v2099, %v2217
    %v2254 = vmul.f32 %v2101, %v2232
    %v2255 = vmul.f32 %v2103, %v2247
    %v2256 = vadd.f32 %v1927, %v2248
    %v2257 = vadd.f32 %v1928, %v2249
    %v2258 = vadd.f32 %v1929, %v2250
    %v2259 = vadd.f32 %v1930, %v2251
    %v2260 = vadd.f32 %v1931, %v2252
    %v2261 = vadd.f32 %v1932, %v2253
    %v2262 = vadd.f32 %v1933, %v2254
    %v2263 = vadd.f32 %v1934, %v2255
    %2264 = vrot.lane.b32.xlu0 %v95, 104
    %v2265 = vpop.permute.xlu0 %2264
    %2266 = vrot.lane.b32.xlu0 %v98, 104
    %v2267 = vpop.permute.xlu0 %2266
    %2268 = vrot.lane.b32.xlu0 %v101, 104
    %v2269 = vpop.permute.xlu0 %2268
    %2270 = vrot.lane.b32.xlu0 %v104, 104
    %v2271 = vpop.permute.xlu0 %2270
    %2272 = vrot.lane.b32.xlu0 %v107, 104
    %v2273 = vpop.permute.xlu0 %2272
    %2274 = vrot.lane.b32.xlu0 %v110, 104
    %v2275 = vpop.permute.xlu0 %2274
    %2276 = vrot.lane.b32.xlu0 %v113, 104
    %v2277 = vpop.permute.xlu0 %2276
    %2278 = vrot.lane.b32.xlu0 %v116, 104
    %v2279 = vpop.permute.xlu0 %2278
    %2280 = vrot.lane.b32.xlu0 %v170, 104
    %v2281 = vpop.permute.xlu0 %2280
    %2282 = vrot.lane.b32.xlu0 %v173, 104
    %v2283 = vpop.permute.xlu0 %2282
    %2284 = vrot.lane.b32.xlu0 %v176, 104
    %v2285 = vpop.permute.xlu0 %2284
    %2286 = vrot.lane.b32.xlu0 %v179, 104
    %v2287 = vpop.permute.xlu0 %2286
    %2288 = vrot.lane.b32.xlu0 %v182, 104
    %v2289 = vpop.permute.xlu0 %2288
    %2290 = vrot.lane.b32.xlu0 %v185, 104
    %v2291 = vpop.permute.xlu0 %2290
    %2292 = vrot.lane.b32.xlu0 %v188, 104
    %v2293 = vpop.permute.xlu0 %2292
    %2294 = vrot.lane.b32.xlu0 %v191, 104
    %v2295 = vpop.permute.xlu0 %2294
    %v2296 = vsel %vm304, %v2265, 0
    %v2298 = vsel %vm304, %v2267, 0
    %v2300 = vsel %vm304, %v2269, 0
    %v2302 = vsel %vm304, %v2271, 0
    %v2304 = vsel %vm304, %v2273, 0
    %v2306 = vsel %vm304, %v2275, 0
    %v2308 = vsel %vm304, %v2277, 0
    %v2310 = vsel %vm304, %v2279, 0
    %v2312 = vsel %vm304, %v2281, 0
    %v2314 = vsel %vm304, %v2283, 0
    %v2316 = vsel %vm304, %v2285, 0
    %v2318 = vsel %vm304, %v2287, 0
    %v2320 = vsel %vm304, %v2289, 0
    %v2322 = vsel %vm304, %v2291, 0
    %v2324 = vsel %vm304, %v2293, 0
    %v2326 = vsel %vm304, %v2295, 0
    %2328 = vmatpush.xpose.msra.mxu0 0.0
    %2329 = vmatpush.xpose.msra.mxu0 0.0
    %2330 = vmatpush.xpose.msra.mxu0 0.0
    %2331 = vmatpush.xpose.msra.mxu0 0.0
    %2332 = vmatpush.xpose.msra.mxu0 0.0
    %2333 = vmatpush.xpose.msra.mxu0 0.0
    %2334 = vmatpush.xpose.msra.mxu0 0.0
    %2335 = vmatpush.xpose.msra.mxu0 0.0
    %2336 = vmatpush.xpose.msra.mxu0 %v2326
    %2337 = vmatpush.xpose.msra.mxu0 %v2324
    %2338 = vmatpush.xpose.msra.mxu0 %v2322
    %2339 = vmatpush.xpose.msra.mxu0 %v2320
    %2340 = vmatpush.xpose.msra.mxu0 %v2318
    %2341 = vmatpush.xpose.msra.mxu0 %v2316
    %2342 = vmatpush.xpose.msra.mxu0 %v2314
    %2343 = vmatpush.xpose.msra.mxu0 %v2312
    %2344 = vmatmul.f32.gmra.mxu0 %v2296
    %v2345 = vpop.f32.mrf.mxu0
    %v2346 = vadd.f32 0.0, %v2345
    %2347 = vmatmul.f32.gmra.mxu0 %v2298
    %v2348 = vpop.f32.mrf.mxu0
    %v2349 = vadd.f32 0.0, %v2348
    %2350 = vmatmul.f32.gmra.mxu0 %v2300
    %v2351 = vpop.f32.mrf.mxu0
    %v2352 = vadd.f32 0.0, %v2351
    %2353 = vmatmul.f32.gmra.mxu0 %v2302
    %v2354 = vpop.f32.mrf.mxu0
    %v2355 = vadd.f32 0.0, %v2354
    %2356 = vmatmul.f32.gmra.mxu0 %v2304
    %v2357 = vpop.f32.mrf.mxu0
    %v2358 = vadd.f32 0.0, %v2357
    %2359 = vmatmul.f32.gmra.mxu0 %v2306
    %v2360 = vpop.f32.mrf.mxu0
    %v2361 = vadd.f32 0.0, %v2360
    %2362 = vmatmul.f32.gmra.mxu0 %v2308
    %v2363 = vpop.f32.mrf.mxu0
    %v2364 = vadd.f32 0.0, %v2363
    %2365 = vmatmul.f32.gmra.mxu0 %v2310
    %v2366 = vpop.f32.mrf.mxu0
    %v2367 = vadd.f32 0.0, %v2366
    %2368 = vdwg.mxu0
    %v2369 = vand.u32 2147483647, %v2346
    %v2370 = vand.u32 2147483647, %v2349
    %v2371 = vand.u32 2147483647, %v2352
    %v2372 = vand.u32 2147483647, %v2355
    %v2373 = vand.u32 2147483647, %v2358
    %v2374 = vand.u32 2147483647, %v2361
    %v2375 = vand.u32 2147483647, %v2364
    %v2376 = vand.u32 2147483647, %v2367
    %v2377 = vadd.f32 %v2369, %v296
    %v2378 = vadd.f32 %v2370, %v297
    %v2379 = vadd.f32 %v2371, %v298
    %v2380 = vadd.f32 %v2372, %v299
    %v2381 = vadd.f32 %v2373, %v300
    %v2382 = vadd.f32 %v2374, %v301
    %v2383 = vadd.f32 %v2375, %v302
    %v2384 = vadd.f32 %v2376, %v303
    %v2385 = vsel %vm410, %v2377, -inf
    %2386 = vmax.xlane.f32.xlu0 %v2385
    %v2387 = vpop.xlane.xlu0 %2386
    %v2388 = vsel %vm410, %v2378, -inf
    %2389 = vmax.xlane.f32.xlu0 %v2388
    %v2390 = vpop.xlane.xlu0 %2389
    %v2391 = vsel %vm410, %v2379, -inf
    %2392 = vmax.xlane.f32.xlu0 %v2391
    %v2393 = vpop.xlane.xlu0 %2392
    %v2394 = vsel %vm410, %v2380, -inf
    %2395 = vmax.xlane.f32.xlu0 %v2394
    %v2396 = vpop.xlane.xlu0 %2395
    %v2397 = vsel %vm410, %v2381, -inf
    %2398 = vmax.xlane.f32.xlu0 %v2397
    %v2399 = vpop.xlane.xlu0 %2398
    %v2400 = vsel %vm410, %v2382, -inf
    %2401 = vmax.xlane.f32.xlu0 %v2400
    %v2402 = vpop.xlane.xlu0 %2401
    %v2403 = vsel %vm410, %v2383, -inf
    %2404 = vmax.xlane.f32.xlu0 %v2403
    %v2405 = vpop.xlane.xlu0 %2404
    %v2406 = vsel %vm410, %v2384, -inf
    %2407 = vmax.xlane.f32.xlu0 %v2406
    %v2408 = vpop.xlane.xlu0 %2407
    %v2409 = vsub.f32 %v2377, %v2387
    %v2410 = vsub.f32 %v2378, %v2390
    %v2411 = vsub.f32 %v2379, %v2393
    %v2412 = vsub.f32 %v2380, %v2396
    %v2413 = vsub.f32 %v2381, %v2399
    %v2414 = vsub.f32 %v2382, %v2402
    %v2415 = vsub.f32 %v2383, %v2405
    %v2416 = vsub.f32 %v2384, %v2408
    %v2417 = vmul.f32 %v2409, 1.442695
    %v2418 = vpow.pop %v2417
    %v2419 = vmul.f32 %v2410, 1.442695
    %v2420 = vpow.pop %v2419
    %v2421 = vmul.f32 %v2411, 1.442695
    %v2422 = vpow.pop %v2421
    %v2423 = vmul.f32 %v2412, 1.442695
    %v2424 = vpow.pop %v2423
    %v2425 = vmul.f32 %v2413, 1.442695
    %v2426 = vpow.pop %v2425
    %v2427 = vmul.f32 %v2414, 1.442695
    %v2428 = vpow.pop %v2427
    %v2429 = vmul.f32 %v2415, 1.442695
    %v2430 = vpow.pop %v2429
    %v2431 = vmul.f32 %v2416, 1.442695
    %v2432 = vpow.pop %v2431
    %v2433 = vsel %vm410, %v2418, 0.0
    %2434 = vadd.xlane.f32.xlu0 %v2433
    %v2435 = vpop.xlane.xlu0 %2434
    %v2436 = vsel %vm410, %v2420, 0.0
    %2437 = vadd.xlane.f32.xlu0 %v2436
    %v2438 = vpop.xlane.xlu0 %2437
    %v2439 = vsel %vm410, %v2422, 0.0
    %2440 = vadd.xlane.f32.xlu0 %v2439
    %v2441 = vpop.xlane.xlu0 %2440
    %v2442 = vsel %vm410, %v2424, 0.0
    %2443 = vadd.xlane.f32.xlu0 %v2442
    %v2444 = vpop.xlane.xlu0 %2443
    %v2445 = vsel %vm410, %v2426, 0.0
    %2446 = vadd.xlane.f32.xlu0 %v2445
    %v2447 = vpop.xlane.xlu0 %2446
    %v2448 = vsel %vm410, %v2428, 0.0
    %2449 = vadd.xlane.f32.xlu0 %v2448
    %v2450 = vpop.xlane.xlu0 %2449
    %v2451 = vsel %vm410, %v2430, 0.0
    %2452 = vadd.xlane.f32.xlu0 %v2451
    %v2453 = vpop.xlane.xlu0 %2452
    %v2454 = vsel %vm410, %v2432, 0.0
    %2455 = vadd.xlane.f32.xlu0 %v2454
    %v2456 = vpop.xlane.xlu0 %2455
    %v2457 = vrcp.pop %v2435
    %v2458 = vmul.f32 %v2435, %v2457
    %v2459 = vsub.f32 1.0, %v2458
    %v2460 = vmul.f32 %v2457, %v2459
    %v2461 = vadd.f32 %v2457, %v2460
    %vm2462 = vweird.f32 %v2435
    %vm2463 = vweird.f32 %v2457
    %vm2464 = vmor %vm2462, %vm2463
    %v2465 = vsel %vm2464, %v2457, %v2461
    %v2466 = vand.u32 2147483647, %v2435
    %vm2467 = vcmp.eq.f32.partialorder %v2466, 8.507059e+37
    %v2468 = vand.u32 %v2435, 2147483648
    %v2469 = vor.u32 1.1754944e-38, %v2468
    %v2470 = vsel %vm2467, %v2469, %v2465
    %v2471 = vmul.f32 1.0, %v2470
    %v2472 = vrcp.pop %v2438
    %v2473 = vmul.f32 %v2438, %v2472
    %v2474 = vsub.f32 1.0, %v2473
    %v2475 = vmul.f32 %v2472, %v2474
    %v2476 = vadd.f32 %v2472, %v2475
    %vm2477 = vweird.f32 %v2438
    %vm2478 = vweird.f32 %v2472
    %vm2479 = vmor %vm2477, %vm2478
    %v2480 = vsel %vm2479, %v2472, %v2476
    %v2481 = vand.u32 2147483647, %v2438
    %vm2482 = vcmp.eq.f32.partialorder %v2481, 8.507059e+37
    %v2483 = vand.u32 %v2438, 2147483648
    %v2484 = vor.u32 1.1754944e-38, %v2483
    %v2485 = vsel %vm2482, %v2484, %v2480
    %v2486 = vmul.f32 1.0, %v2485
    %v2487 = vrcp.pop %v2441
    %v2488 = vmul.f32 %v2441, %v2487
    %v2489 = vsub.f32 1.0, %v2488
    %v2490 = vmul.f32 %v2487, %v2489
    %v2491 = vadd.f32 %v2487, %v2490
    %vm2492 = vweird.f32 %v2441
    %vm2493 = vweird.f32 %v2487
    %vm2494 = vmor %vm2492, %vm2493
    %v2495 = vsel %vm2494, %v2487, %v2491
    %v2496 = vand.u32 2147483647, %v2441
    %vm2497 = vcmp.eq.f32.partialorder %v2496, 8.507059e+37
    %v2498 = vand.u32 %v2441, 2147483648
    %v2499 = vor.u32 1.1754944e-38, %v2498
    %v2500 = vsel %vm2497, %v2499, %v2495
    %v2501 = vmul.f32 1.0, %v2500
    %v2502 = vrcp.pop %v2444
    %v2503 = vmul.f32 %v2444, %v2502
    %v2504 = vsub.f32 1.0, %v2503
    %v2505 = vmul.f32 %v2502, %v2504
    %v2506 = vadd.f32 %v2502, %v2505
    %vm2507 = vweird.f32 %v2444
    %vm2508 = vweird.f32 %v2502
    %vm2509 = vmor %vm2507, %vm2508
    %v2510 = vsel %vm2509, %v2502, %v2506
    %v2511 = vand.u32 2147483647, %v2444
    %vm2512 = vcmp.eq.f32.partialorder %v2511, 8.507059e+37
    %v2513 = vand.u32 %v2444, 2147483648
    %v2514 = vor.u32 1.1754944e-38, %v2513
    %v2515 = vsel %vm2512, %v2514, %v2510
    %v2516 = vmul.f32 1.0, %v2515
    %v2517 = vrcp.pop %v2447
    %v2518 = vmul.f32 %v2447, %v2517
    %v2519 = vsub.f32 1.0, %v2518
    %v2520 = vmul.f32 %v2517, %v2519
    %v2521 = vadd.f32 %v2517, %v2520
    %vm2522 = vweird.f32 %v2447
    %vm2523 = vweird.f32 %v2517
    %vm2524 = vmor %vm2522, %vm2523
    %v2525 = vsel %vm2524, %v2517, %v2521
    %v2526 = vand.u32 2147483647, %v2447
    %vm2527 = vcmp.eq.f32.partialorder %v2526, 8.507059e+37
    %v2528 = vand.u32 %v2447, 2147483648
    %v2529 = vor.u32 1.1754944e-38, %v2528
    %v2530 = vsel %vm2527, %v2529, %v2525
    %v2531 = vmul.f32 1.0, %v2530
    %v2532 = vrcp.pop %v2450
    %v2533 = vmul.f32 %v2450, %v2532
    %v2534 = vsub.f32 1.0, %v2533
    %v2535 = vmul.f32 %v2532, %v2534
    %v2536 = vadd.f32 %v2532, %v2535
    %vm2537 = vweird.f32 %v2450
    %vm2538 = vweird.f32 %v2532
    %vm2539 = vmor %vm2537, %vm2538
    %v2540 = vsel %vm2539, %v2532, %v2536
    %v2541 = vand.u32 2147483647, %v2450
    %vm2542 = vcmp.eq.f32.partialorder %v2541, 8.507059e+37
    %v2543 = vand.u32 %v2450, 2147483648
    %v2544 = vor.u32 1.1754944e-38, %v2543
    %v2545 = vsel %vm2542, %v2544, %v2540
    %v2546 = vmul.f32 1.0, %v2545
    %v2547 = vrcp.pop %v2453
    %v2548 = vmul.f32 %v2453, %v2547
    %v2549 = vsub.f32 1.0, %v2548
    %v2550 = vmul.f32 %v2547, %v2549
    %v2551 = vadd.f32 %v2547, %v2550
    %vm2552 = vweird.f32 %v2453
    %vm2553 = vweird.f32 %v2547
    %vm2554 = vmor %vm2552, %vm2553
    %v2555 = vsel %vm2554, %v2547, %v2551
    %v2556 = vand.u32 2147483647, %v2453
    %vm2557 = vcmp.eq.f32.partialorder %v2556, 8.507059e+37
    %v2558 = vand.u32 %v2453, 2147483648
    %v2559 = vor.u32 1.1754944e-38, %v2558
    %v2560 = vsel %vm2557, %v2559, %v2555
    %v2561 = vmul.f32 1.0, %v2560
    %v2562 = vrcp.pop %v2456
    %v2563 = vmul.f32 %v2456, %v2562
    %v2564 = vsub.f32 1.0, %v2563
    %v2565 = vmul.f32 %v2562, %v2564
    %v2566 = vadd.f32 %v2562, %v2565
    %vm2567 = vweird.f32 %v2456
    %vm2568 = vweird.f32 %v2562
    %vm2569 = vmor %vm2567, %vm2568
    %v2570 = vsel %vm2569, %v2562, %v2566
    %v2571 = vand.u32 2147483647, %v2456
    %vm2572 = vcmp.eq.f32.partialorder %v2571, 8.507059e+37
    %v2573 = vand.u32 %v2456, 2147483648
    %v2574 = vor.u32 1.1754944e-38, %v2573
    %v2575 = vsel %vm2572, %v2574, %v2570
    %v2576 = vmul.f32 1.0, %v2575
    %v2577 = vmul.f32 %v2418, %v2471
    %v2578 = vmul.f32 %v2420, %v2486
    %v2579 = vmul.f32 %v2422, %v2501
    %v2580 = vmul.f32 %v2424, %v2516
    %v2581 = vmul.f32 %v2426, %v2531
    %v2582 = vmul.f32 %v2428, %v2546
    %v2583 = vmul.f32 %v2430, %v2561
    %v2584 = vmul.f32 %v2432, %v2576
    %v2585 = vadd.f32 %v2256, %v2577
    %v2586 = vadd.f32 %v2257, %v2578
    %v2587 = vadd.f32 %v2258, %v2579
    %v2588 = vadd.f32 %v2259, %v2580
    %v2589 = vadd.f32 %v2260, %v2581
    %v2590 = vadd.f32 %v2261, %v2582
    %v2591 = vadd.f32 %v2262, %v2583
    %v2592 = vadd.f32 %v2263, %v2584
    %2593 = vrot.lane.b32.xlu0 %v95, 100
    %v2594 = vpop.permute.xlu0 %2593
    %2595 = vrot.lane.b32.xlu0 %v98, 100
    %v2596 = vpop.permute.xlu0 %2595
    %2597 = vrot.lane.b32.xlu0 %v101, 100
    %v2598 = vpop.permute.xlu0 %2597
    %2599 = vrot.lane.b32.xlu0 %v104, 100
    %v2600 = vpop.permute.xlu0 %2599
    %2601 = vrot.lane.b32.xlu0 %v107, 100
    %v2602 = vpop.permute.xlu0 %2601
    %2603 = vrot.lane.b32.xlu0 %v110, 100
    %v2604 = vpop.permute.xlu0 %2603
    %2605 = vrot.lane.b32.xlu0 %v113, 100
    %v2606 = vpop.permute.xlu0 %2605
    %2607 = vrot.lane.b32.xlu0 %v116, 100
    %v2608 = vpop.permute.xlu0 %2607
    %2609 = vrot.lane.b32.xlu0 %v170, 100
    %v2610 = vpop.permute.xlu0 %2609
    %2611 = vrot.lane.b32.xlu0 %v173, 100
    %v2612 = vpop.permute.xlu0 %2611
    %2613 = vrot.lane.b32.xlu0 %v176, 100
    %v2614 = vpop.permute.xlu0 %2613
    %2615 = vrot.lane.b32.xlu0 %v179, 100
    %v2616 = vpop.permute.xlu0 %2615
    %2617 = vrot.lane.b32.xlu0 %v182, 100
    %v2618 = vpop.permute.xlu0 %2617
    %2619 = vrot.lane.b32.xlu0 %v185, 100
    %v2620 = vpop.permute.xlu0 %2619
    %2621 = vrot.lane.b32.xlu0 %v188, 100
    %v2622 = vpop.permute.xlu0 %2621
    %2623 = vrot.lane.b32.xlu0 %v191, 100
    %v2624 = vpop.permute.xlu0 %2623
    %v2625 = vsel %vm304, %v2594, 0
    %v2627 = vsel %vm304, %v2596, 0
    %v2629 = vsel %vm304, %v2598, 0
    %v2631 = vsel %vm304, %v2600, 0
    %v2633 = vsel %vm304, %v2602, 0
    %v2635 = vsel %vm304, %v2604, 0
    %v2637 = vsel %vm304, %v2606, 0
    %v2639 = vsel %vm304, %v2608, 0
    %v2641 = vsel %vm304, %v2610, 0
    %v2643 = vsel %vm304, %v2612, 0
    %v2645 = vsel %vm304, %v2614, 0
    %v2647 = vsel %vm304, %v2616, 0
    %v2649 = vsel %vm304, %v2618, 0
    %v2651 = vsel %vm304, %v2620, 0
    %v2653 = vsel %vm304, %v2622, 0
    %v2655 = vsel %vm304, %v2624, 0
    %2657 = vmatpush.xpose.msra.mxu0 0.0
    %2658 = vmatpush.xpose.msra.mxu0 0.0
    %2659 = vmatpush.xpose.msra.mxu0 0.0
    %2660 = vmatpush.xpose.msra.mxu0 0.0
    %2661 = vmatpush.xpose.msra.mxu0 0.0
    %2662 = vmatpush.xpose.msra.mxu0 0.0
    %2663 = vmatpush.xpose.msra.mxu0 0.0
    %2664 = vmatpush.xpose.msra.mxu0 0.0
    %2665 = vmatpush.xpose.msra.mxu0 %v2655
    %2666 = vmatpush.xpose.msra.mxu0 %v2653
    %2667 = vmatpush.xpose.msra.mxu0 %v2651
    %2668 = vmatpush.xpose.msra.mxu0 %v2649
    %2669 = vmatpush.xpose.msra.mxu0 %v2647
    %2670 = vmatpush.xpose.msra.mxu0 %v2645
    %2671 = vmatpush.xpose.msra.mxu0 %v2643
    %2672 = vmatpush.xpose.msra.mxu0 %v2641
    %2673 = vmatmul.f32.gmra.mxu0 %v2625
    %v2674 = vpop.f32.mrf.mxu0
    %v2675 = vadd.f32 0.0, %v2674
    %2676 = vmatmul.f32.gmra.mxu0 %v2627
    %v2677 = vpop.f32.mrf.mxu0
    %v2678 = vadd.f32 0.0, %v2677
    %2679 = vmatmul.f32.gmra.mxu0 %v2629
    %v2680 = vpop.f32.mrf.mxu0
    %v2681 = vadd.f32 0.0, %v2680
    %2682 = vmatmul.f32.gmra.mxu0 %v2631
    %v2683 = vpop.f32.mrf.mxu0
    %v2684 = vadd.f32 0.0, %v2683
    %2685 = vmatmul.f32.gmra.mxu0 %v2633
    %v2686 = vpop.f32.mrf.mxu0
    %v2687 = vadd.f32 0.0, %v2686
    %2688 = vmatmul.f32.gmra.mxu0 %v2635
    %v2689 = vpop.f32.mrf.mxu0
    %v2690 = vadd.f32 0.0, %v2689
    %2691 = vmatmul.f32.gmra.mxu0 %v2637
    %v2692 = vpop.f32.mrf.mxu0
    %v2693 = vadd.f32 0.0, %v2692
    %2694 = vmatmul.f32.gmra.mxu0 %v2639
    %v2695 = vpop.f32.mrf.mxu0
    %v2696 = vadd.f32 0.0, %v2695
    %2697 = vdwg.mxu0
    %v2698 = vand.u32 2147483647, %v2675
    %v2699 = vand.u32 2147483647, %v2678
    %v2700 = vand.u32 2147483647, %v2681
    %v2701 = vand.u32 2147483647, %v2684
    %v2702 = vand.u32 2147483647, %v2687
    %v2703 = vand.u32 2147483647, %v2690
    %v2704 = vand.u32 2147483647, %v2693
    %v2705 = vand.u32 2147483647, %v2696
    %v2706 = vadd.f32 %v2698, %v296
    %v2707 = vadd.f32 %v2699, %v297
    %v2708 = vadd.f32 %v2700, %v298
    %v2709 = vadd.f32 %v2701, %v299
    %v2710 = vadd.f32 %v2702, %v300
    %v2711 = vadd.f32 %v2703, %v301
    %v2712 = vadd.f32 %v2704, %v302
    %v2713 = vadd.f32 %v2705, %v303
    %v2714 = vsel %vm410, %v2706, -inf
    %2715 = vmax.xlane.f32.xlu0 %v2714
    %v2716 = vpop.xlane.xlu0 %2715
    %v2717 = vsel %vm410, %v2707, -inf
    %2718 = vmax.xlane.f32.xlu0 %v2717
    %v2719 = vpop.xlane.xlu0 %2718
    %v2720 = vsel %vm410, %v2708, -inf
    %2721 = vmax.xlane.f32.xlu0 %v2720
    %v2722 = vpop.xlane.xlu0 %2721
    %v2723 = vsel %vm410, %v2709, -inf
    %2724 = vmax.xlane.f32.xlu0 %v2723
    %v2725 = vpop.xlane.xlu0 %2724
    %v2726 = vsel %vm410, %v2710, -inf
    %2727 = vmax.xlane.f32.xlu0 %v2726
    %v2728 = vpop.xlane.xlu0 %2727
    %v2729 = vsel %vm410, %v2711, -inf
    %2730 = vmax.xlane.f32.xlu0 %v2729
    %v2731 = vpop.xlane.xlu0 %2730
    %v2732 = vsel %vm410, %v2712, -inf
    %2733 = vmax.xlane.f32.xlu0 %v2732
    %v2734 = vpop.xlane.xlu0 %2733
    %v2735 = vsel %vm410, %v2713, -inf
    %2736 = vmax.xlane.f32.xlu0 %v2735
    %v2737 = vpop.xlane.xlu0 %2736
    %v2738 = vsub.f32 %v2706, %v2716
    %v2739 = vsub.f32 %v2707, %v2719
    %v2740 = vsub.f32 %v2708, %v2722
    %v2741 = vsub.f32 %v2709, %v2725
    %v2742 = vsub.f32 %v2710, %v2728
    %v2743 = vsub.f32 %v2711, %v2731
    %v2744 = vsub.f32 %v2712, %v2734
    %v2745 = vsub.f32 %v2713, %v2737
    %v2746 = vmul.f32 %v2738, 1.442695
    %v2747 = vpow.pop %v2746
    %v2748 = vmul.f32 %v2739, 1.442695
    %v2749 = vpow.pop %v2748
    %v2750 = vmul.f32 %v2740, 1.442695
    %v2751 = vpow.pop %v2750
    %v2752 = vmul.f32 %v2741, 1.442695
    %v2753 = vpow.pop %v2752
    %v2754 = vmul.f32 %v2742, 1.442695
    %v2755 = vpow.pop %v2754
    %v2756 = vmul.f32 %v2743, 1.442695
    %v2757 = vpow.pop %v2756
    %v2758 = vmul.f32 %v2744, 1.442695
    %v2759 = vpow.pop %v2758
    %v2760 = vmul.f32 %v2745, 1.442695
    %v2761 = vpow.pop %v2760
    %v2762 = vsel %vm410, %v2747, 0.0
    %2763 = vadd.xlane.f32.xlu0 %v2762
    %v2764 = vpop.xlane.xlu0 %2763
    %v2765 = vsel %vm410, %v2749, 0.0
    %2766 = vadd.xlane.f32.xlu0 %v2765
    %v2767 = vpop.xlane.xlu0 %2766
    %v2768 = vsel %vm410, %v2751, 0.0
    %2769 = vadd.xlane.f32.xlu0 %v2768
    %v2770 = vpop.xlane.xlu0 %2769
    %v2771 = vsel %vm410, %v2753, 0.0
    %2772 = vadd.xlane.f32.xlu0 %v2771
    %v2773 = vpop.xlane.xlu0 %2772
    %v2774 = vsel %vm410, %v2755, 0.0
    %2775 = vadd.xlane.f32.xlu0 %v2774
    %v2776 = vpop.xlane.xlu0 %2775
    %v2777 = vsel %vm410, %v2757, 0.0
    %2778 = vadd.xlane.f32.xlu0 %v2777
    %v2779 = vpop.xlane.xlu0 %2778
    %v2780 = vsel %vm410, %v2759, 0.0
    %2781 = vadd.xlane.f32.xlu0 %v2780
    %v2782 = vpop.xlane.xlu0 %2781
    %v2783 = vsel %vm410, %v2761, 0.0
    %2784 = vadd.xlane.f32.xlu0 %v2783
    %v2785 = vpop.xlane.xlu0 %2784
    %v2786 = vrcp.pop %v2764
    %v2787 = vmul.f32 %v2764, %v2786
    %v2788 = vsub.f32 1.0, %v2787
    %v2789 = vmul.f32 %v2786, %v2788
    %v2790 = vadd.f32 %v2786, %v2789
    %vm2791 = vweird.f32 %v2764
    %vm2792 = vweird.f32 %v2786
    %vm2793 = vmor %vm2791, %vm2792
    %v2794 = vsel %vm2793, %v2786, %v2790
    %v2795 = vand.u32 2147483647, %v2764
    %vm2796 = vcmp.eq.f32.partialorder %v2795, 8.507059e+37
    %v2797 = vand.u32 %v2764, 2147483648
    %v2798 = vor.u32 1.1754944e-38, %v2797
    %v2799 = vsel %vm2796, %v2798, %v2794
    %v2800 = vmul.f32 1.0, %v2799
    %v2801 = vrcp.pop %v2767
    %v2802 = vmul.f32 %v2767, %v2801
    %v2803 = vsub.f32 1.0, %v2802
    %v2804 = vmul.f32 %v2801, %v2803
    %v2805 = vadd.f32 %v2801, %v2804
    %vm2806 = vweird.f32 %v2767
    %vm2807 = vweird.f32 %v2801
    %vm2808 = vmor %vm2806, %vm2807
    %v2809 = vsel %vm2808, %v2801, %v2805
    %v2810 = vand.u32 2147483647, %v2767
    %vm2811 = vcmp.eq.f32.partialorder %v2810, 8.507059e+37
    %v2812 = vand.u32 %v2767, 2147483648
    %v2813 = vor.u32 1.1754944e-38, %v2812
    %v2814 = vsel %vm2811, %v2813, %v2809
    %v2815 = vmul.f32 1.0, %v2814
    %v2816 = vrcp.pop %v2770
    %v2817 = vmul.f32 %v2770, %v2816
    %v2818 = vsub.f32 1.0, %v2817
    %v2819 = vmul.f32 %v2816, %v2818
    %v2820 = vadd.f32 %v2816, %v2819
    %vm2821 = vweird.f32 %v2770
    %vm2822 = vweird.f32 %v2816
    %vm2823 = vmor %vm2821, %vm2822
    %v2824 = vsel %vm2823, %v2816, %v2820
    %v2825 = vand.u32 2147483647, %v2770
    %vm2826 = vcmp.eq.f32.partialorder %v2825, 8.507059e+37
    %v2827 = vand.u32 %v2770, 2147483648
    %v2828 = vor.u32 1.1754944e-38, %v2827
    %v2829 = vsel %vm2826, %v2828, %v2824
    %v2830 = vmul.f32 1.0, %v2829
    %v2831 = vrcp.pop %v2773
    %v2832 = vmul.f32 %v2773, %v2831
    %v2833 = vsub.f32 1.0, %v2832
    %v2834 = vmul.f32 %v2831, %v2833
    %v2835 = vadd.f32 %v2831, %v2834
    %vm2836 = vweird.f32 %v2773
    %vm2837 = vweird.f32 %v2831
    %vm2838 = vmor %vm2836, %vm2837
    %v2839 = vsel %vm2838, %v2831, %v2835
    %v2840 = vand.u32 2147483647, %v2773
    %vm2841 = vcmp.eq.f32.partialorder %v2840, 8.507059e+37
    %v2842 = vand.u32 %v2773, 2147483648
    %v2843 = vor.u32 1.1754944e-38, %v2842
    %v2844 = vsel %vm2841, %v2843, %v2839
    %v2845 = vmul.f32 1.0, %v2844
    %v2846 = vrcp.pop %v2776
    %v2847 = vmul.f32 %v2776, %v2846
    %v2848 = vsub.f32 1.0, %v2847
    %v2849 = vmul.f32 %v2846, %v2848
    %v2850 = vadd.f32 %v2846, %v2849
    %vm2851 = vweird.f32 %v2776
    %vm2852 = vweird.f32 %v2846
    %vm2853 = vmor %vm2851, %vm2852
    %v2854 = vsel %vm2853, %v2846, %v2850
    %v2855 = vand.u32 2147483647, %v2776
    %vm2856 = vcmp.eq.f32.partialorder %v2855, 8.507059e+37
    %v2857 = vand.u32 %v2776, 2147483648
    %v2858 = vor.u32 1.1754944e-38, %v2857
    %v2859 = vsel %vm2856, %v2858, %v2854
    %v2860 = vmul.f32 1.0, %v2859
    %v2861 = vrcp.pop %v2779
    %v2862 = vmul.f32 %v2779, %v2861
    %v2863 = vsub.f32 1.0, %v2862
    %v2864 = vmul.f32 %v2861, %v2863
    %v2865 = vadd.f32 %v2861, %v2864
    %vm2866 = vweird.f32 %v2779
    %vm2867 = vweird.f32 %v2861
    %vm2868 = vmor %vm2866, %vm2867
    %v2869 = vsel %vm2868, %v2861, %v2865
    %v2870 = vand.u32 2147483647, %v2779
    %vm2871 = vcmp.eq.f32.partialorder %v2870, 8.507059e+37
    %v2872 = vand.u32 %v2779, 2147483648
    %v2873 = vor.u32 1.1754944e-38, %v2872
    %v2874 = vsel %vm2871, %v2873, %v2869
    %v2875 = vmul.f32 1.0, %v2874
    %v2876 = vrcp.pop %v2782
    %v2877 = vmul.f32 %v2782, %v2876
    %v2878 = vsub.f32 1.0, %v2877
    %v2879 = vmul.f32 %v2876, %v2878
    %v2880 = vadd.f32 %v2876, %v2879
    %vm2881 = vweird.f32 %v2782
    %vm2882 = vweird.f32 %v2876
    %vm2883 = vmor %vm2881, %vm2882
    %v2884 = vsel %vm2883, %v2876, %v2880
    %v2885 = vand.u32 2147483647, %v2782
    %vm2886 = vcmp.eq.f32.partialorder %v2885, 8.507059e+37
    %v2887 = vand.u32 %v2782, 2147483648
    %v2888 = vor.u32 1.1754944e-38, %v2887
    %v2889 = vsel %vm2886, %v2888, %v2884
    %v2890 = vmul.f32 1.0, %v2889
    %v2891 = vrcp.pop %v2785
    %v2892 = vmul.f32 %v2785, %v2891
    %v2893 = vsub.f32 1.0, %v2892
    %v2894 = vmul.f32 %v2891, %v2893
    %v2895 = vadd.f32 %v2891, %v2894
    %vm2896 = vweird.f32 %v2785
    %vm2897 = vweird.f32 %v2891
    %vm2898 = vmor %vm2896, %vm2897
    %v2899 = vsel %vm2898, %v2891, %v2895
    %v2900 = vand.u32 2147483647, %v2785
    %vm2901 = vcmp.eq.f32.partialorder %v2900, 8.507059e+37
    %v2902 = vand.u32 %v2785, 2147483648
    %v2903 = vor.u32 1.1754944e-38, %v2902
    %v2904 = vsel %vm2901, %v2903, %v2899
    %v2905 = vmul.f32 1.0, %v2904
    %v2906 = vmul.f32 %v2747, %v2800
    %v2907 = vmul.f32 %v2749, %v2815
    %v2908 = vmul.f32 %v2751, %v2830
    %v2909 = vmul.f32 %v2753, %v2845
    %v2910 = vmul.f32 %v2755, %v2860
    %v2911 = vmul.f32 %v2757, %v2875
    %v2912 = vmul.f32 %v2759, %v2890
    %v2913 = vmul.f32 %v2761, %v2905
    %v2914 = vadd.f32 %v2585, %v2906
    %v2915 = vadd.f32 %v2586, %v2907
    %v2916 = vadd.f32 %v2587, %v2908
    %v2917 = vadd.f32 %v2588, %v2909
    %v2918 = vadd.f32 %v2589, %v2910
    %v2919 = vadd.f32 %v2590, %v2911
    %v2920 = vadd.f32 %v2591, %v2912
    %v2921 = vadd.f32 %v2592, %v2913
    %v2923 = vsel %vm410, %v2914, 0
    %v2926 = vsel %vm410, %v2915, 0
    %v2929 = vsel %vm410, %v2916, 0
    %v2932 = vsel %vm410, %v2917, 0
    %v2935 = vsel %vm410, %v2918, 0
    %v2938 = vsel %vm410, %v2919, 0
    %v2941 = vsel %vm410, %v2920, 0
    %v2944 = vsel %vm410, %v2921, 0
    %2946 = vmatpush.msra.mxu0 0.0
    %2947 = vmatpush.msra.mxu0 0.0
    %2948 = vmatpush.msra.mxu0 0.0
    %2949 = vmatpush.msra.mxu0 0.0
    %2950 = vmatpush.msra.mxu0 0.0
    %2951 = vmatpush.msra.mxu0 0.0
    %2952 = vmatpush.msra.mxu0 0.0
    %2953 = vmatpush.msra.mxu0 0.0
    %2954 = vmatpush.msra.mxu0 %v266
    %2955 = vmatpush.msra.mxu0 %v263
    %2956 = vmatpush.msra.mxu0 %v260
    %2957 = vmatpush.msra.mxu0 %v257
    %2958 = vmatpush.msra.mxu0 %v254
    %2959 = vmatpush.msra.mxu0 %v251
    %2960 = vmatpush.msra.mxu0 %v248
    %2961 = vmatpush.msra.mxu0 %v245
    %2962 = vmatmul.f32.gmra.mxu0 %v2923
    %v2963 = vpop.f32.mrf.mxu0
    %v2964 = vadd.f32 0.0, %v2963
    %2965 = vmatmul.f32.gmra.mxu0 %v2926
    %v2966 = vpop.f32.mrf.mxu0
    %v2967 = vadd.f32 0.0, %v2966
    %2968 = vmatmul.f32.gmra.mxu0 %v2929
    %v2969 = vpop.f32.mrf.mxu0
    %v2970 = vadd.f32 0.0, %v2969
    %2971 = vmatmul.f32.gmra.mxu0 %v2932
    %v2972 = vpop.f32.mrf.mxu0
    %v2973 = vadd.f32 0.0, %v2972
    %2974 = vmatmul.f32.gmra.mxu0 %v2935
    %v2975 = vpop.f32.mrf.mxu0
    %v2976 = vadd.f32 0.0, %v2975
    %2977 = vmatmul.f32.gmra.mxu0 %v2938
    %v2978 = vpop.f32.mrf.mxu0
    %v2979 = vadd.f32 0.0, %v2978
    %2980 = vmatmul.f32.gmra.mxu0 %v2941
    %v2981 = vpop.f32.mrf.mxu0
    %v2982 = vadd.f32 0.0, %v2981
    %2983 = vmatmul.f32.gmra.mxu0 %v2944
    %v2984 = vpop.f32.mrf.mxu0
    %v2985 = vadd.f32 0.0, %v2984
    %2986 = vdwg.mxu0
    %2987 = vxpose.xlu0.b32.start [1/16] %v2964, 128
    %2988 = vxpose.xlu0.b32.cont [2/16] 0.0, 128
    %2989 = vxpose.xlu0.b32.cont [3/16] 0.0, 128
    %2990 = vxpose.xlu0.b32.cont [4/16] 0.0, 128
    %2991 = vxpose.xlu0.b32.cont [5/16] 0.0, 128
    %2992 = vxpose.xlu0.b32.cont [6/16] 0.0, 128
    %2993 = vxpose.xlu0.b32.cont [7/16] 0.0, 128
    %2994 = vxpose.xlu0.b32.cont [8/16] 0.0, 128
    %2995 = vxpose.xlu0.b32.cont [9/16] 0.0, 128
    %2996 = vxpose.xlu0.b32.cont [10/16] 0.0, 128
    %2997 = vxpose.xlu0.b32.cont [11/16] 0.0, 128
    %2998 = vxpose.xlu0.b32.cont [12/16] 0.0, 128
    %2999 = vxpose.xlu0.b32.cont [13/16] 0.0, 128
    %3000 = vxpose.xlu0.b32.cont [14/16] 0.0, 128
    %3001 = vxpose.xlu0.b32.cont [15/16] 0.0, 128
    %3002 = vxpose.xlu0.b32.end [16/16] 0.0, 128
    %v3003 = vpop.trf.xlu0
    %v3004 = vpop.trf.xlu0
    %v3005 = vpop.trf.xlu0
    %v3006 = vpop.trf.xlu0
    %v3007 = vpop.trf.xlu0
    %v3008 = vpop.trf.xlu0
    %v3009 = vpop.trf.xlu0
    %v3010 = vpop.trf.xlu0
    %v3011 = vpop.trf.xlu0
    %v3012 = vpop.trf.xlu0
    %v3013 = vpop.trf.xlu0
    %v3014 = vpop.trf.xlu0
    %v3015 = vpop.trf.xlu0
    %v3016 = vpop.trf.xlu0
    %v3017 = vpop.trf.xlu0
    %v3018 = vpop.trf.xlu0
    %3019 = vxpose.xlu0.b32.start [1/16] %v2967, 128
    %3020 = vxpose.xlu0.b32.cont [2/16] 0.0, 128
    %3021 = vxpose.xlu0.b32.cont [3/16] 0.0, 128
    %3022 = vxpose.xlu0.b32.cont [4/16] 0.0, 128
    %3023 = vxpose.xlu0.b32.cont [5/16] 0.0, 128
    %3024 = vxpose.xlu0.b32.cont [6/16] 0.0, 128
    %3025 = vxpose.xlu0.b32.cont [7/16] 0.0, 128
    %3026 = vxpose.xlu0.b32.cont [8/16] 0.0, 128
    %3027 = vxpose.xlu0.b32.cont [9/16] 0.0, 128
    %3028 = vxpose.xlu0.b32.cont [10/16] 0.0, 128
    %3029 = vxpose.xlu0.b32.cont [11/16] 0.0, 128
    %3030 = vxpose.xlu0.b32.cont [12/16] 0.0, 128
    %3031 = vxpose.xlu0.b32.cont [13/16] 0.0, 128
    %3032 = vxpose.xlu0.b32.cont [14/16] 0.0, 128
    %3033 = vxpose.xlu0.b32.cont [15/16] 0.0, 128
    %3034 = vxpose.xlu0.b32.end [16/16] 0.0, 128
    %v3035 = vpop.trf.xlu0
    %v3036 = vpop.trf.xlu0
    %v3037 = vpop.trf.xlu0
    %v3038 = vpop.trf.xlu0
    %v3039 = vpop.trf.xlu0
    %v3040 = vpop.trf.xlu0
    %v3041 = vpop.trf.xlu0
    %v3042 = vpop.trf.xlu0
    %v3043 = vpop.trf.xlu0
    %v3044 = vpop.trf.xlu0
    %v3045 = vpop.trf.xlu0
    %v3046 = vpop.trf.xlu0
    %v3047 = vpop.trf.xlu0
    %v3048 = vpop.trf.xlu0
    %v3049 = vpop.trf.xlu0
    %v3050 = vpop.trf.xlu0
    %3051 = vxpose.xlu0.b32.start [1/16] %v2970, 128
    %3052 = vxpose.xlu0.b32.cont [2/16] 0.0, 128
    %3053 = vxpose.xlu0.b32.cont [3/16] 0.0, 128
    %3054 = vxpose.xlu0.b32.cont [4/16] 0.0, 128
    %3055 = vxpose.xlu0.b32.cont [5/16] 0.0, 128
    %3056 = vxpose.xlu0.b32.cont [6/16] 0.0, 128
    %3057 = vxpose.xlu0.b32.cont [7/16] 0.0, 128
    %3058 = vxpose.xlu0.b32.cont [8/16] 0.0, 128
    %3059 = vxpose.xlu0.b32.cont [9/16] 0.0, 128
    %3060 = vxpose.xlu0.b32.cont [10/16] 0.0, 128
    %3061 = vxpose.xlu0.b32.cont [11/16] 0.0, 128
    %3062 = vxpose.xlu0.b32.cont [12/16] 0.0, 128
    %3063 = vxpose.xlu0.b32.cont [13/16] 0.0, 128
    %3064 = vxpose.xlu0.b32.cont [14/16] 0.0, 128
    %3065 = vxpose.xlu0.b32.cont [15/16] 0.0, 128
    %3066 = vxpose.xlu0.b32.end [16/16] 0.0, 128
    %v3067 = vpop.trf.xlu0
    %v3068 = vpop.trf.xlu0
    %v3069 = vpop.trf.xlu0
    %v3070 = vpop.trf.xlu0
    %v3071 = vpop.trf.xlu0
    %v3072 = vpop.trf.xlu0
    %v3073 = vpop.trf.xlu0
    %v3074 = vpop.trf.xlu0
    %v3075 = vpop.trf.xlu0
    %v3076 = vpop.trf.xlu0
    %v3077 = vpop.trf.xlu0
    %v3078 = vpop.trf.xlu0
    %v3079 = vpop.trf.xlu0
    %v3080 = vpop.trf.xlu0
    %v3081 = vpop.trf.xlu0
    %v3082 = vpop.trf.xlu0
    %3083 = vxpose.xlu0.b32.start [1/16] %v2973, 128
    %3084 = vxpose.xlu0.b32.cont [2/16] 0.0, 128
    %3085 = vxpose.xlu0.b32.cont [3/16] 0.0, 128
    %3086 = vxpose.xlu0.b32.cont [4/16] 0.0, 128
    %3087 = vxpose.xlu0.b32.cont [5/16] 0.0, 128
    %3088 = vxpose.xlu0.b32.cont [6/16] 0.0, 128
    %3089 = vxpose.xlu0.b32.cont [7/16] 0.0, 128
    %3090 = vxpose.xlu0.b32.cont [8/16] 0.0, 128
    %3091 = vxpose.xlu0.b32.cont [9/16] 0.0, 128
    %3092 = vxpose.xlu0.b32.cont [10/16] 0.0, 128
    %3093 = vxpose.xlu0.b32.cont [11/16] 0.0, 128
    %3094 = vxpose.xlu0.b32.cont [12/16] 0.0, 128
    %3095 = vxpose.xlu0.b32.cont [13/16] 0.0, 128
    %3096 = vxpose.xlu0.b32.cont [14/16] 0.0, 128
    %3097 = vxpose.xlu0.b32.cont [15/16] 0.0, 128
    %3098 = vxpose.xlu0.b32.end [16/16] 0.0, 128
    %v3099 = vpop.trf.xlu0
    %v3100 = vpop.trf.xlu0
    %v3101 = vpop.trf.xlu0
    %v3102 = vpop.trf.xlu0
    %v3103 = vpop.trf.xlu0
    %v3104 = vpop.trf.xlu0
    %v3105 = vpop.trf.xlu0
    %v3106 = vpop.trf.xlu0
    %v3107 = vpop.trf.xlu0
    %v3108 = vpop.trf.xlu0
    %v3109 = vpop.trf.xlu0
    %v3110 = vpop.trf.xlu0
    %v3111 = vpop.trf.xlu0
    %v3112 = vpop.trf.xlu0
    %v3113 = vpop.trf.xlu0
    %v3114 = vpop.trf.xlu0
    %3115 = vxpose.xlu0.b32.start [1/16] %v2976, 128
    %3116 = vxpose.xlu0.b32.cont [2/16] 0.0, 128
    %3117 = vxpose.xlu0.b32.cont [3/16] 0.0, 128
    %3118 = vxpose.xlu0.b32.cont [4/16] 0.0, 128
    %3119 = vxpose.xlu0.b32.cont [5/16] 0.0, 128
    %3120 = vxpose.xlu0.b32.cont [6/16] 0.0, 128
    %3121 = vxpose.xlu0.b32.cont [7/16] 0.0, 128
    %3122 = vxpose.xlu0.b32.cont [8/16] 0.0, 128
    %3123 = vxpose.xlu0.b32.cont [9/16] 0.0, 128
    %3124 = vxpose.xlu0.b32.cont [10/16] 0.0, 128
    %3125 = vxpose.xlu0.b32.cont [11/16] 0.0, 128
    %3126 = vxpose.xlu0.b32.cont [12/16] 0.0, 128
    %3127 = vxpose.xlu0.b32.cont [13/16] 0.0, 128
    %3128 = vxpose.xlu0.b32.cont [14/16] 0.0, 128
    %3129 = vxpose.xlu0.b32.cont [15/16] 0.0, 128
    %3130 = vxpose.xlu0.b32.end [16/16] 0.0, 128
    %v3131 = vpop.trf.xlu0
    %v3132 = vpop.trf.xlu0
    %v3133 = vpop.trf.xlu0
    %v3134 = vpop.trf.xlu0
    %v3135 = vpop.trf.xlu0
    %v3136 = vpop.trf.xlu0
    %v3137 = vpop.trf.xlu0
    %v3138 = vpop.trf.xlu0
    %v3139 = vpop.trf.xlu0
    %v3140 = vpop.trf.xlu0
    %v3141 = vpop.trf.xlu0
    %v3142 = vpop.trf.xlu0
    %v3143 = vpop.trf.xlu0
    %v3144 = vpop.trf.xlu0
    %v3145 = vpop.trf.xlu0
    %v3146 = vpop.trf.xlu0
    %3147 = vxpose.xlu0.b32.start [1/16] %v2979, 128
    %3148 = vxpose.xlu0.b32.cont [2/16] 0.0, 128
    %3149 = vxpose.xlu0.b32.cont [3/16] 0.0, 128
    %3150 = vxpose.xlu0.b32.cont [4/16] 0.0, 128
    %3151 = vxpose.xlu0.b32.cont [5/16] 0.0, 128
    %3152 = vxpose.xlu0.b32.cont [6/16] 0.0, 128
    %3153 = vxpose.xlu0.b32.cont [7/16] 0.0, 128
    %3154 = vxpose.xlu0.b32.cont [8/16] 0.0, 128
    %3155 = vxpose.xlu0.b32.cont [9/16] 0.0, 128
    %3156 = vxpose.xlu0.b32.cont [10/16] 0.0, 128
    %3157 = vxpose.xlu0.b32.cont [11/16] 0.0, 128
    %3158 = vxpose.xlu0.b32.cont [12/16] 0.0, 128
    %3159 = vxpose.xlu0.b32.cont [13/16] 0.0, 128
    %3160 = vxpose.xlu0.b32.cont [14/16] 0.0, 128
    %3161 = vxpose.xlu0.b32.cont [15/16] 0.0, 128
    %3162 = vxpose.xlu0.b32.end [16/16] 0.0, 128
    %v3163 = vpop.trf.xlu0
    %v3164 = vpop.trf.xlu0
    %v3165 = vpop.trf.xlu0
    %v3166 = vpop.trf.xlu0
    %v3167 = vpop.trf.xlu0
    %v3168 = vpop.trf.xlu0
    %v3169 = vpop.trf.xlu0
    %v3170 = vpop.trf.xlu0
    %v3171 = vpop.trf.xlu0
    %v3172 = vpop.trf.xlu0
    %v3173 = vpop.trf.xlu0
    %v3174 = vpop.trf.xlu0
    %v3175 = vpop.trf.xlu0
    %v3176 = vpop.trf.xlu0
    %v3177 = vpop.trf.xlu0
    %v3178 = vpop.trf.xlu0
    %3179 = vxpose.xlu0.b32.start [1/16] %v2982, 128
    %3180 = vxpose.xlu0.b32.cont [2/16] 0.0, 128
    %3181 = vxpose.xlu0.b32.cont [3/16] 0.0, 128
    %3182 = vxpose.xlu0.b32.cont [4/16] 0.0, 128
    %3183 = vxpose.xlu0.b32.cont [5/16] 0.0, 128
    %3184 = vxpose.xlu0.b32.cont [6/16] 0.0, 128
    %3185 = vxpose.xlu0.b32.cont [7/16] 0.0, 128
    %3186 = vxpose.xlu0.b32.cont [8/16] 0.0, 128
    %3187 = vxpose.xlu0.b32.cont [9/16] 0.0, 128
    %3188 = vxpose.xlu0.b32.cont [10/16] 0.0, 128
    %3189 = vxpose.xlu0.b32.cont [11/16] 0.0, 128
    %3190 = vxpose.xlu0.b32.cont [12/16] 0.0, 128
    %3191 = vxpose.xlu0.b32.cont [13/16] 0.0, 128
    %3192 = vxpose.xlu0.b32.cont [14/16] 0.0, 128
    %3193 = vxpose.xlu0.b32.cont [15/16] 0.0, 128
    %3194 = vxpose.xlu0.b32.end [16/16] 0.0, 128
    %v3195 = vpop.trf.xlu0
    %v3196 = vpop.trf.xlu0
    %v3197 = vpop.trf.xlu0
    %v3198 = vpop.trf.xlu0
    %v3199 = vpop.trf.xlu0
    %v3200 = vpop.trf.xlu0
    %v3201 = vpop.trf.xlu0
    %v3202 = vpop.trf.xlu0
    %v3203 = vpop.trf.xlu0
    %v3204 = vpop.trf.xlu0
    %v3205 = vpop.trf.xlu0
    %v3206 = vpop.trf.xlu0
    %v3207 = vpop.trf.xlu0
    %v3208 = vpop.trf.xlu0
    %v3209 = vpop.trf.xlu0
    %v3210 = vpop.trf.xlu0
    %3211 = vxpose.xlu0.b32.start [1/16] %v2985, 128
    %3212 = vxpose.xlu0.b32.cont [2/16] 0.0, 128
    %3213 = vxpose.xlu0.b32.cont [3/16] 0.0, 128
    %3214 = vxpose.xlu0.b32.cont [4/16] 0.0, 128
    %3215 = vxpose.xlu0.b32.cont [5/16] 0.0, 128
    %3216 = vxpose.xlu0.b32.cont [6/16] 0.0, 128
    %3217 = vxpose.xlu0.b32.cont [7/16] 0.0, 128
    %3218 = vxpose.xlu0.b32.cont [8/16] 0.0, 128
    %3219 = vxpose.xlu0.b32.cont [9/16] 0.0, 128
    %3220 = vxpose.xlu0.b32.cont [10/16] 0.0, 128
    %3221 = vxpose.xlu0.b32.cont [11/16] 0.0, 128
    %3222 = vxpose.xlu0.b32.cont [12/16] 0.0, 128
    %3223 = vxpose.xlu0.b32.cont [13/16] 0.0, 128
    %3224 = vxpose.xlu0.b32.cont [14/16] 0.0, 128
    %3225 = vxpose.xlu0.b32.cont [15/16] 0.0, 128
    %3226 = vxpose.xlu0.b32.end [16/16] 0.0, 128
    %v3227 = vpop.trf.xlu0
    %v3228 = vpop.trf.xlu0
    %v3229 = vpop.trf.xlu0
    %v3230 = vpop.trf.xlu0
    %v3231 = vpop.trf.xlu0
    %v3232 = vpop.trf.xlu0
    %v3233 = vpop.trf.xlu0
    %v3234 = vpop.trf.xlu0
    %v3235 = vpop.trf.xlu0
    %v3236 = vpop.trf.xlu0
    %v3237 = vpop.trf.xlu0
    %v3238 = vpop.trf.xlu0
    %v3239 = vpop.trf.xlu0
    %v3240 = vpop.trf.xlu0
    %v3241 = vpop.trf.xlu0
    %v3242 = vpop.trf.xlu0
    %v3243 = vand.u32 %v278, 7
    %vm3244 = vcmp.eq.s32.totalorder %v3243, %v269
    %v3245 = vsel %vm3244, 1, 0
    %v3246 = vcvt.s32.f32 %v3245
    %vm3247 = vcmask 64512
    %v3249 = vsel %vm3247, %v3003, 0
    %v3252 = vsel %vm3247, %v3035, 0
    %v3255 = vsel %vm3247, %v3067, 0
    %v3258 = vsel %vm3247, %v3099, 0
    %v3261 = vsel %vm3247, %v3131, 0
    %v3264 = vsel %vm3247, %v3163, 0
    %v3267 = vsel %vm3247, %v3195, 0
    %v3270 = vsel %vm3247, %v3227, 0
    %3272 = vmatpush.msra.mxu0 0.0
    %3273 = vmatpush.msra.mxu0 0.0
    %3274 = vmatpush.msra.mxu0 0.0
    %3275 = vmatpush.msra.mxu0 0.0
    %3276 = vmatpush.msra.mxu0 0.0
    %3277 = vmatpush.msra.mxu0 0.0
    %3278 = vmatpush.msra.mxu0 0.0
    %3279 = vmatpush.msra.mxu0 0.0
    %3280 = vmatpush.msra.mxu0 0.0
    %3281 = vmatpush.msra.mxu0 0.0
    %3282 = vmatpush.msra.mxu0 0.0
    %3283 = vmatpush.msra.mxu0 0.0
    %3284 = vmatpush.msra.mxu0 0.0
    %3285 = vmatpush.msra.mxu0 0.0
    %3286 = vmatpush.msra.mxu0 0.0
    %3287 = vmatpush.msra.mxu0 %v3246
    %3288 = vmatmul.f32.gmra.mxu0 %v3249
    %v3289 = vpop.f32.mrf.mxu0
    %v3290 = vadd.f32 0.0, %v3289
    %3291 = vmatmul.f32.gmra.mxu0 %v3252
    %v3292 = vpop.f32.mrf.mxu0
    %v3293 = vadd.f32 0.0, %v3292
    %3294 = vmatmul.f32.gmra.mxu0 %v3255
    %v3295 = vpop.f32.mrf.mxu0
    %v3296 = vadd.f32 0.0, %v3295
    %3297 = vmatmul.f32.gmra.mxu0 %v3258
    %v3298 = vpop.f32.mrf.mxu0
    %v3299 = vadd.f32 0.0, %v3298
    %3300 = vmatmul.f32.gmra.mxu0 %v3261
    %v3301 = vpop.f32.mrf.mxu0
    %v3302 = vadd.f32 0.0, %v3301
    %3303 = vmatmul.f32.gmra.mxu0 %v3264
    %v3304 = vpop.f32.mrf.mxu0
    %v3305 = vadd.f32 0.0, %v3304
    %3306 = vmatmul.f32.gmra.mxu0 %v3267
    %v3307 = vpop.f32.mrf.mxu0
    %v3308 = vadd.f32 0.0, %v3307
    %3309 = vmatmul.f32.gmra.mxu0 %v3270
    %v3310 = vpop.f32.mrf.mxu0
    %v3311 = vadd.f32 0.0, %v3310
    %3312 = vdwg.mxu0
    %v3313 = vld [vmem:[%s3] sm:$0xff]
    %v3314 = vld [vmem:[%s3 + $0x8] sm:$0xff]
    %v3315 = vld [vmem:[%s3 + $0x10] sm:$0xff]
    %v3316 = vld [vmem:[%s3 + $0x18] sm:$0xff]
    %v3317 = vld [vmem:[%s3 + $0x20] sm:$0xff]
    %v3318 = vld [vmem:[%s3 + $0x28] sm:$0xff]
    %v3319 = vld [vmem:[%s3 + $0x30] sm:$0xff]
    %v3320 = vld [vmem:[%s3 + $0x38] sm:$0xff]
    %v3321 = vmul.f32 %v3290, %v3313
    %v3322 = vmul.f32 %v3293, %v3314
    %v3323 = vmul.f32 %v3296, %v3315
    %v3324 = vmul.f32 %v3299, %v3316
    %v3325 = vmul.f32 %v3302, %v3317
    %v3326 = vmul.f32 %v3305, %v3318
    %v3327 = vmul.f32 %v3308, %v3319
    %v3328 = vmul.f32 %v3311, %v3320
    %v3329 = vadd.f32 %v3321, 0.0
    %v3330 = vadd.f32 %v3322, 0.0
    %v3331 = vadd.f32 %v3323, 0.0
    %v3332 = vadd.f32 %v3324, 0.0
    %v3333 = vadd.f32 %v3325, 0.0
    %v3334 = vadd.f32 %v3326, 0.0
    %v3335 = vadd.f32 %v3327, 0.0
    %v3336 = vadd.f32 %v3328, 0.0
    %v3338 = vsel %vm3247, %v3004, 0
    %v3341 = vsel %vm3247, %v3036, 0
    %v3344 = vsel %vm3247, %v3068, 0
    %v3347 = vsel %vm3247, %v3100, 0
    %v3350 = vsel %vm3247, %v3132, 0
    %v3353 = vsel %vm3247, %v3164, 0
    %v3356 = vsel %vm3247, %v3196, 0
    %v3359 = vsel %vm3247, %v3228, 0
    %3361 = vmatpush.msra.mxu0 0.0
    %3362 = vmatpush.msra.mxu0 0.0
    %3363 = vmatpush.msra.mxu0 0.0
    %3364 = vmatpush.msra.mxu0 0.0
    %3365 = vmatpush.msra.mxu0 0.0
    %3366 = vmatpush.msra.mxu0 0.0
    %3367 = vmatpush.msra.mxu0 0.0
    %3368 = vmatpush.msra.mxu0 0.0
    %3369 = vmatpush.msra.mxu0 0.0
    %3370 = vmatpush.msra.mxu0 0.0
    %3371 = vmatpush.msra.mxu0 0.0
    %3372 = vmatpush.msra.mxu0 0.0
    %3373 = vmatpush.msra.mxu0 0.0
    %3374 = vmatpush.msra.mxu0 0.0
    %3375 = vmatpush.msra.mxu0 0.0
    %3376 = vmatpush.msra.mxu0 %v3246
    %3377 = vmatmul.f32.gmra.mxu0 %v3338
    %v3378 = vpop.f32.mrf.mxu0
    %v3379 = vadd.f32 0.0, %v3378
    %3380 = vmatmul.f32.gmra.mxu0 %v3341
    %v3381 = vpop.f32.mrf.mxu0
    %v3382 = vadd.f32 0.0, %v3381
    %3383 = vmatmul.f32.gmra.mxu0 %v3344
    %v3384 = vpop.f32.mrf.mxu0
    %v3385 = vadd.f32 0.0, %v3384
    %3386 = vmatmul.f32.gmra.mxu0 %v3347
    %v3387 = vpop.f32.mrf.mxu0
    %v3388 = vadd.f32 0.0, %v3387
    %3389 = vmatmul.f32.gmra.mxu0 %v3350
    %v3390 = vpop.f32.mrf.mxu0
    %v3391 = vadd.f32 0.0, %v3390
    %3392 = vmatmul.f32.gmra.mxu0 %v3353
    %v3393 = vpop.f32.mrf.mxu0
    %v3394 = vadd.f32 0.0, %v3393
    %3395 = vmatmul.f32.gmra.mxu0 %v3356
    %v3396 = vpop.f32.mrf.mxu0
    %v3397 = vadd.f32 0.0, %v3396
    %3398 = vmatmul.f32.gmra.mxu0 %v3359
    %v3399 = vpop.f32.mrf.mxu0
    %v3400 = vadd.f32 0.0, %v3399
    %3401 = vdwg.mxu0
    %s3402 = scalar_lea.vmem %s3, 64
    %v3403 = vld [vmem:[%s3402] sm:$0xff]
    %v3404 = vld [vmem:[%s3402 + $0x8] sm:$0xff]
    %v3405 = vld [vmem:[%s3402 + $0x10] sm:$0xff]
    %v3406 = vld [vmem:[%s3402 + $0x18] sm:$0xff]
    %v3407 = vld [vmem:[%s3402 + $0x20] sm:$0xff]
    %v3408 = vld [vmem:[%s3402 + $0x28] sm:$0xff]
    %v3409 = vld [vmem:[%s3402 + $0x30] sm:$0xff]
    %v3410 = vld [vmem:[%s3402 + $0x38] sm:$0xff]
    %v3411 = vmul.f32 %v3379, %v3403
    %v3412 = vmul.f32 %v3382, %v3404
    %v3413 = vmul.f32 %v3385, %v3405
    %v3414 = vmul.f32 %v3388, %v3406
    %v3415 = vmul.f32 %v3391, %v3407
    %v3416 = vmul.f32 %v3394, %v3408
    %v3417 = vmul.f32 %v3397, %v3409
    %v3418 = vmul.f32 %v3400, %v3410
    %v3419 = vadd.f32 %v3329, %v3411
    %v3420 = vadd.f32 %v3330, %v3412
    %v3421 = vadd.f32 %v3331, %v3413
    %v3422 = vadd.f32 %v3332, %v3414
    %v3423 = vadd.f32 %v3333, %v3415
    %v3424 = vadd.f32 %v3334, %v3416
    %v3425 = vadd.f32 %v3335, %v3417
    %v3426 = vadd.f32 %v3336, %v3418
    %v3428 = vsel %vm3247, %v3005, 0
    %v3431 = vsel %vm3247, %v3037, 0
    %v3434 = vsel %vm3247, %v3069, 0
    %v3437 = vsel %vm3247, %v3101, 0
    %v3440 = vsel %vm3247, %v3133, 0
    %v3443 = vsel %vm3247, %v3165, 0
    %v3446 = vsel %vm3247, %v3197, 0
    %v3449 = vsel %vm3247, %v3229, 0
    %3451 = vmatpush.msra.mxu0 0.0
    %3452 = vmatpush.msra.mxu0 0.0
    %3453 = vmatpush.msra.mxu0 0.0
    %3454 = vmatpush.msra.mxu0 0.0
    %3455 = vmatpush.msra.mxu0 0.0
    %3456 = vmatpush.msra.mxu0 0.0
    %3457 = vmatpush.msra.mxu0 0.0
    %3458 = vmatpush.msra.mxu0 0.0
    %3459 = vmatpush.msra.mxu0 0.0
    %3460 = vmatpush.msra.mxu0 0.0
    %3461 = vmatpush.msra.mxu0 0.0
    %3462 = vmatpush.msra.mxu0 0.0
    %3463 = vmatpush.msra.mxu0 0.0
    %3464 = vmatpush.msra.mxu0 0.0
    %3465 = vmatpush.msra.mxu0 0.0
    %3466 = vmatpush.msra.mxu0 %v3246
    %3467 = vmatmul.f32.gmra.mxu0 %v3428
    %v3468 = vpop.f32.mrf.mxu0
    %v3469 = vadd.f32 0.0, %v3468
    %3470 = vmatmul.f32.gmra.mxu0 %v3431
    %v3471 = vpop.f32.mrf.mxu0
    %v3472 = vadd.f32 0.0, %v3471
    %3473 = vmatmul.f32.gmra.mxu0 %v3434
    %v3474 = vpop.f32.mrf.mxu0
    %v3475 = vadd.f32 0.0, %v3474
    %3476 = vmatmul.f32.gmra.mxu0 %v3437
    %v3477 = vpop.f32.mrf.mxu0
    %v3478 = vadd.f32 0.0, %v3477
    %3479 = vmatmul.f32.gmra.mxu0 %v3440
    %v3480 = vpop.f32.mrf.mxu0
    %v3481 = vadd.f32 0.0, %v3480
    %3482 = vmatmul.f32.gmra.mxu0 %v3443
    %v3483 = vpop.f32.mrf.mxu0
    %v3484 = vadd.f32 0.0, %v3483
    %3485 = vmatmul.f32.gmra.mxu0 %v3446
    %v3486 = vpop.f32.mrf.mxu0
    %v3487 = vadd.f32 0.0, %v3486
    %3488 = vmatmul.f32.gmra.mxu0 %v3449
    %v3489 = vpop.f32.mrf.mxu0
    %v3490 = vadd.f32 0.0, %v3489
    %3491 = vdwg.mxu0
    %s3492 = scalar_lea.vmem %s3, 128
    %v3493 = vld [vmem:[%s3492] sm:$0xff]
    %v3494 = vld [vmem:[%s3492 + $0x8] sm:$0xff]
    %v3495 = vld [vmem:[%s3492 + $0x10] sm:$0xff]
    %v3496 = vld [vmem:[%s3492 + $0x18] sm:$0xff]
    %v3497 = vld [vmem:[%s3492 + $0x20] sm:$0xff]
    %v3498 = vld [vmem:[%s3492 + $0x28] sm:$0xff]
    %v3499 = vld [vmem:[%s3492 + $0x30] sm:$0xff]
    %v3500 = vld [vmem:[%s3492 + $0x38] sm:$0xff]
    %v3501 = vmul.f32 %v3469, %v3493
    %v3502 = vmul.f32 %v3472, %v3494
    %v3503 = vmul.f32 %v3475, %v3495
    %v3504 = vmul.f32 %v3478, %v3496
    %v3505 = vmul.f32 %v3481, %v3497
    %v3506 = vmul.f32 %v3484, %v3498
    %v3507 = vmul.f32 %v3487, %v3499
    %v3508 = vmul.f32 %v3490, %v3500
    %v3509 = vadd.f32 %v3419, %v3501
    %v3510 = vadd.f32 %v3420, %v3502
    %v3511 = vadd.f32 %v3421, %v3503
    %v3512 = vadd.f32 %v3422, %v3504
    %v3513 = vadd.f32 %v3423, %v3505
    %v3514 = vadd.f32 %v3424, %v3506
    %v3515 = vadd.f32 %v3425, %v3507
    %v3516 = vadd.f32 %v3426, %v3508
    %v3518 = vsel %vm3247, %v3006, 0
    %v3521 = vsel %vm3247, %v3038, 0
    %v3524 = vsel %vm3247, %v3070, 0
    %v3527 = vsel %vm3247, %v3102, 0
    %v3530 = vsel %vm3247, %v3134, 0
    %v3533 = vsel %vm3247, %v3166, 0
    %v3536 = vsel %vm3247, %v3198, 0
    %v3539 = vsel %vm3247, %v3230, 0
    %3541 = vmatpush.msra.mxu0 0.0
    %3542 = vmatpush.msra.mxu0 0.0
    %3543 = vmatpush.msra.mxu0 0.0
    %3544 = vmatpush.msra.mxu0 0.0
    %3545 = vmatpush.msra.mxu0 0.0
    %3546 = vmatpush.msra.mxu0 0.0
    %3547 = vmatpush.msra.mxu0 0.0
    %3548 = vmatpush.msra.mxu0 0.0
    %3549 = vmatpush.msra.mxu0 0.0
    %3550 = vmatpush.msra.mxu0 0.0
    %3551 = vmatpush.msra.mxu0 0.0
    %3552 = vmatpush.msra.mxu0 0.0
    %3553 = vmatpush.msra.mxu0 0.0
    %3554 = vmatpush.msra.mxu0 0.0
    %3555 = vmatpush.msra.mxu0 0.0
    %3556 = vmatpush.msra.mxu0 %v3246
    %3557 = vmatmul.f32.gmra.mxu0 %v3518
    %v3558 = vpop.f32.mrf.mxu0
    %v3559 = vadd.f32 0.0, %v3558
    %3560 = vmatmul.f32.gmra.mxu0 %v3521
    %v3561 = vpop.f32.mrf.mxu0
    %v3562 = vadd.f32 0.0, %v3561
    %3563 = vmatmul.f32.gmra.mxu0 %v3524
    %v3564 = vpop.f32.mrf.mxu0
    %v3565 = vadd.f32 0.0, %v3564
    %3566 = vmatmul.f32.gmra.mxu0 %v3527
    %v3567 = vpop.f32.mrf.mxu0
    %v3568 = vadd.f32 0.0, %v3567
    %3569 = vmatmul.f32.gmra.mxu0 %v3530
    %v3570 = vpop.f32.mrf.mxu0
    %v3571 = vadd.f32 0.0, %v3570
    %3572 = vmatmul.f32.gmra.mxu0 %v3533
    %v3573 = vpop.f32.mrf.mxu0
    %v3574 = vadd.f32 0.0, %v3573
    %3575 = vmatmul.f32.gmra.mxu0 %v3536
    %v3576 = vpop.f32.mrf.mxu0
    %v3577 = vadd.f32 0.0, %v3576
    %3578 = vmatmul.f32.gmra.mxu0 %v3539
    %v3579 = vpop.f32.mrf.mxu0
    %v3580 = vadd.f32 0.0, %v3579
    %3581 = vdwg.mxu0
    %s3582 = scalar_lea.vmem %s3, 192
    %v3583 = vld [vmem:[%s3582] sm:$0xff]
    %v3584 = vld [vmem:[%s3582 + $0x8] sm:$0xff]
    %v3585 = vld [vmem:[%s3582 + $0x10] sm:$0xff]
    %v3586 = vld [vmem:[%s3582 + $0x18] sm:$0xff]
    %v3587 = vld [vmem:[%s3582 + $0x20] sm:$0xff]
    %v3588 = vld [vmem:[%s3582 + $0x28] sm:$0xff]
    %v3589 = vld [vmem:[%s3582 + $0x30] sm:$0xff]
    %v3590 = vld [vmem:[%s3582 + $0x38] sm:$0xff]
    %v3591 = vmul.f32 %v3559, %v3583
    %v3592 = vmul.f32 %v3562, %v3584
    %v3593 = vmul.f32 %v3565, %v3585
    %v3594 = vmul.f32 %v3568, %v3586
    %v3595 = vmul.f32 %v3571, %v3587
    %v3596 = vmul.f32 %v3574, %v3588
    %v3597 = vmul.f32 %v3577, %v3589
    %v3598 = vmul.f32 %v3580, %v3590
    %v3599 = vadd.f32 %v3509, %v3591
    %v3600 = vadd.f32 %v3510, %v3592
    %v3601 = vadd.f32 %v3511, %v3593
    %v3602 = vadd.f32 %v3512, %v3594
    %v3603 = vadd.f32 %v3513, %v3595
    %v3604 = vadd.f32 %v3514, %v3596
    %v3605 = vadd.f32 %v3515, %v3597
    %v3606 = vadd.f32 %v3516, %v3598
    %s3607 = scalar_lea.vmem %s1, 96
    %v3608 = vld [vmem:[%s3607] sm:$0xff]
    %v3609 = vld [vmem:[%s3607 + $0x8] sm:$0xff]
    %v3610 = vld [vmem:[%s3607 + $0x10] sm:$0xff]
    %v3611 = vld [vmem:[%s3607 + $0x18] sm:$0xff]
    %s3612 = scalar_lea.vmem %s2, 3
    %v3613 = vld [vmem:[%s3612] sm:$0x1]
    %v3615 = vperm.slane %v3613, 0
    %v3618 = vsel %vm52, %v3599, 0
    %v3621 = vsel %vm52, %v3600, 0
    %v3624 = vsel %vm52, %v3601, 0
    %v3627 = vsel %vm52, %v3602, 0
    %v3630 = vsel %vm52, %v3603, 0
    %v3633 = vsel %vm52, %v3604, 0
    %v3636 = vsel %vm52, %v3605, 0
    %v3639 = vsel %vm52, %v3606, 0
    %3641 = vmatpush.msra.mxu0 0.0
    %3642 = vmatpush.msra.mxu0 0.0
    %3643 = vmatpush.msra.mxu0 0.0
    %3644 = vmatpush.msra.mxu0 0.0
    %3645 = vmatpush.msra.mxu0 0.0
    %3646 = vmatpush.msra.mxu0 0.0
    %3647 = vmatpush.msra.mxu0 0.0
    %3648 = vmatpush.msra.mxu0 0.0
    %3649 = vmatpush.msra.mxu0 0.0
    %3650 = vmatpush.msra.mxu0 0.0
    %3651 = vmatpush.msra.mxu0 0.0
    %3652 = vmatpush.msra.mxu0 0.0
    %3653 = vmatpush.msra.mxu0 %v3611
    %3654 = vmatpush.msra.mxu0 %v3610
    %3655 = vmatpush.msra.mxu0 %v3609
    %3656 = vmatpush.msra.mxu0 %v3608
    %3657 = vmatmul.f32.gmra.mxu0 %v3618
    %v3658 = vpop.f32.mrf.mxu0
    %v3659 = vadd.f32 %v3615, %v3658
    %3660 = vmatmul.f32.gmra.mxu0 %v3621
    %v3661 = vpop.f32.mrf.mxu0
    %v3662 = vadd.f32 %v3615, %v3661
    %3663 = vmatmul.f32.gmra.mxu0 %v3624
    %v3664 = vpop.f32.mrf.mxu0
    %v3665 = vadd.f32 %v3615, %v3664
    %3666 = vmatmul.f32.gmra.mxu0 %v3627
    %v3667 = vpop.f32.mrf.mxu0
    %v3668 = vadd.f32 %v3615, %v3667
    %3669 = vmatmul.f32.gmra.mxu0 %v3630
    %v3670 = vpop.f32.mrf.mxu0
    %v3671 = vadd.f32 %v3615, %v3670
    %3672 = vmatmul.f32.gmra.mxu0 %v3633
    %v3673 = vpop.f32.mrf.mxu0
    %v3674 = vadd.f32 %v3615, %v3673
    %3675 = vmatmul.f32.gmra.mxu0 %v3636
    %v3676 = vpop.f32.mrf.mxu0
    %v3677 = vadd.f32 %v3615, %v3676
    %3678 = vmatmul.f32.gmra.mxu0 %v3639
    %v3679 = vpop.f32.mrf.mxu0
    %v3680 = vadd.f32 %v3615, %v3679
    %3681 = vdwg.mxu0
    %3682 = vst.msk [vmem:[#allocation2] sm:$0xff] %vm52, %v3659
    %3683 = vst.msk [vmem:[#allocation2 + $0x8] sm:$0xff] %vm52, %v3662
    %3684 = vst.msk [vmem:[#allocation2 + $0x10] sm:$0xff] %vm52, %v3665
    %3685 = vst.msk [vmem:[#allocation2 + $0x18] sm:$0xff] %vm52, %v3668
    %3686 = vst.msk [vmem:[#allocation2 + $0x20] sm:$0xff] %vm52, %v3671
    %3687 = vst.msk [vmem:[#allocation2 + $0x28] sm:$0xff] %vm52, %v3674
    %3688 = vst.msk [vmem:[#allocation2 + $0x30] sm:$0xff] %vm52, %v3677
    %3689 = vst.msk [vmem:[#allocation2 + $0x38] sm:$0xff] %vm52, %v3680
    // Predicated region
    $region18: #{attention_channel_forward.1} parent=1 // pred_check
      _
    $region19: #{attention_channel_forward.1} parent=1 // pred_check_branch
      %3691 = sbr.rel (0) target = $region21
    $region20: #{attention_channel_forward.1} parent=1 // pred_region
      %3693 = vsyncadd [#allocation3], 0
      %s3694 = sshll.u32 [#allocation2], 4
      %s3695 = int_to_ptr.vmem [resolvable:$true] %s3694
      %s3696 = sshll.u32 %s4, 4
      %s3697 = int_to_ptr.hbm [resolvable:$true] %s3696
      %3702 = dma.vmem_to_hbm [thread:$0]  %s3695, 1024, %s3697, [#allocation3], 128, 128, 8
    $region21: #{attention_channel_forward.1} parent=1 // pred_fallthru
      _
    // Predicated region
    $region22: #{attention_channel_forward.1} parent=1 // pred_check
      _
    $region23: #{attention_channel_forward.1} parent=1 // pred_check_branch
      %3704 = sbr.rel (0) target = $region25
    $region24: #{attention_channel_forward.1} parent=1 // pred_region
      %3706 = dma.done [#allocation3], 1024
    $region25: #{attention_channel_forward.1} parent=1 // pred_fallthru
      _
    %3707 = vsyncpa [#allocation3], 1

</llo_original>
